<compile_context>
chip_gen: v7x
topology: tpu7x:2x2x1
jax: 0.10.0
libtpu: 0.0.40
codegen_flags: <defaults>
</compile_context>

<pallas_src>
import functools

import jax
import jax.numpy as jnp
from jax.experimental import pallas as pl
from jax.experimental.pallas import tpu as pltpu

LN_EPS = 1e-5
KERNEL_SIZE = 17  # ConvModule depthwise kernel size (MossFormer default)


def _round_up(v, m):
    return (v + m - 1) // m * m


def _chip_defaults():
    """Per-TPU-generation (tile_t, vmem_limit_bytes) defaults."""
    kind = ""
    try:
        kind = jax.devices()[0].device_kind.lower()
    except Exception:  # pragma: no cover - defensive
        pass
    gen = 0
    for i in range(len(kind) - 1):
        if kind[i] == "v" and kind[i + 1].isdigit():
            gen = int(kind[i + 1])
            break
    if gen >= 7:
        # v7x: only 64 MiB VMEM per TensorCore -> moderate tiles, capped limit.
        return 480, 44 * 1024 * 1024
    if gen == 6:
        # v6e: 128 MiB physical VMEM -> large tiles amortise per-step overhead.
        return 992, 80 * 1024 * 1024
    if gen == 5:
        # v5e/v5p: 128 MiB VMEM, f32-only VPU -> large tiles.
        return 992, 96 * 1024 * 1024
    # Unknown / older generation: conservative settings.
    return 480, 48 * 1024 * 1024


def _ffconvm_kernel(x_ref, xprev_ref, xnext_ref, lnw_ref, lnb_ref, w_ref,
                    b_ref, cw_ref, o_ref, *, t_valid, tile_t, halo, pad,
                    kernel_size, n_tail):
    j = pl.program_id(1)

    # ---- LayerNorm per piece (row-wise), cast to bf16 before concatenating ----
    lnw = lnw_ref[0]
    lnb = lnb_ref[0]

    def _ln_bf16(piece):
        xf = piece.astype(jnp.float32)
        mu = jnp.mean(xf, axis=-1, keepdims=True)
        xc = xf - mu
        var = jnp.mean(xc * xc, axis=-1, keepdims=True)
        xn = xc * jax.lax.rsqrt(var + LN_EPS)
        return (xn * lnw + lnb).astype(jnp.bfloat16)

    # All piece boundaries (halo, halo+tile_t) are multiples of 16 -> aligned
    # for both f32 and bf16 sublane packing; the concat is vreg-granular.
    xn = jnp.concatenate(
        [_ln_bf16(xprev_ref[0]), _ln_bf16(x_ref[0]), _ln_bf16(xnext_ref[0])],
        axis=0)                                          # (tile_t+2*halo, Din) bf16

    # ---- Linear (dim_in -> dim_out): bf16 x bf16 -> f32 accumulate on MXU -----
    h = jnp.dot(xn, w_ref[...], preferred_element_type=jnp.float32) + b_ref[0]

    # ---- SiLU (f32 epilogue) ---------------------------------------------------
    h = h * jax.nn.sigmoid(h)

    # ---- edge-only validity masking (no full-tile select) -----------------------
    # Prev-halo rows are clamped (wrong data) only for j == 0 -> scalar gate.
    h_prev = jnp.where(j > 0, h[:halo], 0.0)
    # Next-halo rows are invalid when their global index >= T (covers the
    # clamped last tile and a T-crossing inside the penultimate tile's halo).
    nxt_rows = ((j + 1) * tile_t
                + jax.lax.broadcasted_iota(jnp.int32, (halo, 1), 0))
    h_next = jnp.where(nxt_rows < t_valid, h[halo + tile_t:], 0.0)
    if n_tail > 0:
        # Only the statically-known last n_tail rows of the main region can be
        # padding; interior tiles pass the per-row test and stay untouched.
        tail_rows = (j * tile_t + (tile_t - n_tail)
                     + jax.lax.broadcasted_iota(jnp.int32, (n_tail, 1), 0))
        h_tail = jnp.where(tail_rows < t_valid,
                           h[halo + tile_t - n_tail:halo + tile_t], 0.0)
        h_mid = jnp.concatenate([h[halo:halo + tile_t - n_tail], h_tail],
                                axis=0)
    else:
        h_mid = h[halo:halo + tile_t]
    h = jnp.concatenate([h_prev, h_mid, h_next], axis=0)

    # ---- depthwise conv along time ('same'); residual folded into centre tap ---
    # Phase-grouped: one sublane shift per phase, all accumulation slices start
    # on 8-row boundaries (no per-tap realign copies).
    base = halo - pad
    acc = None
    for p in range(8):
        taps = [k for k in range(kernel_size) if (base + k - p) % 8 == 0]
        if not taps:
            continue
        hp = h if p == 0 else h[p:]            # single shift for this phase
        for k in taps:
            s = base + k - p                    # multiple of 8 -> aligned slice
            term = hp[s:s + tile_t] * cw_ref[k, :]
            acc = term if acc is None else acc + term

    # Dropout -> identity (eval mode).
    o_ref[0] = acc.astype(o_ref.dtype)


def ffconvm_forward(x, ln_w, ln_b, lin_w, lin_b, conv_w, *, tile_t=None,
                    vmem_limit_bytes=None):
    """x: (B, T, Din) f32 -> (B, T, Dout) f32.

    ln_w, ln_b: (1, Din); lin_w: (Din, Dout) (PyTorch Linear weight transposed);
    lin_b: (1, Dout); conv_w: (K, Dout) depthwise taps (Conv1d (Dout,1,K) permuted).
    """
    B, T, din = x.shape
    dout = lin_w.shape[1]
    K = conv_w.shape[0]
    pad = (K - 1) // 2

    # halo >= pad, multiple of 16 so every concat/slice boundary stays aligned
    # for both f32 (8-row) and bf16 (16-row) sublane packing.
    halo = _round_up(max(pad, 8), 16)

    dflt_tile, dflt_vmem = _chip_defaults()
    if tile_t is None:
        tile_t = dflt_tile
    if vmem_limit_bytes is None:
        vmem_limit_bytes = dflt_vmem

    # Clamp / align the time tile (multiple of halo; halo is a multiple of 16).
    tile_t = max(halo, min(tile_t, _round_up(T, halo)))
    tile_t = _round_up(tile_t, halo)
    # Prefer a tile that divides T exactly: avoids the padded tail (and its
    # mask) and the wrapper's un-pad slice, an extra HBM pass over the output.
    if T % tile_t != 0:
        for cand in range(tile_t, halo - 1, -halo):
            if T % cand == 0:
                if 2 * cand >= tile_t:
                    tile_t = cand
                break

    n_t = -(-T // tile_t)
    t_pad = n_t * tile_t
    n_tail = t_pad - T
    if n_tail:
        x = jnp.pad(x, ((0, 0), (0, n_tail), (0, 0)))

    # Pad dim_out to a lane multiple so the output store is lane-dense.
    dout_p = _round_up(dout, 128)
    if dout_p != dout:
        lin_w = jnp.pad(lin_w, ((0, 0), (0, dout_p - dout)))
        lin_b = jnp.pad(lin_b, ((0, 0), (0, dout_p - dout)))
        conv_w = jnp.pad(conv_w, ((0, 0), (0, dout_p - dout)))

    # Residual folded into the centre tap; weight stored bf16 (half the DMA).
    conv_f = conv_w.astype(jnp.float32).at[pad].add(1.0)
    w_bf16 = lin_w.astype(jnp.bfloat16)

    r = tile_t // halo            # halo-blocks per time tile
    n_hblk = t_pad // halo        # halo-blocks along the (padded) time axis

    kernel = functools.partial(
        _ffconvm_kernel, t_valid=T, tile_t=tile_t, halo=halo, pad=pad,
        kernel_size=K, n_tail=n_tail)

    # TODO(synk): single-buffer the constant-index weight inputs via
    # pipeline_mode=pl.Buffered(1) once the installed JAX/Mosaic supports it.
    out = pl.pallas_call(
        kernel,
        out_shape=jax.ShapeDtypeStruct((B, t_pad, dout_p), jnp.float32),
        grid_spec=pltpu.PrefetchScalarGridSpec(
            num_scalar_prefetch=0,
            grid=(B, n_t),
            in_specs=[
                pl.BlockSpec((1, tile_t, din), lambda b, j: (b, j, 0)),   # x main
                pl.BlockSpec((1, halo, din),                               # prev halo
                             lambda b, j: (b, jnp.maximum(j * r - 1, 0), 0)),
                pl.BlockSpec((1, halo, din),                               # next halo
                             lambda b, j: (b, jnp.minimum((j + 1) * r,
                                                          n_hblk - 1), 0)),
                pl.BlockSpec((1, din), lambda b, j: (0, 0)),               # ln weight
                pl.BlockSpec((1, din), lambda b, j: (0, 0)),               # ln bias
                pl.BlockSpec((din, dout_p), lambda b, j: (0, 0)),          # linear W (bf16)
                pl.BlockSpec((1, dout_p), lambda b, j: (0, 0)),            # linear bias
                pl.BlockSpec((K, dout_p), lambda b, j: (0, 0)),            # conv taps
            ],
            out_specs=pl.BlockSpec((1, tile_t, dout_p), lambda b, j: (b, j, 0)),
        ),
        compiler_params=pltpu.CompilerParams(
            dimension_semantics=("parallel", "parallel"),
            vmem_limit_bytes=vmem_limit_bytes),
    )(x, x, x, ln_w, ln_b, w_bf16, lin_b, conv_f)

    if n_tail or dout_p != dout:
        out = out[:, :T, :dout]
    return out


def reference_forward(x, ln_w, ln_b, lin_w, lin_b, conv_w,
                      matmul_dtype=jnp.float32):
    """Pure-JAX reference matching PyTorch semantics (eval mode)."""
    mu = jnp.mean(x, axis=-1, keepdims=True)
    var = jnp.mean((x - mu) ** 2, axis=-1, keepdims=True)
    xn = (x - mu) * jax.lax.rsqrt(var + LN_EPS) * ln_w[0] + ln_b[0]
    h = jnp.dot(xn.astype(matmul_dtype), lin_w.astype(matmul_dtype),
                preferred_element_type=jnp.float32) + lin_b[0]
    h = h * jax.nn.sigmoid(h)
    K = conv_w.shape[0]
    pad = (K - 1) // 2
    hp = jnp.pad(h, ((0, 0), (pad, pad), (0, 0)))
    conv = sum(hp[:, k:k + h.shape[1], :] * conv_w[k] for k in range(K))
    return h + conv  # dropout = identity


if __name__ == "__main__":
    key = jax.random.PRNGKey(0)

    def make_params(k, din, dout):
        k1, k2, k3, k4, k5 = jax.random.split(k, 5)
        ln_w = 1.0 + 0.01 * jax.random.normal(k1, (1, din), jnp.float32)
        ln_b = 0.01 * jax.random.normal(k2, (1, din), jnp.float32)
        lin_w = jax.random.normal(k3, (din, dout), jnp.float32) / jnp.sqrt(din)
        lin_b = 0.01 * jax.random.normal(k4, (1, dout), jnp.float32)
        conv_w = (jax.random.normal(k5, (KERNEL_SIZE, dout), jnp.float32)
                  / KERNEL_SIZE)
        return ln_w, ln_b, lin_w, lin_b, conv_w

    def check(xin, params, **kw):
        out = jax.block_until_ready(ffconvm_forward(xin, *params, **kw))
        assert out.shape == (xin.shape[0], xin.shape[1], params[2].shape[1])
        # Precision-matched reference (bf16 matmul inputs, like the kernel).
        ref_bf16 = reference_forward(xin, *params, matmul_dtype=jnp.bfloat16)
        assert jnp.allclose(out, ref_bf16, atol=5e-3, rtol=5e-3), \
            "mismatch (bf16 ref)"
        # Loose check against the exact f32 semantics of the PyTorch module.
        ref_f32 = reference_forward(xin, *params)
        assert jnp.allclose(out, ref_f32, atol=1e-1, rtol=1e-1), \
            "mismatch (f32 ref)"

    # Case 1: multi-tile path, T an exact multiple of the tile, explicit tile_t.
    # Exercises interior tiles, both clamped edge halos and MXU-aligned M=128.
    k0, k1, k2, k3 = jax.random.split(key, 4)
    B, T, DIN, DOUT = 2, 192, 128, 256
    x1 = jax.random.normal(k0, (B, T, DIN), jnp.float32)
    p1 = make_params(k1, DIN, DOUT)
    check(x1, p1, tile_t=96)

    # Case 2: chip-default tile clamped to a short ragged sequence (T=152),
    # exercising the static tail mask, halo clamping and dout padding (192->256).
    B2, T2, DIN2, DOUT2 = 1, 152, 64, 192
    x2 = jax.random.normal(k2, (B2, T2, DIN2), jnp.float32)
    p2 = make_params(k3, DIN2, DOUT2)
    check(x2, p2)

    # TODO(synk): dropout is treated as identity (eval mode); training-mode RNG
    # dropout would use pltpu.prng_seed / pltpu.prng_random_bits.
    print("KERNEL_OK")
</pallas_src>

<mosaic_0001>
module attributes {stable_mosaic.version = 11 : i64} {
  func.func @_ffconvm_kernel(%arg0: i32, %arg1: i32, %arg2: memref<1x96x128xf32, #tpu.memory_space<vmem>>, %arg3: memref<1x16x128xf32, #tpu.memory_space<vmem>>, %arg4: memref<1x16x128xf32, #tpu.memory_space<vmem>>, %arg5: memref<1x128xf32, #tpu.memory_space<vmem>>, %arg6: memref<1x128xf32, #tpu.memory_space<vmem>>, %arg7: memref<128x256xbf16, #tpu.memory_space<vmem>>, %arg8: memref<1x256xf32, #tpu.memory_space<vmem>>, %arg9: memref<17x256xf32, #tpu.memory_space<vmem>>, %arg10: memref<1x96x256xf32, #tpu.memory_space<vmem>>) attributes {dimension_semantics = [#tpu.dimension_semantics<parallel>, #tpu.dimension_semantics<parallel>], iteration_bounds = array<i64: 2, 2>, scalar_prefetch = 0 : i64, scratch_operands = 0 : i64, tpu.core_type = #tpu.core_type<tc>, window_params = [{transform_indices = @transform_0, window_bounds = array<i64: 1, 96, 128>}, {transform_indices = @transform_1, window_bounds = array<i64: 1, 16, 128>}, {transform_indices = @transform_2, window_bounds = array<i64: 1, 16, 128>}, {pipeline_mode = #tpu.pipeline_mode<synchronous>, transform_indices = @transform_3, window_bounds = array<i64: 1, 128>}, {pipeline_mode = #tpu.pipeline_mode<synchronous>, transform_indices = @transform_4, window_bounds = array<i64: 1, 128>}, {pipeline_mode = #tpu.pipeline_mode<synchronous>, transform_indices = @transform_5, window_bounds = array<i64: 128, 256>}, {pipeline_mode = #tpu.pipeline_mode<synchronous>, transform_indices = @transform_6, window_bounds = array<i64: 1, 256>}, {pipeline_mode = #tpu.pipeline_mode<synchronous>, transform_indices = @transform_7, window_bounds = array<i64: 17, 256>}, {transform_indices = @transform_8, window_bounds = array<i64: 1, 96, 256>}]} {
    %c0 = arith.constant 0 : index
    %c0_0 = arith.constant 0 : index
    %0 = vector.load %arg5[%c0, %c0_0] : memref<1x128xf32, #tpu.memory_space<vmem>>, vector<1x128xf32>
    %1 = vector.shape_cast %0 : vector<1x128xf32> to vector<128xf32>
    %c0_1 = arith.constant 0 : index
    %c0_2 = arith.constant 0 : index
    %2 = vector.load %arg6[%c0_1, %c0_2] : memref<1x128xf32, #tpu.memory_space<vmem>>, vector<1x128xf32>
    %3 = vector.shape_cast %2 : vector<1x128xf32> to vector<128xf32>
    %c0_3 = arith.constant 0 : index
    %c0_4 = arith.constant 0 : index
    %c0_5 = arith.constant 0 : index
    %4 = vector.load %arg3[%c0_3, %c0_4, %c0_5] : memref<1x16x128xf32, #tpu.memory_space<vmem>>, vector<1x16x128xf32>
    %5 = vector.shape_cast %4 : vector<1x16x128xf32> to vector<16x128xf32>
    %cst = arith.constant dense<0.000000e+00> : vector<16xf32>
    %6 = vector.multi_reduction <add>, %5, %cst [1] : vector<16x128xf32> to vector<16xf32>
    %7 = vector.shape_cast %6 : vector<16xf32> to vector<16x1xf32>
    %cst_6 = arith.constant 1.280000e+02 : f32
    %8 = vector.broadcast %cst_6 : f32 to vector<16x1xf32>
    %9 = arith.divf %7, %8 : vector<16x1xf32>
    %10 = vector.broadcast %9 : vector<16x1xf32> to vector<16x128xf32>
    %11 = arith.subf %5, %10 : vector<16x128xf32>
    %12 = arith.mulf %11, %11 : vector<16x128xf32>
    %cst_7 = arith.constant dense<0.000000e+00> : vector<16xf32>
    %13 = vector.multi_reduction <add>, %12, %cst_7 [1] : vector<16x128xf32> to vector<16xf32>
    %14 = vector.shape_cast %13 : vector<16xf32> to vector<16x1xf32>
    %cst_8 = arith.constant 1.280000e+02 : f32
    %15 = vector.broadcast %cst_8 : f32 to vector<16x1xf32>
    %16 = arith.divf %14, %15 : vector<16x1xf32>
    %cst_9 = arith.constant 9.99999974E-6 : f32
    %17 = vector.broadcast %cst_9 : f32 to vector<16x1xf32>
    %18 = arith.addf %16, %17 : vector<16x1xf32>
    %19 = math.rsqrt %18 : vector<16x1xf32>
    %20 = vector.broadcast %19 : vector<16x1xf32> to vector<16x128xf32>
    %21 = arith.mulf %11, %20 : vector<16x128xf32>
    %22 = vector.shape_cast %1 : vector<128xf32> to vector<1x128xf32>
    %23 = vector.broadcast %22 : vector<1x128xf32> to vector<16x128xf32>
    %24 = arith.mulf %21, %23 : vector<16x128xf32>
    %25 = vector.shape_cast %3 : vector<128xf32> to vector<1x128xf32>
    %26 = vector.broadcast %25 : vector<1x128xf32> to vector<16x128xf32>
    %27 = arith.addf %24, %26 : vector<16x128xf32>
    %28 = arith.truncf %27 : vector<16x128xf32> to vector<16x128xbf16>
    %c0_10 = arith.constant 0 : index
    %c0_11 = arith.constant 0 : index
    %c0_12 = arith.constant 0 : index
    %29 = vector.load %arg2[%c0_10, %c0_11, %c0_12] : memref<1x96x128xf32, #tpu.memory_space<vmem>>, vector<1x96x128xf32>
    %30 = vector.shape_cast %29 : vector<1x96x128xf32> to vector<96x128xf32>
    %cst_13 = arith.constant dense<0.000000e+00> : vector<96xf32>
    %31 = vector.multi_reduction <add>, %30, %cst_13 [1] : vector<96x128xf32> to vector<96xf32>
    %32 = vector.shape_cast %31 : vector<96xf32> to vector<96x1xf32>
    %cst_14 = arith.constant 1.280000e+02 : f32
    %33 = vector.broadcast %cst_14 : f32 to vector<96x1xf32>
    %34 = arith.divf %32, %33 : vector<96x1xf32>
    %35 = vector.broadcast %34 : vector<96x1xf32> to vector<96x128xf32>
    %36 = arith.subf %30, %35 : vector<96x128xf32>
    %37 = arith.mulf %36, %36 : vector<96x128xf32>
    %cst_15 = arith.constant dense<0.000000e+00> : vector<96xf32>
    %38 = vector.multi_reduction <add>, %37, %cst_15 [1] : vector<96x128xf32> to vector<96xf32>
    %39 = vector.shape_cast %38 : vector<96xf32> to vector<96x1xf32>
    %cst_16 = arith.constant 1.280000e+02 : f32
    %40 = vector.broadcast %cst_16 : f32 to vector<96x1xf32>
    %41 = arith.divf %39, %40 : vector<96x1xf32>
    %cst_17 = arith.constant 9.99999974E-6 : f32
    %42 = vector.broadcast %cst_17 : f32 to vector<96x1xf32>
    %43 = arith.addf %41, %42 : vector<96x1xf32>
    %44 = math.rsqrt %43 : vector<96x1xf32>
    %45 = vector.broadcast %44 : vector<96x1xf32> to vector<96x128xf32>
    %46 = arith.mulf %36, %45 : vector<96x128xf32>
    %47 = vector.shape_cast %1 : vector<128xf32> to vector<1x128xf32>
    %48 = vector.broadcast %47 : vector<1x128xf32> to vector<96x128xf32>
    %49 = arith.mulf %46, %48 : vector<96x128xf32>
    %50 = vector.shape_cast %3 : vector<128xf32> to vector<1x128xf32>
    %51 = vector.broadcast %50 : vector<1x128xf32> to vector<96x128xf32>
    %52 = arith.addf %49, %51 : vector<96x128xf32>
    %53 = arith.truncf %52 : vector<96x128xf32> to vector<96x128xbf16>
    %c0_18 = arith.constant 0 : index
    %c0_19 = arith.constant 0 : index
    %c0_20 = arith.constant 0 : index
    %54 = vector.load %arg4[%c0_18, %c0_19, %c0_20] : memref<1x16x128xf32, #tpu.memory_space<vmem>>, vector<1x16x128xf32>
    %55 = vector.shape_cast %54 : vector<1x16x128xf32> to vector<16x128xf32>
    %cst_21 = arith.constant dense<0.000000e+00> : vector<16xf32>
    %56 = vector.multi_reduction <add>, %55, %cst_21 [1] : vector<16x128xf32> to vector<16xf32>
    %57 = vector.shape_cast %56 : vector<16xf32> to vector<16x1xf32>
    %cst_22 = arith.constant 1.280000e+02 : f32
    %58 = vector.broadcast %cst_22 : f32 to vector<16x1xf32>
    %59 = arith.divf %57, %58 : vector<16x1xf32>
    %60 = vector.broadcast %59 : vector<16x1xf32> to vector<16x128xf32>
    %61 = arith.subf %55, %60 : vector<16x128xf32>
    %62 = arith.mulf %61, %61 : vector<16x128xf32>
    %cst_23 = arith.constant dense<0.000000e+00> : vector<16xf32>
    %63 = vector.multi_reduction <add>, %62, %cst_23 [1] : vector<16x128xf32> to vector<16xf32>
    %64 = vector.shape_cast %63 : vector<16xf32> to vector<16x1xf32>
    %cst_24 = arith.constant 1.280000e+02 : f32
    %65 = vector.broadcast %cst_24 : f32 to vector<16x1xf32>
    %66 = arith.divf %64, %65 : vector<16x1xf32>
    %cst_25 = arith.constant 9.99999974E-6 : f32
    %67 = vector.broadcast %cst_25 : f32 to vector<16x1xf32>
    %68 = arith.addf %66, %67 : vector<16x1xf32>
    %69 = math.rsqrt %68 : vector<16x1xf32>
    %70 = vector.broadcast %69 : vector<16x1xf32> to vector<16x128xf32>
    %71 = arith.mulf %61, %70 : vector<16x128xf32>
    %72 = vector.shape_cast %1 : vector<128xf32> to vector<1x128xf32>
    %73 = vector.broadcast %72 : vector<1x128xf32> to vector<16x128xf32>
    %74 = arith.mulf %71, %73 : vector<16x128xf32>
    %75 = vector.shape_cast %3 : vector<128xf32> to vector<1x128xf32>
    %76 = vector.broadcast %75 : vector<1x128xf32> to vector<16x128xf32>
    %77 = arith.addf %74, %76 : vector<16x128xf32>
    %78 = arith.truncf %77 : vector<16x128xf32> to vector<16x128xbf16>
    %79 = tpu.concatenate %28, %53, %78 in 0 : vector<16x128xbf16>, vector<96x128xbf16>, vector<16x128xbf16> -> vector<128x128xbf16>
    %c0_26 = arith.constant 0 : index
    %c0_27 = arith.constant 0 : index
    %80 = vector.load %arg7[%c0_26, %c0_27] : memref<128x256xbf16, #tpu.memory_space<vmem>>, vector<128x256xbf16>
    %cst_28 = arith.constant dense<0.000000e+00> : vector<128x256xf32>
    %81 = tpu.matmul %79, %80, %cst_28 {dimension_numbers = #tpu.dot_dimension_numbers<[1], [0], [0], [1], [0, 0, 1, 1], [], []>} : vector<128x128xbf16>, vector<128x256xbf16>, vector<128x256xf32> -> vector<128x256xf32>
    %c0_29 = arith.constant 0 : index
    %c0_30 = arith.constant 0 : index
    %82 = vector.load %arg8[%c0_29, %c0_30] : memref<1x256xf32, #tpu.memory_space<vmem>>, vector<1x256xf32>
    %83 = vector.shape_cast %82 : vector<1x256xf32> to vector<256xf32>
    %84 = vector.shape_cast %83 : vector<256xf32> to vector<1x256xf32>
    %85 = vector.broadcast %84 : vector<1x256xf32> to vector<128x256xf32>
    %86 = arith.addf %81, %85 : vector<128x256xf32>
    %87 = arith.negf %86 : vector<128x256xf32>
    %88 = math.exp %87 : vector<128x256xf32>
    %cst_31 = arith.constant 1.000000e+00 : f32
    %89 = vector.broadcast %cst_31 : f32 to vector<128x256xf32>
    %90 = arith.addf %89, %88 : vector<128x256xf32>
    %91 = arith.divf %89, %90 : vector<128x256xf32>
    %92 = arith.mulf %86, %91 : vector<128x256xf32>
    %c0_i32 = arith.constant 0 : i32
    %93 = arith.cmpi sgt, %arg1, %c0_i32 : i32
    %94 = vector.extract_strided_slice %92 {offsets = [0, 0], sizes = [16, 256], strides = [1, 1]} : vector<128x256xf32> to vector<16x256xf32>
    %cst_32 = arith.constant 0.000000e+00 : f32
    %95 = vector.broadcast %cst_32 : f32 to vector<16x256xf32>
    %96 = arith.select %93, %94, %95 : vector<16x256xf32>
    %c1_i32 = arith.constant 1 : i32
    %97 = arith.addi %arg1, %c1_i32 : i32
    %c96_i32 = arith.constant 96 : i32
    %98 = arith.muli %97, %c96_i32 : i32
    %99 = tpu.iota {dimensions = array<i32: 0>} : vector<16x1xi32>
    %100 = vector.broadcast %98 : i32 to vector<16x1xi32>
    %101 = arith.addi %100, %99 : vector<16x1xi32>
    %c192_i32 = arith.constant 192 : i32
    %102 = vector.broadcast %c192_i32 : i32 to vector<16x1xi32>
    %103 = arith.cmpi slt, %101, %102 : vector<16x1xi32>
    %104 = vector.extract_strided_slice %92 {offsets = [112, 0], sizes = [16, 256], strides = [1, 1]} : vector<128x256xf32> to vector<16x256xf32>
    %cst_33 = arith.constant 0.000000e+00 : f32
    %105 = vector.shape_cast %103 : vector<16x1xi1> to vector<16x1xi1>
    %106 = vector.broadcast %105 : vector<16x1xi1> to vector<16x256xi1>
    %107 = vector.broadcast %cst_33 : f32 to vector<16x256xf32>
    %108 = arith.select %106, %104, %107 : vector<16x256xi1>, vector<16x256xf32>
    %109 = vector.extract_strided_slice %92 {offsets = [16, 0], sizes = [96, 256], strides = [1, 1]} : vector<128x256xf32> to vector<96x256xf32>
    %110 = tpu.concatenate %96, %109, %108 in 0 : vector<16x256xf32>, vector<96x256xf32>, vector<16x256xf32> -> vector<128x256xf32>
    %111 = vector.extract_strided_slice %110 {offsets = [8, 0], sizes = [96, 256], strides = [1, 1]} : vector<128x256xf32> to vector<96x256xf32>
    %c0_34 = arith.constant 0 : index
    %c0_35 = arith.constant 0 : index
    %112 = vector.load %arg9[%c0_34, %c0_35] : memref<17x256xf32, #tpu.memory_space<vmem>>, vector<1x256xf32>
    %113 = vector.shape_cast %112 : vector<1x256xf32> to vector<256xf32>
    %114 = vector.shape_cast %113 : vector<256xf32> to vector<1x256xf32>
    %115 = vector.broadcast %114 : vector<1x256xf32> to vector<96x256xf32>
    %116 = arith.mulf %111, %115 : vector<96x256xf32>
    %117 = vector.extract_strided_slice %110 {offsets = [16, 0], sizes = [96, 256], strides = [1, 1]} : vector<128x256xf32> to vector<96x256xf32>
    %c8 = arith.constant 8 : index
    %c0_36 = arith.constant 0 : index
    %118 = vector.load %arg9[%c8, %c0_36] : memref<17x256xf32, #tpu.memory_space<vmem>>, vector<1x256xf32>
    %119 = vector.shape_cast %118 : vector<1x256xf32> to vector<256xf32>
    %120 = vector.shape_cast %119 : vector<256xf32> to vector<1x256xf32>
    %121 = vector.broadcast %120 : vector<1x256xf32> to vector<96x256xf32>
    %122 = arith.mulf %117, %121 : vector<96x256xf32>
    %123 = arith.addf %116, %122 : vector<96x256xf32>
    %124 = vector.extract_strided_slice %110 {offsets = [24, 0], sizes = [96, 256], strides = [1, 1]} : vector<128x256xf32> to vector<96x256xf32>
    %c16 = arith.constant 16 : index
    %c0_37 = arith.constant 0 : index
    %125 = vector.load %arg9[%c16, %c0_37] : memref<17x256xf32, #tpu.memory_space<vmem>>, vector<1x256xf32>
    %126 = vector.shape_cast %125 : vector<1x256xf32> to vector<256xf32>
    %127 = vector.shape_cast %126 : vector<256xf32> to vector<1x256xf32>
    %128 = vector.broadcast %127 : vector<1x256xf32> to vector<96x256xf32>
    %129 = arith.mulf %124, %128 : vector<96x256xf32>
    %130 = arith.addf %123, %129 : vector<96x256xf32>
    %131 = vector.extract_strided_slice %110 {offsets = [1, 0], sizes = [127, 256], strides = [1, 1]} : vector<128x256xf32> to vector<127x256xf32>
    %132 = vector.extract_strided_slice %131 {offsets = [8, 0], sizes = [96, 256], strides = [1, 1]} : vector<127x256xf32> to vector<96x256xf32>
    %c1 = arith.constant 1 : index
    %c0_38 = arith.constant 0 : index
    %133 = vector.load %arg9[%c1, %c0_38] : memref<17x256xf32, #tpu.memory_space<vmem>>, vector<1x256xf32>
    %134 = vector.shape_cast %133 : vector<1x256xf32> to vector<256xf32>
    %135 = vector.shape_cast %134 : vector<256xf32> to vector<1x256xf32>
    %136 = vector.broadcast %135 : vector<1x256xf32> to vector<96x256xf32>
    %137 = arith.mulf %132, %136 : vector<96x256xf32>
    %138 = arith.addf %130, %137 : vector<96x256xf32>
    %139 = vector.extract_strided_slice %131 {offsets = [16, 0], sizes = [96, 256], strides = [1, 1]} : vector<127x256xf32> to vector<96x256xf32>
    %c9 = arith.constant 9 : index
    %c0_39 = arith.constant 0 : index
    %140 = vector.load %arg9[%c9, %c0_39] : memref<17x256xf32, #tpu.memory_space<vmem>>, vector<1x256xf32>
    %141 = vector.shape_cast %140 : vector<1x256xf32> to vector<256xf32>
    %142 = vector.shape_cast %141 : vector<256xf32> to vector<1x256xf32>
    %143 = vector.broadcast %142 : vector<1x256xf32> to vector<96x256xf32>
    %144 = arith.mulf %139, %143 : vector<96x256xf32>
    %145 = arith.addf %138, %144 : vector<96x256xf32>
    %146 = vector.extract_strided_slice %110 {offsets = [2, 0], sizes = [126, 256], strides = [1, 1]} : vector<128x256xf32> to vector<126x256xf32>
    %147 = vector.extract_strided_slice %146 {offsets = [8, 0], sizes = [96, 256], strides = [1, 1]} : vector<126x256xf32> to vector<96x256xf32>
    %c2 = arith.constant 2 : index
    %c0_40 = arith.constant 0 : index
    %148 = vector.load %arg9[%c2, %c0_40] : memref<17x256xf32, #tpu.memory_space<vmem>>, vector<1x256xf32>
    %149 = vector.shape_cast %148 : vector<1x256xf32> to vector<256xf32>
    %150 = vector.shape_cast %149 : vector<256xf32> to vector<1x256xf32>
    %151 = vector.broadcast %150 : vector<1x256xf32> to vector<96x256xf32>
    %152 = arith.mulf %147, %151 : vector<96x256xf32>
    %153 = arith.addf %145, %152 : vector<96x256xf32>
    %154 = vector.extract_strided_slice %146 {offsets = [16, 0], sizes = [96, 256], strides = [1, 1]} : vector<126x256xf32> to vector<96x256xf32>
    %c10 = arith.constant 10 : index
    %c0_41 = arith.constant 0 : index
    %155 = vector.load %arg9[%c10, %c0_41] : memref<17x256xf32, #tpu.memory_space<vmem>>, vector<1x256xf32>
    %156 = vector.shape_cast %155 : vector<1x256xf32> to vector<256xf32>
    %157 = vector.shape_cast %156 : vector<256xf32> to vector<1x256xf32>
    %158 = vector.broadcast %157 : vector<1x256xf32> to vector<96x256xf32>
    %159 = arith.mulf %154, %158 : vector<96x256xf32>
    %160 = arith.addf %153, %159 : vector<96x256xf32>
    %161 = vector.extract_strided_slice %110 {offsets = [3, 0], sizes = [125, 256], strides = [1, 1]} : vector<128x256xf32> to vector<125x256xf32>
    %162 = vector.extract_strided_slice %161 {offsets = [8, 0], sizes = [96, 256], strides = [1, 1]} : vector<125x256xf32> to vector<96x256xf32>
    %c3 = arith.constant 3 : index
    %c0_42 = arith.constant 0 : index
    %163 = vector.load %arg9[%c3, %c0_42] : memref<17x256xf32, #tpu.memory_space<vmem>>, vector<1x256xf32>
    %164 = vector.shape_cast %163 : vector<1x256xf32> to vector<256xf32>
    %165 = vector.shape_cast %164 : vector<256xf32> to vector<1x256xf32>
    %166 = vector.broadcast %165 : vector<1x256xf32> to vector<96x256xf32>
    %167 = arith.mulf %162, %166 : vector<96x256xf32>
    %168 = arith.addf %160, %167 : vector<96x256xf32>
    %169 = vector.extract_strided_slice %161 {offsets = [16, 0], sizes = [96, 256], strides = [1, 1]} : vector<125x256xf32> to vector<96x256xf32>
    %c11 = arith.constant 11 : index
    %c0_43 = arith.constant 0 : index
    %170 = vector.load %arg9[%c11, %c0_43] : memref<17x256xf32, #tpu.memory_space<vmem>>, vector<1x256xf32>
    %171 = vector.shape_cast %170 : vector<1x256xf32> to vector<256xf32>
    %172 = vector.shape_cast %171 : vector<256xf32> to vector<1x256xf32>
    %173 = vector.broadcast %172 : vector<1x256xf32> to vector<96x256xf32>
    %174 = arith.mulf %169, %173 : vector<96x256xf32>
    %175 = arith.addf %168, %174 : vector<96x256xf32>
    %176 = vector.extract_strided_slice %110 {offsets = [4, 0], sizes = [124, 256], strides = [1, 1]} : vector<128x256xf32> to vector<124x256xf32>
    %177 = vector.extract_strided_slice %176 {offsets = [8, 0], sizes = [96, 256], strides = [1, 1]} : vector<124x256xf32> to vector<96x256xf32>
    %c4 = arith.constant 4 : index
    %c0_44 = arith.constant 0 : index
    %178 = vector.load %arg9[%c4, %c0_44] : memref<17x256xf32, #tpu.memory_space<vmem>>, vector<1x256xf32>
    %179 = vector.shape_cast %178 : vector<1x256xf32> to vector<256xf32>
    %180 = vector.shape_cast %179 : vector<256xf32> to vector<1x256xf32>
    %181 = vector.broadcast %180 : vector<1x256xf32> to vector<96x256xf32>
    %182 = arith.mulf %177, %181 : vector<96x256xf32>
    %183 = arith.addf %175, %182 : vector<96x256xf32>
    %184 = vector.extract_strided_slice %176 {offsets = [16, 0], sizes = [96, 256], strides = [1, 1]} : vector<124x256xf32> to vector<96x256xf32>
    %c12 = arith.constant 12 : index
    %c0_45 = arith.constant 0 : index
    %185 = vector.load %arg9[%c12, %c0_45] : memref<17x256xf32, #tpu.memory_space<vmem>>, vector<1x256xf32>
    %186 = vector.shape_cast %185 : vector<1x256xf32> to vector<256xf32>
    %187 = vector.shape_cast %186 : vector<256xf32> to vector<1x256xf32>
    %188 = vector.broadcast %187 : vector<1x256xf32> to vector<96x256xf32>
    %189 = arith.mulf %184, %188 : vector<96x256xf32>
    %190 = arith.addf %183, %189 : vector<96x256xf32>
    %191 = vector.extract_strided_slice %110 {offsets = [5, 0], sizes = [123, 256], strides = [1, 1]} : vector<128x256xf32> to vector<123x256xf32>
    %192 = vector.extract_strided_slice %191 {offsets = [8, 0], sizes = [96, 256], strides = [1, 1]} : vector<123x256xf32> to vector<96x256xf32>
    %c5 = arith.constant 5 : index
    %c0_46 = arith.constant 0 : index
    %193 = vector.load %arg9[%c5, %c0_46] : memref<17x256xf32, #tpu.memory_space<vmem>>, vector<1x256xf32>
    %194 = vector.shape_cast %193 : vector<1x256xf32> to vector<256xf32>
    %195 = vector.shape_cast %194 : vector<256xf32> to vector<1x256xf32>
    %196 = vector.broadcast %195 : vector<1x256xf32> to vector<96x256xf32>
    %197 = arith.mulf %192, %196 : vector<96x256xf32>
    %198 = arith.addf %190, %197 : vector<96x256xf32>
    %199 = vector.extract_strided_slice %191 {offsets = [16, 0], sizes = [96, 256], strides = [1, 1]} : vector<123x256xf32> to vector<96x256xf32>
    %c13 = arith.constant 13 : index
    %c0_47 = arith.constant 0 : index
    %200 = vector.load %arg9[%c13, %c0_47] : memref<17x256xf32, #tpu.memory_space<vmem>>, vector<1x256xf32>
    %201 = vector.shape_cast %200 : vector<1x256xf32> to vector<256xf32>
    %202 = vector.shape_cast %201 : vector<256xf32> to vector<1x256xf32>
    %203 = vector.broadcast %202 : vector<1x256xf32> to vector<96x256xf32>
    %204 = arith.mulf %199, %203 : vector<96x256xf32>
    %205 = arith.addf %198, %204 : vector<96x256xf32>
    %206 = vector.extract_strided_slice %110 {offsets = [6, 0], sizes = [122, 256], strides = [1, 1]} : vector<128x256xf32> to vector<122x256xf32>
    %207 = vector.extract_strided_slice %206 {offsets = [8, 0], sizes = [96, 256], strides = [1, 1]} : vector<122x256xf32> to vector<96x256xf32>
    %c6 = arith.constant 6 : index
    %c0_48 = arith.constant 0 : index
    %208 = vector.load %arg9[%c6, %c0_48] : memref<17x256xf32, #tpu.memory_space<vmem>>, vector<1x256xf32>
    %209 = vector.shape_cast %208 : vector<1x256xf32> to vector<256xf32>
    %210 = vector.shape_cast %209 : vector<256xf32> to vector<1x256xf32>
    %211 = vector.broadcast %210 : vector<1x256xf32> to vector<96x256xf32>
    %212 = arith.mulf %207, %211 : vector<96x256xf32>
    %213 = arith.addf %205, %212 : vector<96x256xf32>
    %214 = vector.extract_strided_slice %206 {offsets = [16, 0], sizes = [96, 256], strides = [1, 1]} : vector<122x256xf32> to vector<96x256xf32>
    %c14 = arith.constant 14 : index
    %c0_49 = arith.constant 0 : index
    %215 = vector.load %arg9[%c14, %c0_49] : memref<17x256xf32, #tpu.memory_space<vmem>>, vector<1x256xf32>
    %216 = vector.shape_cast %215 : vector<1x256xf32> to vector<256xf32>
    %217 = vector.shape_cast %216 : vector<256xf32> to vector<1x256xf32>
    %218 = vector.broadcast %217 : vector<1x256xf32> to vector<96x256xf32>
    %219 = arith.mulf %214, %218 : vector<96x256xf32>
    %220 = arith.addf %213, %219 : vector<96x256xf32>
    %221 = vector.extract_strided_slice %110 {offsets = [7, 0], sizes = [121, 256], strides = [1, 1]} : vector<128x256xf32> to vector<121x256xf32>
    %222 = vector.extract_strided_slice %221 {offsets = [8, 0], sizes = [96, 256], strides = [1, 1]} : vector<121x256xf32> to vector<96x256xf32>
    %c7 = arith.constant 7 : index
    %c0_50 = arith.constant 0 : index
    %223 = vector.load %arg9[%c7, %c0_50] : memref<17x256xf32, #tpu.memory_space<vmem>>, vector<1x256xf32>
    %224 = vector.shape_cast %223 : vector<1x256xf32> to vector<256xf32>
    %225 = vector.shape_cast %224 : vector<256xf32> to vector<1x256xf32>
    %226 = vector.broadcast %225 : vector<1x256xf32> to vector<96x256xf32>
    %227 = arith.mulf %222, %226 : vector<96x256xf32>
    %228 = arith.addf %220, %227 : vector<96x256xf32>
    %229 = vector.extract_strided_slice %221 {offsets = [16, 0], sizes = [96, 256], strides = [1, 1]} : vector<121x256xf32> to vector<96x256xf32>
    %c15 = arith.constant 15 : index
    %c0_51 = arith.constant 0 : index
    %230 = vector.load %arg9[%c15, %c0_51] : memref<17x256xf32, #tpu.memory_space<vmem>>, vector<1x256xf32>
    %231 = vector.shape_cast %230 : vector<1x256xf32> to vector<256xf32>
    %232 = vector.shape_cast %231 : vector<256xf32> to vector<1x256xf32>
    %233 = vector.broadcast %232 : vector<1x256xf32> to vector<96x256xf32>
    %234 = arith.mulf %229, %233 : vector<96x256xf32>
    %235 = arith.addf %228, %234 : vector<96x256xf32>
    %c0_52 = arith.constant 0 : index
    %c0_53 = arith.constant 0 : index
    %c0_54 = arith.constant 0 : index
    %236 = vector.load %arg10[%c0_52, %c0_53, %c0_54] : memref<1x96x256xf32, #tpu.memory_space<vmem>>, vector<1x96x256xf32>
    %237 = vector.shape_cast %236 : vector<1x96x256xf32> to vector<96x256xf32>
    %238 = vector.shape_cast %235 : vector<96x256xf32> to vector<1x96x256xf32>
    tpu.vector_store %arg10[%c0_52, %c0_53, %c0_54], %238 {strides = array<i32>} : memref<1x96x256xf32, #tpu.memory_space<vmem>>, vector<1x96x256xf32>,
    return
  }
  func.func @transform_0(%arg0: i32, %arg1: i32) -> (i32, i32, i32) {
    %c0_i32 = arith.constant 0 : i32
    %c0_i32_0 = arith.constant 0 : i32
    return %arg0, %arg1, %c0_i32 : i32, i32, i32
  }
  func.func @transform_1(%arg0: i32, %arg1: i32) -> (i32, i32, i32) {
    %c6_i32 = arith.constant 6 : i32
    %0 = arith.muli %arg1, %c6_i32 : i32
    %c1_i32 = arith.constant 1 : i32
    %1 = arith.subi %0, %c1_i32 : i32
    %c0_i32 = arith.constant 0 : i32
    %2 = arith.maxsi %1, %c0_i32 : i32
    %c0_i32_0 = arith.constant 0 : i32
    %c0_i32_1 = arith.constant 0 : i32
    return %arg0, %2, %c0_i32_0 : i32, i32, i32
  }
  func.func @transform_2(%arg0: i32, %arg1: i32) -> (i32, i32, i32) {
    %c1_i32 = arith.constant 1 : i32
    %0 = arith.addi %arg1, %c1_i32 : i32
    %c6_i32 = arith.constant 6 : i32
    %1 = arith.muli %0, %c6_i32 : i32
    %c11_i32 = arith.constant 11 : i32
    %2 = arith.minsi %1, %c11_i32 : i32
    %c0_i32 = arith.constant 0 : i32
    %c0_i32_0 = arith.constant 0 : i32
    return %arg0, %2, %c0_i32 : i32, i32, i32
  }
  func.func @transform_3(%arg0: i32, %arg1: i32) -> (i32, i32) {
    %c0_i32 = arith.constant 0 : i32
    %c0_i32_0 = arith.constant 0 : i32
    %c0_i32_1 = arith.constant 0 : i32
    return %c0_i32, %c0_i32_0 : i32, i32
  }
  func.func @transform_4(%arg0: i32, %arg1: i32) -> (i32, i32) {
    %c0_i32 = arith.constant 0 : i32
    %c0_i32_0 = arith.constant 0 : i32
    %c0_i32_1 = arith.constant 0 : i32
    return %c0_i32, %c0_i32_0 : i32, i32
  }
  func.func @transform_5(%arg0: i32, %arg1: i32) -> (i32, i32) {
    %c0_i32 = arith.constant 0 : i32
    %c0_i32_0 = arith.constant 0 : i32
    %c0_i32_1 = arith.constant 0 : i32
    return %c0_i32, %c0_i32_0 : i32, i32
  }
  func.func @transform_6(%arg0: i32, %arg1: i32) -> (i32, i32) {
    %c0_i32 = arith.constant 0 : i32
    %c0_i32_0 = arith.constant 0 : i32
    %c0_i32_1 = arith.constant 0 : i32
    return %c0_i32, %c0_i32_0 : i32, i32
  }
  func.func @transform_7(%arg0: i32, %arg1: i32) -> (i32, i32) {
    %c0_i32 = arith.constant 0 : i32
    %c0_i32_0 = arith.constant 0 : i32
    %c0_i32_1 = arith.constant 0 : i32
    return %c0_i32, %c0_i32_0 : i32, i32
  }
  func.func @transform_8(%arg0: i32, %arg1: i32) -> (i32, i32, i32) {
    %c0_i32 = arith.constant 0 : i32
    %c0_i32_0 = arith.constant 0 : i32
    return %arg0, %arg1, %c0_i32 : i32, i32, i32
  }
}

</mosaic_0001>

<llo_original>
// kernel: tpu_custom_call.1
$region0: #{tpu_custom_call.1}
  #allocation0 [shape = 'u32[]', space=smem, size = 0x4, offset = 0x4, fixed_abs, tag = 'smem constant byte address 0x4 - core index']
  #allocation1 [shape = 'u32[144,128]{1,0:T(1,128)}', space=vmem, size = 0x12000, scoped, tag = 'internal scratch']
  %s0 = inlined_call_operand.hbm [shape: f32[2,192,128], index: 0, kind: input, shape index: {}]
  %s1 = inlined_call_operand.hbm [shape: f32[2,192,128], index: 1, kind: input, shape index: {}]
  %s2 = inlined_call_operand.hbm [shape: f32[2,192,128], index: 2, kind: input, shape index: {}]
  %s3 = inlined_call_operand.vmem [shape: f32[1,128], index: 3, kind: input, shape index: {}]
  %s4 = inlined_call_operand.vmem [shape: f32[1,128], index: 4, kind: input, shape index: {}]
  %s5 = inlined_call_operand.hbm [shape: bf16[128,256], index: 5, kind: input, shape index: {}]
  %s6 = inlined_call_operand.vmem [shape: f32[1,256], index: 6, kind: input, shape index: {}]
  %s7 = inlined_call_operand.hbm [shape: f32[17,256], index: 7, kind: input, shape index: {}]
  %s8 = inlined_call_operand.hbm [shape: f32[2,192,256], index: 8, kind: output, shape index: {}]
  %s9 = sld [smem:[#allocation0]]
  $region85: #{tpu_custom_call.1} parent=0
    _
  %s11 = ssub.s32 1, %s9
  %s12 = scalar_select 0, %s11, %s9
  $region1: #{tpu_custom_call.1} parent=0
    #allocation2 [shape = 'u8[98304]{0}', space=vmem, size = 0x18000, scoped, tag = 'input window, operand 0']
    #allocation3 [shape = 's32[2]{0}', space=sflag, size = 0x8, scoped, tag = 'scoped memory for tpu_custom_call.1']
    #allocation4 [shape = 's32[2]{0}', space=sflag, size = 0x8, scoped, tag = 'scoped memory for tpu_custom_call.1']
    #allocation5 [shape = 'u8[16384]{0}', space=vmem, size = 0x4000, scoped, tag = 'input window, operand 1']
    #allocation6 [shape = 's32[2]{0}', space=sflag, size = 0x8, scoped, tag = 'scoped memory for tpu_custom_call.1']
    #allocation7 [shape = 'u8[16384]{0}', space=vmem, size = 0x4000, scoped, tag = 'input window, operand 2']
    #allocation8 [shape = 'u8[65536]{0}', space=vmem, size = 0x10000, scoped, tag = 'input window, operand 5, single buffered']
    #allocation9 [shape = 's32[1]{0}', space=sflag, size = 0x4, scoped, tag = 'scoped memory for tpu_custom_call.1']
    #allocation10 [shape = 'u8[24576]{0}', space=vmem, size = 0x6000, scoped, tag = 'input window, operand 7, single buffered']
    #allocation11 [shape = 'u8[196608]{0}', space=vmem, size = 0x30000, scoped, tag = 'output window, operand 0']
    %13 = vsyncpa [#allocation3], 0
    %s14 = scalar_lea.sflag [#allocation3], 1
    %15 = vsyncpa %s14, 0
    %16 = vsyncpa [#allocation6], 0
    %s17 = scalar_lea.sflag [#allocation6], 1
    %18 = vsyncpa %s17, 0
    %19 = vsyncpa [#allocation9], 0
    %20 = vsyncpa [#allocation4], 0
    %s21 = scalar_lea.sflag [#allocation4], 1
    %22 = vsyncpa %s21, 0
    loop: start=0, step=1, limit=6
    $region2: #{tpu_custom_call.1} parent=1 // loop_pre_header
      _
    $region3: #{tpu_custom_call.1} parent=1 // loop_header
      %s24 = sphi 0, %s28
      %p25 = scmp.ge.s32.totalorder %s24, 6
      %s31 = sphi 0, %s43
      %s32 = sphi 0, %s39
      %s33 = sphi 0, %s31
      %s34 = sphi 0, %s32
      %s35 = sphi 0, %s33
      %s36 = sphi 0, %s34
      %s48 = sphi 0, %s50
      %s51 = sphi 0, %s48
      %s52 = sphi 0, %s51
      %s68 = sphi 0, %s52
      %s84 = sphi 0, %s86
      %s87 = sphi 0, %s84
      %s88 = sphi 0, %s87
      %s104 = sphi 0, %s88
      %s120 = sphi 0, %s122
      %s123 = sphi 0, %s120
      %s124 = sphi 0, %s123
      %s140 = sphi 0, %s124
      %s144 = sphi 0, %s144
      %s146 = sphi 0, %s144
      %s147 = sphi 0, %s146
      %s161 = sphi 0, %s147
      %s165 = sphi 0, %s165
      %s167 = sphi 0, %s165
      %s168 = sphi 0, %s167
      %s182 = sphi 0, %s168
      %s186 = sphi 0, %s186
      %s188 = sphi 0, %s186
      %s189 = sphi 0, %s188
      %s203 = sphi 0, %s189
      %s207 = sphi 0, %s207
      %s209 = sphi 0, %s207
      %s210 = sphi 0, %s209
      %s224 = sphi 0, %s210
      %s228 = sphi 0, %s228
      %s230 = sphi 0, %s228
      %s231 = sphi 0, %s230
      %s245 = sphi 0, %s231
      %s253 = sphi 0, %s255
      %s256 = sphi 0, %s253
      %s257 = sphi 0, %s256
      %s273 = sphi 0, %s257
    $region4: #{tpu_custom_call.1} parent=1 // loop_header_branch
      %27 = sbr.rel (%p25) target = $region8
    $region5: #{tpu_custom_call.1} parent=1 // loop_body
      %s29 = ssub.s32 %s24, 1
      %s30 = ssub.s32 %s24, 2
      %s37 = sadd.s32 1, %s32
      %p38 = scmp.ge.s32.totalorder %s37, 2
      %s39 = scalar_select %p38, 0, %s37
      %s40 = sadd.s32 1, %s31
      %s41 = scalar_select %p38, %s40, %s31
      %p42 = scmp.ge.s32.totalorder %s41, 2
      %s43 = scalar_select %p42, 0, %s41
      %s44 = ssub.s32 %s31, %s43
      %s45 = ssub.s32 %s32, %s39
      %s46 = sor.u32 %s44, %s45
      %p47 = scmp.eq.s32.totalorder %s46, 0
      %s49 = sadd.s32 %s48, 1
      %s50 = scalar_select %p47, %s48, %s49
      %p53 = pneg %p47
      %p54 = scmp.eq.s32.totalorder %s24, 3
      %p55 = por %p53, %p54
      %p56 = scmp.ne.s32.totalorder %s48, %s51
      %p57 = scmp.eq.s32.totalorder %s24, 0
      %p58 = por %p56, %p57
      %p59 = scmp.ne.s32.totalorder %s48, %s51
      %p60 = scmp.eq.s32.totalorder %s29, 3
      %p61 = por %p59, %p60
      %p62 = scmp.ne.s32.totalorder %s51, %s52
      %p63 = scmp.eq.s32.totalorder %s29, 0
      %p64 = por %p62, %p63
      %p65 = scmp.ne.s32.totalorder %s51, %s52
      %p66 = scmp.eq.s32.totalorder %s30, 3
      %p67 = por %p65, %p66
      %p69 = scmp.ne.s32.totalorder %s52, %s68
      %p70 = scmp.eq.s32.totalorder %s30, 0
      %p71 = por %p69, %p70
      %s72 = smul.u32 %s32, 6
      %s73 = ssub.s32 %s72, 1
      %p74 = scmp.gt.s32.totalorder %s73, 0
      %s75 = scalar_select %p74, %s73, 0
      %s76 = smul.u32 %s39, 6
      %s77 = ssub.s32 %s76, 1
      %p78 = scmp.gt.s32.totalorder %s77, 0
      %s79 = scalar_select %p78, %s77, 0
      %s80 = ssub.s32 %s31, %s43
      %s81 = ssub.s32 %s75, %s79
      %s82 = sor.u32 %s80, %s81
      %p83 = scmp.eq.s32.totalorder %s82, 0
      %s85 = sadd.s32 %s84, 1
      %s86 = scalar_select %p83, %s84, %s85
      %p89 = pneg %p83
      %p90 = scmp.eq.s32.totalorder %s24, 3
      %p91 = por %p89, %p90
      %p92 = scmp.ne.s32.totalorder %s84, %s87
      %p93 = scmp.eq.s32.totalorder %s24, 0
      %p94 = por %p92, %p93
      %p95 = scmp.ne.s32.totalorder %s84, %s87
      %p96 = scmp.eq.s32.totalorder %s29, 3
      %p97 = por %p95, %p96
      %p98 = scmp.ne.s32.totalorder %s87, %s88
      %p99 = scmp.eq.s32.totalorder %s29, 0
      %p100 = por %p98, %p99
      %p101 = scmp.ne.s32.totalorder %s87, %s88
      %p102 = scmp.eq.s32.totalorder %s30, 3
      %p103 = por %p101, %p102
      %p105 = scmp.ne.s32.totalorder %s88, %s104
      %p106 = scmp.eq.s32.totalorder %s30, 0
      %p107 = por %p105, %p106
      %s108 = sadd.s32 %s32, 1
      %s109 = smul.u32 %s108, 6
      %p110 = scmp.lt.s32.totalorder %s109, 11
      %s111 = scalar_select %p110, %s109, 11
      %s112 = sadd.s32 %s39, 1
      %s113 = smul.u32 %s112, 6
      %p114 = scmp.lt.s32.totalorder %s113, 11
      %s115 = scalar_select %p114, %s113, 11
      %s116 = ssub.s32 %s31, %s43
      %s117 = ssub.s32 %s111, %s115
      %s118 = sor.u32 %s116, %s117
      %p119 = scmp.eq.s32.totalorder %s118, 0
      %s121 = sadd.s32 %s120, 1
      %s122 = scalar_select %p119, %s120, %s121
      %p125 = pneg %p119
      %p126 = scmp.eq.s32.totalorder %s24, 3
      %p127 = por %p125, %p126
      %p128 = scmp.ne.s32.totalorder %s120, %s123
      %p129 = scmp.eq.s32.totalorder %s24, 0
      %p130 = por %p128, %p129
      %p131 = scmp.ne.s32.totalorder %s120, %s123
      %p132 = scmp.eq.s32.totalorder %s29, 3
      %p133 = por %p131, %p132
      %p134 = scmp.ne.s32.totalorder %s123, %s124
      %p135 = scmp.eq.s32.totalorder %s29, 0
      %p136 = por %p134, %p135
      %p137 = scmp.ne.s32.totalorder %s123, %s124
      %p138 = scmp.eq.s32.totalorder %s30, 3
      %p139 = por %p137, %p138
      %p141 = scmp.ne.s32.totalorder %s124, %s140
      %p142 = scmp.eq.s32.totalorder %s30, 0
      %p143 = por %p141, %p142
      %s145 = sadd.s32 %s144, 1
      %p148 = scmp.eq.s32.totalorder %s24, 3
      %p149 = scmp.ne.s32.totalorder %s144, %s146
      %p150 = scmp.eq.s32.totalorder %s24, 0
      %p151 = por %p149, %p150
      %p152 = scmp.ne.s32.totalorder %s144, %s146
      %p153 = scmp.eq.s32.totalorder %s29, 3
      %p154 = por %p152, %p153
      %p155 = scmp.ne.s32.totalorder %s146, %s147
      %p156 = scmp.eq.s32.totalorder %s29, 0
      %p157 = por %p155, %p156
      %p158 = scmp.ne.s32.totalorder %s146, %s147
      %p159 = scmp.eq.s32.totalorder %s30, 3
      %p160 = por %p158, %p159
      %p162 = scmp.ne.s32.totalorder %s147, %s161
      %p163 = scmp.eq.s32.totalorder %s30, 0
      %p164 = por %p162, %p163
      %s166 = sadd.s32 %s165, 1
      %p169 = scmp.eq.s32.totalorder %s24, 3
      %p170 = scmp.ne.s32.totalorder %s165, %s167
      %p171 = scmp.eq.s32.totalorder %s24, 0
      %p172 = por %p170, %p171
      %p173 = scmp.ne.s32.totalorder %s165, %s167
      %p174 = scmp.eq.s32.totalorder %s29, 3
      %p175 = por %p173, %p174
      %p176 = scmp.ne.s32.totalorder %s167, %s168
      %p177 = scmp.eq.s32.totalorder %s29, 0
      %p178 = por %p176, %p177
      %p179 = scmp.ne.s32.totalorder %s167, %s168
      %p180 = scmp.eq.s32.totalorder %s30, 3
      %p181 = por %p179, %p180
      %p183 = scmp.ne.s32.totalorder %s168, %s182
      %p184 = scmp.eq.s32.totalorder %s30, 0
      %p185 = por %p183, %p184
      %s187 = sadd.s32 %s186, 1
      %p190 = scmp.eq.s32.totalorder %s24, 3
      %p191 = scmp.ne.s32.totalorder %s186, %s188
      %p192 = scmp.eq.s32.totalorder %s24, 0
      %p193 = por %p191, %p192
      %p194 = scmp.ne.s32.totalorder %s186, %s188
      %p195 = scmp.eq.s32.totalorder %s29, 3
      %p196 = por %p194, %p195
      %p197 = scmp.ne.s32.totalorder %s188, %s189
      %p198 = scmp.eq.s32.totalorder %s29, 0
      %p199 = por %p197, %p198
      %p200 = scmp.ne.s32.totalorder %s188, %s189
      %p201 = scmp.eq.s32.totalorder %s30, 3
      %p202 = por %p200, %p201
      %p204 = scmp.ne.s32.totalorder %s189, %s203
      %p205 = scmp.eq.s32.totalorder %s30, 0
      %p206 = por %p204, %p205
      %s208 = sadd.s32 %s207, 1
      %p211 = scmp.eq.s32.totalorder %s24, 3
      %p212 = scmp.ne.s32.totalorder %s207, %s209
      %p213 = scmp.eq.s32.totalorder %s24, 0
      %p214 = por %p212, %p213
      %p215 = scmp.ne.s32.totalorder %s207, %s209
      %p216 = scmp.eq.s32.totalorder %s29, 3
      %p217 = por %p215, %p216
      %p218 = scmp.ne.s32.totalorder %s209, %s210
      %p219 = scmp.eq.s32.totalorder %s29, 0
      %p220 = por %p218, %p219
      %p221 = scmp.ne.s32.totalorder %s209, %s210
      %p222 = scmp.eq.s32.totalorder %s30, 3
      %p223 = por %p221, %p222
      %p225 = scmp.ne.s32.totalorder %s210, %s224
      %p226 = scmp.eq.s32.totalorder %s30, 0
      %p227 = por %p225, %p226
      %s229 = sadd.s32 %s228, 1
      %p232 = scmp.eq.s32.totalorder %s24, 3
      %p233 = scmp.ne.s32.totalorder %s228, %s230
      %p234 = scmp.eq.s32.totalorder %s24, 0
      %p235 = por %p233, %p234
      %p236 = scmp.ne.s32.totalorder %s228, %s230
      %p237 = scmp.eq.s32.totalorder %s29, 3
      %p238 = por %p236, %p237
      %p239 = scmp.ne.s32.totalorder %s230, %s231
      %p240 = scmp.eq.s32.totalorder %s29, 0
      %p241 = por %p239, %p240
      %p242 = scmp.ne.s32.totalorder %s230, %s231
      %p243 = scmp.eq.s32.totalorder %s30, 3
      %p244 = por %p242, %p243
      %p246 = scmp.ne.s32.totalorder %s231, %s245
      %p247 = scmp.eq.s32.totalorder %s30, 0
      %p248 = por %p246, %p247
      %s249 = ssub.s32 %s31, %s43
      %s250 = ssub.s32 %s32, %s39
      %s251 = sor.u32 %s249, %s250
      %p252 = scmp.eq.s32.totalorder %s251, 0
      %s254 = sadd.s32 %s253, 1
      %s255 = scalar_select %p252, %s253, %s254
      %p258 = pneg %p252
      %p259 = scmp.eq.s32.totalorder %s24, 3
      %p260 = por %p258, %p259
      %p261 = scmp.ne.s32.totalorder %s253, %s256
      %p262 = scmp.eq.s32.totalorder %s24, 0
      %p263 = por %p261, %p262
      %p264 = scmp.ne.s32.totalorder %s253, %s256
      %p265 = scmp.eq.s32.totalorder %s29, 3
      %p266 = por %p264, %p265
      %p267 = scmp.ne.s32.totalorder %s256, %s257
      %p268 = scmp.eq.s32.totalorder %s29, 0
      %p269 = por %p267, %p268
      %p270 = scmp.ne.s32.totalorder %s256, %s257
      %p271 = scmp.eq.s32.totalorder %s30, 3
      %p272 = por %p270, %p271
      %p274 = scmp.ne.s32.totalorder %s257, %s273
      %p275 = scmp.eq.s32.totalorder %s30, 0
      %p276 = por %p274, %p275
      %p277 = scmp.le.s32.totalorder 1, %s24
      %p278 = scmp.lt.s32.totalorder %s24, 5
      %p279 = pnand %p277, %p278
      %p280 = pneg %p279
      // Predicated region
      $region9: #{tpu_custom_call.1} parent=5 // pred_check
        _
      $region10: #{tpu_custom_call.1} parent=5 // pred_check_branch
        %282 = sbr.rel (%p279) target = $region12
      $region11: #{tpu_custom_call.1} parent=5 // pred_region
        %s283 = ssub.s32 %s24, 1
        // Predicated region
        $region13: #{tpu_custom_call.1} parent=11 // pred_check
          %p284 = pneg %p157
        $region14: #{tpu_custom_call.1} parent=11 // pred_check_branch
          %286 = sbr.rel (%p284) target = $region16
        $region15: #{tpu_custom_call.1} parent=11 // pred_region
          _
        $region16: #{tpu_custom_call.1} parent=11 // pred_fallthru
          _
        // Predicated region
        $region17: #{tpu_custom_call.1} parent=11 // pred_check
          %p287 = pneg %p178
        $region18: #{tpu_custom_call.1} parent=11 // pred_check_branch
          %289 = sbr.rel (%p287) target = $region20
        $region19: #{tpu_custom_call.1} parent=11 // pred_region
          _
        $region20: #{tpu_custom_call.1} parent=11 // pred_fallthru
          _
        // Predicated region
        $region21: #{tpu_custom_call.1} parent=11 // pred_check
          %p290 = pneg %p199
        $region22: #{tpu_custom_call.1} parent=11 // pred_check_branch
          %292 = sbr.rel (%p290) target = $region24
        $region23: #{tpu_custom_call.1} parent=11 // pred_region
          %s294 = ssub.s32 2048, 2048
          %295 = vsyncadd [#allocation9], %s294
          %s296 = sshll.u32 [#allocation8], 4
          %s297 = int_to_ptr.vmem [resolvable:$true] %s296
          %302 = dma.hbm_to_vmem [thread:$0]  %s5, 2048, %s297, [#allocation9], 128, 128, 8
        $region24: #{tpu_custom_call.1} parent=11 // pred_fallthru
          _
        // Predicated region
        $region25: #{tpu_custom_call.1} parent=11 // pred_check
          %p303 = pneg %p220
        $region26: #{tpu_custom_call.1} parent=11 // pred_check_branch
          %305 = sbr.rel (%p303) target = $region28
        $region27: #{tpu_custom_call.1} parent=11 // pred_region
          _
        $region28: #{tpu_custom_call.1} parent=11 // pred_fallthru
          _
        // Predicated region
        $region29: #{tpu_custom_call.1} parent=11 // pred_check
          %p306 = pneg %p241
        $region30: #{tpu_custom_call.1} parent=11 // pred_check_branch
          %308 = sbr.rel (%p306) target = $region32
        $region31: #{tpu_custom_call.1} parent=11 // pred_region
          %s310 = ssub.s32 768, 768
          %311 = vsyncadd [#allocation9], %s310
          %s312 = sshll.u32 [#allocation10], 4
          %s313 = int_to_ptr.vmem [resolvable:$true] %s312
          %318 = dma.hbm_to_vmem [thread:$0]  %s7, 768, %s313, [#allocation9], 256, 256, 16
        $region32: #{tpu_custom_call.1} parent=11 // pred_fallthru
          _
      $region12: #{tpu_custom_call.1} parent=5 // pred_fallthru
        _
      %p319 = scmp.lt.s32.totalorder %s24, 4
      // Predicated region
      $region33: #{tpu_custom_call.1} parent=5 // pred_check
        %p320 = pneg %p319
      $region34: #{tpu_custom_call.1} parent=5 // pred_check_branch
        %322 = sbr.rel (%p320) target = $region36
      $region35: #{tpu_custom_call.1} parent=5 // pred_region
        // Predicated region
        $region37: #{tpu_custom_call.1} parent=35 // pred_check
          %p323 = pneg %p58
        $region38: #{tpu_custom_call.1} parent=35 // pred_check_branch
          %325 = sbr.rel (%p323) target = $region40
        $region39: #{tpu_custom_call.1} parent=35 // pred_region
          %s326 = sand.u32 %s48, 1
          %s327 = scalar_lea.sflag [#allocation3], %s326
          %s328 = sand.u32 %s48, 1
          %s329 = smul.addr %s328, 96
          %s330 = scalar_lea.vmem [#allocation2], %s329
          %s331 = smul.u32 12, %s32
          %s333 = ssub.s32 1536, 1536
          %334 = vsyncadd %s327, %s333
          %s335 = smul.addr %s31, 24
          %s336 = sadd.s32 %s331, %s335
          %s337 = smul.addr %s336, 128
          %s338 = scalar_lea.hbm %s0, %s337
          %s339 = sshll.u32 %s330, 4
          %s340 = int_to_ptr.vmem [resolvable:$true] %s339
          %345 = dma.hbm_to_vmem [thread:$0]  %s338, 1536, %s340, %s327, 128, 128, 8
        $region40: #{tpu_custom_call.1} parent=35 // pred_fallthru
          _
        // Predicated region
        $region41: #{tpu_custom_call.1} parent=35 // pred_check
          %p346 = pneg %p94
        $region42: #{tpu_custom_call.1} parent=35 // pred_check_branch
          %348 = sbr.rel (%p346) target = $region44
        $region43: #{tpu_custom_call.1} parent=35 // pred_region
          %s349 = sand.u32 %s24, 1
          %s350 = scalar_lea.sflag [#allocation6], %s349
          %s351 = sand.u32 %s84, 1
          %s352 = smul.addr %s351, 16
          %s353 = scalar_lea.vmem [#allocation5], %s352
          %s354 = smul.u32 %s32, 6
          %s355 = ssub.s32 %s354, 1
          %p356 = scmp.gt.s32.totalorder %s355, 0
          %s357 = scalar_select %p356, %s355, 0
          %s358 = smul.u32 2, %s357
          %s360 = ssub.s32 256, 256
          %361 = vsyncadd %s350, %s360
          %s362 = smul.addr %s31, 24
          %s363 = sadd.s32 %s358, %s362
          %s364 = smul.addr %s363, 128
          %s365 = scalar_lea.hbm %s1, %s364
          %s366 = sshll.u32 %s353, 4
          %s367 = int_to_ptr.vmem [resolvable:$true] %s366
          %372 = dma.hbm_to_vmem [thread:$0]  %s365, 256, %s367, %s350, 128, 128, 8
        $region44: #{tpu_custom_call.1} parent=35 // pred_fallthru
          _
        // Predicated region
        $region45: #{tpu_custom_call.1} parent=35 // pred_check
          %p373 = pneg %p130
        $region46: #{tpu_custom_call.1} parent=35 // pred_check_branch
          %375 = sbr.rel (%p373) target = $region48
        $region47: #{tpu_custom_call.1} parent=35 // pred_region
          %s376 = sand.u32 %s24, 1
          %s377 = scalar_lea.sflag [#allocation6], %s376
          %s378 = sand.u32 %s120, 1
          %s379 = smul.addr %s378, 16
          %s380 = scalar_lea.vmem [#allocation7], %s379
          %s381 = sadd.s32 %s32, 1
          %s382 = smul.u32 %s381, 6
          %p383 = scmp.lt.s32.totalorder %s382, 11
          %s384 = scalar_select %p383, %s382, 11
          %s385 = smul.u32 2, %s384
          %s387 = ssub.s32 256, 256
          %388 = vsyncadd %s377, %s387
          %s389 = smul.addr %s31, 24
          %s390 = sadd.s32 %s385, %s389
          %s391 = smul.addr %s390, 128
          %s392 = scalar_lea.hbm %s2, %s391
          %s393 = sshll.u32 %s380, 4
          %s394 = int_to_ptr.vmem [resolvable:$true] %s393
          %399 = dma.hbm_to_vmem [thread:$0]  %s392, 256, %s394, %s377, 128, 128, 8
        $region48: #{tpu_custom_call.1} parent=35 // pred_fallthru
          _
      $region36: #{tpu_custom_call.1} parent=5 // pred_fallthru
        _
      %p400 = scmp.le.s32.totalorder 1, %s24
      %p401 = scmp.lt.s32.totalorder %s24, 5
      %p402 = pnand %p400, %p401
      %p403 = pneg %p402
      // Predicated region
      $region49: #{tpu_custom_call.1} parent=5 // pred_check
        _
      $region50: #{tpu_custom_call.1} parent=5 // pred_check_branch
        %405 = sbr.rel (%p402) target = $region52
      $region51: #{tpu_custom_call.1} parent=5 // pred_region
        %s406 = ssub.s32 %s24, 1
        %s407 = sand.u32 %s51, 1
        %s408 = scalar_lea.sflag [#allocation3], %s407
        %s409 = sand.u32 %s51, 1
        %s410 = smul.addr %s409, 96
        %s411 = scalar_lea.vmem [#allocation2], %s410
        // Predicated region
        $region53: #{tpu_custom_call.1} parent=51 // pred_check
          %p412 = pneg %p64
        $region54: #{tpu_custom_call.1} parent=51 // pred_check_branch
          %414 = sbr.rel (%p412) target = $region56
        $region55: #{tpu_custom_call.1} parent=51 // pred_region
          %415 = dma.done %s408, 1536
        $region56: #{tpu_custom_call.1} parent=51 // pred_fallthru
          _
        %s416 = sand.u32 %s29, 1
        %s417 = scalar_lea.sflag [#allocation6], %s416
        %s418 = sand.u32 %s87, 1
        %s419 = smul.addr %s418, 16
        %s420 = scalar_lea.vmem [#allocation5], %s419
        // Predicated region
        $region57: #{tpu_custom_call.1} parent=51 // pred_check
          %p421 = pneg %p100
        $region58: #{tpu_custom_call.1} parent=51 // pred_check_branch
          %423 = sbr.rel (%p421) target = $region60
        $region59: #{tpu_custom_call.1} parent=51 // pred_region
          %424 = dma.done %s417, 256
        $region60: #{tpu_custom_call.1} parent=51 // pred_fallthru
          _
        %s425 = sand.u32 %s29, 1
        %s426 = scalar_lea.sflag [#allocation6], %s425
        %s427 = sand.u32 %s123, 1
        %s428 = smul.addr %s427, 16
        %s429 = scalar_lea.vmem [#allocation7], %s428
        // Predicated region
        $region61: #{tpu_custom_call.1} parent=51 // pred_check
          %p430 = pneg %p136
        $region62: #{tpu_custom_call.1} parent=51 // pred_check_branch
          %432 = sbr.rel (%p430) target = $region64
        $region63: #{tpu_custom_call.1} parent=51 // pred_region
          %433 = dma.done %s426, 256
        $region64: #{tpu_custom_call.1} parent=51 // pred_fallthru
          _
        // Predicated region
        $region65: #{tpu_custom_call.1} parent=51 // pred_check
          %p434 = pneg %p199
        $region66: #{tpu_custom_call.1} parent=51 // pred_check_branch
          %436 = sbr.rel (%p434) target = $region68
        $region67: #{tpu_custom_call.1} parent=51 // pred_region
          %437 = dma.done [#allocation9], 2048
        $region68: #{tpu_custom_call.1} parent=51 // pred_fallthru
          _
        // Predicated region
        $region69: #{tpu_custom_call.1} parent=51 // pred_check
          %p438 = pneg %p241
        $region70: #{tpu_custom_call.1} parent=51 // pred_check_branch
          %440 = sbr.rel (%p438) target = $region72
        $region71: #{tpu_custom_call.1} parent=51 // pred_region
          %441 = dma.done [#allocation9], 768
        $region72: #{tpu_custom_call.1} parent=51 // pred_fallthru
          _
        %s442 = sand.u32 %s51, 1
        %s443 = scalar_lea.sflag [#allocation3], %s442
        %s444 = sand.u32 %s51, 1
        %s445 = smul.addr %s444, 96
        %s446 = scalar_lea.vmem [#allocation2], %s445
        %p447 = pneg %p64
        %p448 = pneg %p61
        %s449 = sand.u32 %s29, 1
        %s450 = scalar_lea.sflag [#allocation6], %s449
        %s451 = sand.u32 %s87, 1
        %s452 = smul.addr %s451, 16
        %s453 = scalar_lea.vmem [#allocation5], %s452
        %p454 = pneg %p100
        %p455 = pneg %p97
        %s456 = sand.u32 %s29, 1
        %s457 = scalar_lea.sflag [#allocation6], %s456
        %s458 = sand.u32 %s123, 1
        %s459 = smul.addr %s458, 16
        %s460 = scalar_lea.vmem [#allocation7], %s459
        %p461 = pneg %p136
        %p462 = pneg %p133
        %p463 = pneg %p157
        %p464 = pneg %p154
        %p465 = pneg %p178
        %p466 = pneg %p175
        %p467 = pneg %p199
        %p468 = pneg %p196
        %p469 = pneg %p220
        %p470 = pneg %p217
        %p471 = pneg %p241
        %p472 = pneg %p238
        %p473 = pneg %p269
        %p474 = pneg %p266
        %s475 = sand.u32 %s256, 1
        %s476 = scalar_lea.sflag [#allocation4], %s475
        %s477 = sand.u32 %s256, 1
        %s478 = smul.addr %s477, 192
        %s479 = scalar_lea.vmem [#allocation11], %s478
        %s480 = smul.u32 12, %s34
        %s481 = smul.u32 %s34, 6
        %s482 = ssub.s32 %s481, 1
        %p483 = scmp.gt.s32.totalorder %s482, 0
        %s484 = scalar_select %p483, %s482, 0
        %s485 = smul.u32 2, %s484
        %s486 = sadd.s32 %s34, 1
        %s487 = smul.u32 %s486, 6
        %p488 = scmp.lt.s32.totalorder %s487, 11
        %s489 = scalar_select %p488, %s487, 11
        %s490 = smul.u32 2, %s489
        %s491 = smul.u32 12, %s34
        %v493 = vld [vmem:[%s3] sm:$0x1]
        %v494 = vld [vmem:[%s4] sm:$0x1]
        %v495 = vld [vmem:[%s420] sm:$0xff]
        %v496 = vld [vmem:[%s420 + $0x8] sm:$0xff]
        %497 = vadd.xlane.f32.xlu0 %v495
        %v498 = vpop.xlane.xlu0 %497
        %499 = vadd.xlane.f32.xlu0 %v496
        %v500 = vpop.xlane.xlu0 %499
        %v501 = vrcp.pop 128.0
        %v502 = vmul.f32 %v498, %v501
        %v503 = vmul.f32 %v500, %v501
        %v504 = vsub.f32 %v495, %v502
        %v505 = vsub.f32 %v496, %v503
        %v506 = vmul.f32 %v504, %v504
        %v507 = vmul.f32 %v505, %v505
        %508 = vadd.xlane.f32.xlu0 %v506
        %v509 = vpop.xlane.xlu0 %508
        %510 = vadd.xlane.f32.xlu0 %v507
        %v511 = vpop.xlane.xlu0 %510
        %v512 = vmul.f32 %v509, %v501
        %v513 = vmul.f32 %v511, %v501
        %v514 = vadd.f32 %v512, 1e-05
        %v515 = vadd.f32 %v513, 1e-05
        %v516 = vrsqrt.pop %v514
        %v517 = vrsqrt.pop %v515
        %v518 = vmul.f32 %v504, %v516
        %v519 = vmul.f32 %v505, %v517
        %v521 = vlaneseq
        %v522 = vshrl.u32 %v521, 7
        %v523 = vsub.s32 0, %v522
        %v524 = vrot.slane %v493, %v523
        %v526 = vmul.f32 %v518, %v524
        %v527 = vmul.f32 %v519, %v524
        %v529 = vlaneseq
        %v530 = vshrl.u32 %v529, 7
        %v531 = vsub.s32 0, %v530
        %v532 = vrot.slane %v494, %v531
        %v534 = vadd.f32 %v526, %v532
        %v535 = vadd.f32 %v527, %v532
        %v536 = vpack.c.bf16 %v535, %v534
        %v537 = vld [vmem:[%s411] sm:$0xff]
        %v538 = vld [vmem:[%s411 + $0x8] sm:$0xff]
        %v539 = vld [vmem:[%s411 + $0x10] sm:$0xff]
        %v540 = vld [vmem:[%s411 + $0x18] sm:$0xff]
        %v541 = vld [vmem:[%s411 + $0x20] sm:$0xff]
        %v542 = vld [vmem:[%s411 + $0x28] sm:$0xff]
        %v543 = vld [vmem:[%s411 + $0x30] sm:$0xff]
        %v544 = vld [vmem:[%s411 + $0x38] sm:$0xff]
        %v545 = vld [vmem:[%s411 + $0x40] sm:$0xff]
        %v546 = vld [vmem:[%s411 + $0x48] sm:$0xff]
        %v547 = vld [vmem:[%s411 + $0x50] sm:$0xff]
        %v548 = vld [vmem:[%s411 + $0x58] sm:$0xff]
        %549 = vadd.xlane.f32.xlu0 %v537
        %v550 = vpop.xlane.xlu0 %549
        %551 = vadd.xlane.f32.xlu0 %v538
        %v552 = vpop.xlane.xlu0 %551
        %553 = vadd.xlane.f32.xlu0 %v539
        %v554 = vpop.xlane.xlu0 %553
        %555 = vadd.xlane.f32.xlu0 %v540
        %v556 = vpop.xlane.xlu0 %555
        %557 = vadd.xlane.f32.xlu0 %v541
        %v558 = vpop.xlane.xlu0 %557
        %559 = vadd.xlane.f32.xlu0 %v542
        %v560 = vpop.xlane.xlu0 %559
        %561 = vadd.xlane.f32.xlu0 %v543
        %v562 = vpop.xlane.xlu0 %561
        %563 = vadd.xlane.f32.xlu0 %v544
        %v564 = vpop.xlane.xlu0 %563
        %565 = vadd.xlane.f32.xlu0 %v545
        %v566 = vpop.xlane.xlu0 %565
        %567 = vadd.xlane.f32.xlu0 %v546
        %v568 = vpop.xlane.xlu0 %567
        %569 = vadd.xlane.f32.xlu0 %v547
        %v570 = vpop.xlane.xlu0 %569
        %571 = vadd.xlane.f32.xlu0 %v548
        %v572 = vpop.xlane.xlu0 %571
        %v573 = vmul.f32 %v550, %v501
        %v574 = vmul.f32 %v552, %v501
        %v575 = vmul.f32 %v554, %v501
        %v576 = vmul.f32 %v556, %v501
        %v577 = vmul.f32 %v558, %v501
        %v578 = vmul.f32 %v560, %v501
        %v579 = vmul.f32 %v562, %v501
        %v580 = vmul.f32 %v564, %v501
        %v581 = vmul.f32 %v566, %v501
        %v582 = vmul.f32 %v568, %v501
        %v583 = vmul.f32 %v570, %v501
        %v584 = vmul.f32 %v572, %v501
        %v585 = vsub.f32 %v537, %v573
        %v586 = vsub.f32 %v538, %v574
        %v587 = vsub.f32 %v539, %v575
        %v588 = vsub.f32 %v540, %v576
        %v589 = vsub.f32 %v541, %v577
        %v590 = vsub.f32 %v542, %v578
        %v591 = vsub.f32 %v543, %v579
        %v592 = vsub.f32 %v544, %v580
        %v593 = vsub.f32 %v545, %v581
        %v594 = vsub.f32 %v546, %v582
        %v595 = vsub.f32 %v547, %v583
        %v596 = vsub.f32 %v548, %v584
        %v597 = vmul.f32 %v585, %v585
        %v598 = vmul.f32 %v586, %v586
        %v599 = vmul.f32 %v587, %v587
        %v600 = vmul.f32 %v588, %v588
        %v601 = vmul.f32 %v589, %v589
        %v602 = vmul.f32 %v590, %v590
        %v603 = vmul.f32 %v591, %v591
        %v604 = vmul.f32 %v592, %v592
        %v605 = vmul.f32 %v593, %v593
        %v606 = vmul.f32 %v594, %v594
        %v607 = vmul.f32 %v595, %v595
        %v608 = vmul.f32 %v596, %v596
        %609 = vadd.xlane.f32.xlu0 %v597
        %v610 = vpop.xlane.xlu0 %609
        %611 = vadd.xlane.f32.xlu0 %v598
        %v612 = vpop.xlane.xlu0 %611
        %613 = vadd.xlane.f32.xlu0 %v599
        %v614 = vpop.xlane.xlu0 %613
        %615 = vadd.xlane.f32.xlu0 %v600
        %v616 = vpop.xlane.xlu0 %615
        %617 = vadd.xlane.f32.xlu0 %v601
        %v618 = vpop.xlane.xlu0 %617
        %619 = vadd.xlane.f32.xlu0 %v602
        %v620 = vpop.xlane.xlu0 %619
        %621 = vadd.xlane.f32.xlu0 %v603
        %v622 = vpop.xlane.xlu0 %621
        %623 = vadd.xlane.f32.xlu0 %v604
        %v624 = vpop.xlane.xlu0 %623
        %625 = vadd.xlane.f32.xlu0 %v605
        %v626 = vpop.xlane.xlu0 %625
        %627 = vadd.xlane.f32.xlu0 %v606
        %v628 = vpop.xlane.xlu0 %627
        %629 = vadd.xlane.f32.xlu0 %v607
        %v630 = vpop.xlane.xlu0 %629
        %631 = vadd.xlane.f32.xlu0 %v608
        %v632 = vpop.xlane.xlu0 %631
        %v633 = vmul.f32 %v610, %v501
        %v634 = vmul.f32 %v612, %v501
        %v635 = vmul.f32 %v614, %v501
        %v636 = vmul.f32 %v616, %v501
        %v637 = vmul.f32 %v618, %v501
        %v638 = vmul.f32 %v620, %v501
        %v639 = vmul.f32 %v622, %v501
        %v640 = vmul.f32 %v624, %v501
        %v641 = vmul.f32 %v626, %v501
        %v642 = vmul.f32 %v628, %v501
        %v643 = vmul.f32 %v630, %v501
        %v644 = vmul.f32 %v632, %v501
        %v645 = vadd.f32 %v633, 1e-05
        %v646 = vadd.f32 %v634, 1e-05
        %v647 = vadd.f32 %v635, 1e-05
        %v648 = vadd.f32 %v636, 1e-05
        %v649 = vadd.f32 %v637, 1e-05
        %v650 = vadd.f32 %v638, 1e-05
        %v651 = vadd.f32 %v639, 1e-05
        %v652 = vadd.f32 %v640, 1e-05
        %v653 = vadd.f32 %v641, 1e-05
        %v654 = vadd.f32 %v642, 1e-05
        %v655 = vadd.f32 %v643, 1e-05
        %v656 = vadd.f32 %v644, 1e-05
        %v657 = vrsqrt.pop %v645
        %v658 = vrsqrt.pop %v646
        %v659 = vrsqrt.pop %v647
        %v660 = vrsqrt.pop %v648
        %v661 = vrsqrt.pop %v649
        %v662 = vrsqrt.pop %v650
        %v663 = vrsqrt.pop %v651
        %v664 = vrsqrt.pop %v652
        %v665 = vrsqrt.pop %v653
        %v666 = vrsqrt.pop %v654
        %v667 = vrsqrt.pop %v655
        %v668 = vrsqrt.pop %v656
        %v669 = vmul.f32 %v585, %v657
        %v670 = vmul.f32 %v586, %v658
        %v671 = vmul.f32 %v587, %v659
        %v672 = vmul.f32 %v588, %v660
        %v673 = vmul.f32 %v589, %v661
        %v674 = vmul.f32 %v590, %v662
        %v675 = vmul.f32 %v591, %v663
        %v676 = vmul.f32 %v592, %v664
        %v677 = vmul.f32 %v593, %v665
        %v678 = vmul.f32 %v594, %v666
        %v679 = vmul.f32 %v595, %v667
        %v680 = vmul.f32 %v596, %v668
        %v681 = vmul.f32 %v669, %v524
        %v682 = vmul.f32 %v670, %v524
        %v683 = vmul.f32 %v671, %v524
        %v684 = vmul.f32 %v672, %v524
        %v685 = vmul.f32 %v673, %v524
        %v686 = vmul.f32 %v674, %v524
        %v687 = vmul.f32 %v675, %v524
        %v688 = vmul.f32 %v676, %v524
        %v689 = vmul.f32 %v677, %v524
        %v690 = vmul.f32 %v678, %v524
        %v691 = vmul.f32 %v679, %v524
        %v692 = vmul.f32 %v680, %v524
        %v693 = vadd.f32 %v681, %v532
        %v694 = vadd.f32 %v682, %v532
        %v695 = vadd.f32 %v683, %v532
        %v696 = vadd.f32 %v684, %v532
        %v697 = vadd.f32 %v685, %v532
        %v698 = vadd.f32 %v686, %v532
        %v699 = vadd.f32 %v687, %v532
        %v700 = vadd.f32 %v688, %v532
        %v701 = vadd.f32 %v689, %v532
        %v702 = vadd.f32 %v690, %v532
        %v703 = vadd.f32 %v691, %v532
        %v704 = vadd.f32 %v692, %v532
        %v705 = vpack.c.bf16 %v694, %v693
        %v706 = vpack.c.bf16 %v696, %v695
        %v707 = vpack.c.bf16 %v698, %v697
        %v708 = vpack.c.bf16 %v700, %v699
        %v709 = vpack.c.bf16 %v702, %v701
        %v710 = vpack.c.bf16 %v704, %v703
        %v711 = vld [vmem:[%s429] sm:$0xff]
        %v712 = vld [vmem:[%s429 + $0x8] sm:$0xff]
        %713 = vadd.xlane.f32.xlu0 %v711
        %v714 = vpop.xlane.xlu0 %713
        %715 = vadd.xlane.f32.xlu0 %v712
        %v716 = vpop.xlane.xlu0 %715
        %v717 = vmul.f32 %v714, %v501
        %v718 = vmul.f32 %v716, %v501
        %v719 = vsub.f32 %v711, %v717
        %v720 = vsub.f32 %v712, %v718
        %v721 = vmul.f32 %v719, %v719
        %v722 = vmul.f32 %v720, %v720
        %723 = vadd.xlane.f32.xlu0 %v721
        %v724 = vpop.xlane.xlu0 %723
        %725 = vadd.xlane.f32.xlu0 %v722
        %v726 = vpop.xlane.xlu0 %725
        %v727 = vmul.f32 %v724, %v501
        %v728 = vmul.f32 %v726, %v501
        %v729 = vadd.f32 %v727, 1e-05
        %v730 = vadd.f32 %v728, 1e-05
        %v731 = vrsqrt.pop %v729
        %v732 = vrsqrt.pop %v730
        %v733 = vmul.f32 %v719, %v731
        %v734 = vmul.f32 %v720, %v732
        %v735 = vmul.f32 %v733, %v524
        %v736 = vmul.f32 %v734, %v524
        %v737 = vadd.f32 %v735, %v532
        %v738 = vadd.f32 %v736, %v532
        %v739 = vpack.c.bf16 %v738, %v737
        %v740 = vld [vmem:[#allocation8] sm:$0xff]
        %v741 = vld [vmem:[#allocation8 + $0x8] sm:$0xff]
        %v742 = vld [vmem:[#allocation8 + $0x10] sm:$0xff]
        %v743 = vld [vmem:[#allocation8 + $0x18] sm:$0xff]
        %v744 = vld [vmem:[#allocation8 + $0x20] sm:$0xff]
        %v745 = vld [vmem:[#allocation8 + $0x28] sm:$0xff]
        %v746 = vld [vmem:[#allocation8 + $0x30] sm:$0xff]
        %v747 = vld [vmem:[#allocation8 + $0x38] sm:$0xff]
        %v748 = vld [vmem:[#allocation8 + $0x40] sm:$0xff]
        %v749 = vld [vmem:[#allocation8 + $0x48] sm:$0xff]
        %v750 = vld [vmem:[#allocation8 + $0x50] sm:$0xff]
        %v751 = vld [vmem:[#allocation8 + $0x58] sm:$0xff]
        %v752 = vld [vmem:[#allocation8 + $0x60] sm:$0xff]
        %v753 = vld [vmem:[#allocation8 + $0x68] sm:$0xff]
        %v754 = vld [vmem:[#allocation8 + $0x70] sm:$0xff]
        %v755 = vld [vmem:[#allocation8 + $0x78] sm:$0xff]
        %v756 = vld [vmem:[%s6] sm:$0x3]
        %v758 = vlaneseq
        %v759 = vshrl.u32 %v758, 7
        %v760 = vsub.s32 0, %v759
        %v761 = vrot.slane %v756, %v760
        %v762 = vlaneseq
        %v763 = vshrl.u32 %v762, 7
        %v764 = vsub.s32 1, %v763
        %v765 = vrot.slane %v756, %v764
        %v784 = vunpack.c.l.b16 %v740
        %v785 = vunpack.c.h.b16 %v740
        %v786 = vunpack.c.l.b16 %v741
        %v787 = vunpack.c.h.b16 %v741
        %v788 = vunpack.c.l.b16 %v742
        %v789 = vunpack.c.h.b16 %v742
        %v790 = vunpack.c.l.b16 %v743
        %v791 = vunpack.c.h.b16 %v743
        %v792 = vunpack.c.l.b16 %v744
        %v793 = vunpack.c.h.b16 %v744
        %v794 = vunpack.c.l.b16 %v745
        %v795 = vunpack.c.h.b16 %v745
        %v796 = vunpack.c.l.b16 %v746
        %v797 = vunpack.c.h.b16 %v746
        %v798 = vunpack.c.l.b16 %v747
        %v799 = vunpack.c.h.b16 %v747
        %v800 = vunpack.c.l.b16 %v748
        %v801 = vunpack.c.h.b16 %v748
        %v802 = vunpack.c.l.b16 %v749
        %v803 = vunpack.c.h.b16 %v749
        %v804 = vunpack.c.l.b16 %v750
        %v805 = vunpack.c.h.b16 %v750
        %v806 = vunpack.c.l.b16 %v751
        %v807 = vunpack.c.h.b16 %v751
        %v808 = vunpack.c.l.b16 %v752
        %v809 = vunpack.c.h.b16 %v752
        %v810 = vunpack.c.l.b16 %v753
        %v811 = vunpack.c.h.b16 %v753
        %v812 = vunpack.c.l.b16 %v754
        %v813 = vunpack.c.h.b16 %v754
        %v814 = vunpack.c.l.b16 %v755
        %v815 = vunpack.c.h.b16 %v755
        %v816 = vpack.c.b16 %v786, %v784
        %v817 = vpack.c.b16 %v787, %v785
        %v818 = vpack.c.b16 %v790, %v788
        %v819 = vpack.c.b16 %v791, %v789
        %v820 = vpack.c.b16 %v794, %v792
        %v821 = vpack.c.b16 %v795, %v793
        %v822 = vpack.c.b16 %v798, %v796
        %v823 = vpack.c.b16 %v799, %v797
        %v824 = vpack.c.b16 %v802, %v800
        %v825 = vpack.c.b16 %v803, %v801
        %v826 = vpack.c.b16 %v806, %v804
        %v827 = vpack.c.b16 %v807, %v805
        %v828 = vpack.c.b16 %v810, %v808
        %v829 = vpack.c.b16 %v811, %v809
        %v830 = vpack.c.b16 %v814, %v812
        %v831 = vpack.c.b16 %v815, %v813
        %848 = vmatprep.subr.bf16.mxu0 %v817
        %849 = vmatpush1.bf16.msra.mxu0 %v816
        %850 = vmatprep.subr.bf16.mxu0 %v819
        %851 = vmatpush1.bf16.msra.mxu0 %v818
        %852 = vmatprep.subr.bf16.mxu0 %v821
        %853 = vmatpush1.bf16.msra.mxu0 %v820
        %854 = vmatprep.subr.bf16.mxu0 %v823
        %855 = vmatpush1.bf16.msra.mxu0 %v822
        %856 = vmatprep.subr.bf16.mxu0 %v825
        %857 = vmatpush1.bf16.msra.mxu0 %v824
        %858 = vmatprep.subr.bf16.mxu0 %v827
        %859 = vmatpush1.bf16.msra.mxu0 %v826
        %860 = vmatprep.subr.bf16.mxu0 %v829
        %861 = vmatpush1.bf16.msra.mxu0 %v828
        %862 = vmatprep.subr.bf16.mxu0 %v831
        %863 = vmatpush1.bf16.msra.mxu0 %v830
        %864 = vmatprep.subr.bf16.mxu0 0
        %865 = vmatpush1.bf16.msra.mxu0 0
        %866 = vmatprep.subr.bf16.mxu0 0
        %867 = vmatpush1.bf16.msra.mxu0 0
        %868 = vmatprep.subr.bf16.mxu0 0
        %869 = vmatpush1.bf16.msra.mxu0 0
        %870 = vmatprep.subr.bf16.mxu0 0
        %871 = vmatpush1.bf16.msra.mxu0 0
        %872 = vmatprep.subr.bf16.mxu0 0
        %873 = vmatpush1.bf16.msra.mxu0 0
        %874 = vmatprep.subr.bf16.mxu0 0
        %875 = vmatpush1.bf16.msra.mxu0 0
        %876 = vmatprep.subr.bf16.mxu0 0
        %877 = vmatpush1.bf16.msra.mxu0 0
        %878 = vmatprep.subr.bf16.mxu0 0
        %879 = vmatpush1.bf16.msra.mxu0 0
        %880 = vmatprep.mubr.bf16.mxu0 0
        %881 = vmatmul.mubr.bf16.gmra.mrb[0].mxu0 %v536
        %v882 = vpop.f32.mrb[0].mxu0
        %v883 = vpop.f32.mrb[0].mxu0
        %v884 = vpop.f32.mrb[0].mxu0
        %v885 = vadd.f32 %v761, %v884
        %v886 = vpop.f32.mrb[0].mxu0
        %v887 = vadd.f32 %v765, %v886
        %888 = vmatprep.mubr.bf16.mxu0 0
        %889 = vmatmul.mubr.bf16.gmra.mrb[0].mxu0 %v705
        %v890 = vpop.f32.mrb[0].mxu0
        %v891 = vadd.f32 %v761, %v890
        %v892 = vpop.f32.mrb[0].mxu0
        %v893 = vadd.f32 %v765, %v892
        %v894 = vpop.f32.mrb[0].mxu0
        %v895 = vadd.f32 %v761, %v894
        %v896 = vpop.f32.mrb[0].mxu0
        %v897 = vadd.f32 %v765, %v896
        %898 = vmatprep.mubr.bf16.mxu0 0
        %899 = vmatmul.mubr.bf16.gmra.mrb[0].mxu0 %v706
        %v900 = vpop.f32.mrb[0].mxu0
        %v901 = vadd.f32 %v761, %v900
        %v902 = vpop.f32.mrb[0].mxu0
        %v903 = vadd.f32 %v765, %v902
        %v904 = vpop.f32.mrb[0].mxu0
        %v905 = vadd.f32 %v761, %v904
        %v906 = vpop.f32.mrb[0].mxu0
        %v907 = vadd.f32 %v765, %v906
        %908 = vmatprep.mubr.bf16.mxu0 0
        %909 = vmatmul.mubr.bf16.gmra.mrb[0].mxu0 %v707
        %v910 = vpop.f32.mrb[0].mxu0
        %v911 = vadd.f32 %v761, %v910
        %v912 = vpop.f32.mrb[0].mxu0
        %v913 = vadd.f32 %v765, %v912
        %v914 = vpop.f32.mrb[0].mxu0
        %v915 = vadd.f32 %v761, %v914
        %v916 = vpop.f32.mrb[0].mxu0
        %v917 = vadd.f32 %v765, %v916
        %918 = vmatprep.mubr.bf16.mxu0 0
        %919 = vmatmul.mubr.bf16.gmra.mrb[0].mxu0 %v708
        %v920 = vpop.f32.mrb[0].mxu0
        %v921 = vadd.f32 %v761, %v920
        %v922 = vpop.f32.mrb[0].mxu0
        %v923 = vadd.f32 %v765, %v922
        %v924 = vpop.f32.mrb[0].mxu0
        %v925 = vadd.f32 %v761, %v924
        %v926 = vpop.f32.mrb[0].mxu0
        %v927 = vadd.f32 %v765, %v926
        %928 = vmatprep.mubr.bf16.mxu0 0
        %929 = vmatmul.mubr.bf16.gmra.mrb[0].mxu0 %v709
        %v930 = vpop.f32.mrb[0].mxu0
        %v931 = vadd.f32 %v761, %v930
        %v932 = vpop.f32.mrb[0].mxu0
        %v933 = vadd.f32 %v765, %v932
        %v934 = vpop.f32.mrb[0].mxu0
        %v935 = vadd.f32 %v761, %v934
        %v936 = vpop.f32.mrb[0].mxu0
        %v937 = vadd.f32 %v765, %v936
        %938 = vmatprep.mubr.bf16.mxu0 0
        %939 = vmatmul.mubr.bf16.gmra.mrb[0].mxu0 %v710
        %v940 = vpop.f32.mrb[0].mxu0
        %v941 = vadd.f32 %v761, %v940
        %v942 = vpop.f32.mrb[0].mxu0
        %v943 = vadd.f32 %v765, %v942
        %v944 = vpop.f32.mrb[0].mxu0
        %v945 = vadd.f32 %v761, %v944
        %v946 = vpop.f32.mrb[0].mxu0
        %v947 = vadd.f32 %v765, %v946
        %948 = vmatprep.mubr.bf16.mxu0 0
        %949 = vmatmul.mubr.bf16.gmra.mrb[0].mxu0 %v739
        %v950 = vpop.f32.mrb[0].mxu0
        %v951 = vadd.f32 %v761, %v950
        %v952 = vpop.f32.mrb[0].mxu0
        %v953 = vadd.f32 %v765, %v952
        %v954 = vpop.f32.mrb[0].mxu0
        %v955 = vpop.f32.mrb[0].mxu0
        %956 = vdwg.mxu0
        %v957 = vxor.u32 %v885, 2147483648
        %v958 = vxor.u32 %v887, 2147483648
        %v959 = vxor.u32 %v891, 2147483648
        %v960 = vxor.u32 %v893, 2147483648
        %v961 = vxor.u32 %v895, 2147483648
        %v962 = vxor.u32 %v897, 2147483648
        %v963 = vxor.u32 %v901, 2147483648
        %v964 = vxor.u32 %v903, 2147483648
        %v965 = vxor.u32 %v905, 2147483648
        %v966 = vxor.u32 %v907, 2147483648
        %v967 = vxor.u32 %v911, 2147483648
        %v968 = vxor.u32 %v913, 2147483648
        %v969 = vxor.u32 %v915, 2147483648
        %v970 = vxor.u32 %v917, 2147483648
        %v971 = vxor.u32 %v921, 2147483648
        %v972 = vxor.u32 %v923, 2147483648
        %v973 = vxor.u32 %v925, 2147483648
        %v974 = vxor.u32 %v927, 2147483648
        %v975 = vxor.u32 %v931, 2147483648
        %v976 = vxor.u32 %v933, 2147483648
        %v977 = vxor.u32 %v935, 2147483648
        %v978 = vxor.u32 %v937, 2147483648
        %v979 = vxor.u32 %v941, 2147483648
        %v980 = vxor.u32 %v943, 2147483648
        %v981 = vxor.u32 %v945, 2147483648
        %v982 = vxor.u32 %v947, 2147483648
        %v983 = vxor.u32 %v951, 2147483648
        %v984 = vxor.u32 %v953, 2147483648
        %v985 = vmul.f32 %v957, 1.442695
        %v986 = vpow.pop %v985
        %v987 = vmul.f32 %v958, 1.442695
        %v988 = vpow.pop %v987
        %v989 = vmul.f32 %v959, 1.442695
        %v990 = vpow.pop %v989
        %v991 = vmul.f32 %v960, 1.442695
        %v992 = vpow.pop %v991
        %v993 = vmul.f32 %v961, 1.442695
        %v994 = vpow.pop %v993
        %v995 = vmul.f32 %v962, 1.442695
        %v996 = vpow.pop %v995
        %v997 = vmul.f32 %v963, 1.442695
        %v998 = vpow.pop %v997
        %v999 = vmul.f32 %v964, 1.442695
        %v1000 = vpow.pop %v999
        %v1001 = vmul.f32 %v965, 1.442695
        %v1002 = vpow.pop %v1001
        %v1003 = vmul.f32 %v966, 1.442695
        %v1004 = vpow.pop %v1003
        %v1005 = vmul.f32 %v967, 1.442695
        %v1006 = vpow.pop %v1005
        %v1007 = vmul.f32 %v968, 1.442695
        %v1008 = vpow.pop %v1007
        %v1009 = vmul.f32 %v969, 1.442695
        %v1010 = vpow.pop %v1009
        %v1011 = vmul.f32 %v970, 1.442695
        %v1012 = vpow.pop %v1011
        %v1013 = vmul.f32 %v971, 1.442695
        %v1014 = vpow.pop %v1013
        %v1015 = vmul.f32 %v972, 1.442695
        %v1016 = vpow.pop %v1015
        %v1017 = vmul.f32 %v973, 1.442695
        %v1018 = vpow.pop %v1017
        %v1019 = vmul.f32 %v974, 1.442695
        %v1020 = vpow.pop %v1019
        %v1021 = vmul.f32 %v975, 1.442695
        %v1022 = vpow.pop %v1021
        %v1023 = vmul.f32 %v976, 1.442695
        %v1024 = vpow.pop %v1023
        %v1025 = vmul.f32 %v977, 1.442695
        %v1026 = vpow.pop %v1025
        %v1027 = vmul.f32 %v978, 1.442695
        %v1028 = vpow.pop %v1027
        %v1029 = vmul.f32 %v979, 1.442695
        %v1030 = vpow.pop %v1029
        %v1031 = vmul.f32 %v980, 1.442695
        %v1032 = vpow.pop %v1031
        %v1033 = vmul.f32 %v981, 1.442695
        %v1034 = vpow.pop %v1033
        %v1035 = vmul.f32 %v982, 1.442695
        %v1036 = vpow.pop %v1035
        %v1037 = vmul.f32 %v983, 1.442695
        %v1038 = vpow.pop %v1037
        %v1039 = vmul.f32 %v984, 1.442695
        %v1040 = vpow.pop %v1039
        %v1041 = vadd.f32 %v986, 1.0
        %v1042 = vadd.f32 %v988, 1.0
        %v1043 = vadd.f32 %v990, 1.0
        %v1044 = vadd.f32 %v992, 1.0
        %v1045 = vadd.f32 %v994, 1.0
        %v1046 = vadd.f32 %v996, 1.0
        %v1047 = vadd.f32 %v998, 1.0
        %v1048 = vadd.f32 %v1000, 1.0
        %v1049 = vadd.f32 %v1002, 1.0
        %v1050 = vadd.f32 %v1004, 1.0
        %v1051 = vadd.f32 %v1006, 1.0
        %v1052 = vadd.f32 %v1008, 1.0
        %v1053 = vadd.f32 %v1010, 1.0
        %v1054 = vadd.f32 %v1012, 1.0
        %v1055 = vadd.f32 %v1014, 1.0
        %v1056 = vadd.f32 %v1016, 1.0
        %v1057 = vadd.f32 %v1018, 1.0
        %v1058 = vadd.f32 %v1020, 1.0
        %v1059 = vadd.f32 %v1022, 1.0
        %v1060 = vadd.f32 %v1024, 1.0
        %v1061 = vadd.f32 %v1026, 1.0
        %v1062 = vadd.f32 %v1028, 1.0
        %v1063 = vadd.f32 %v1030, 1.0
        %v1064 = vadd.f32 %v1032, 1.0
        %v1065 = vadd.f32 %v1034, 1.0
        %v1066 = vadd.f32 %v1036, 1.0
        %v1067 = vadd.f32 %v1038, 1.0
        %v1068 = vadd.f32 %v1040, 1.0
        %v1069 = vrcp.pop %v1041
        %v1070 = vmul.f32 1.0, %v1069
        %v1071 = vrcp.pop %v1042
        %v1072 = vmul.f32 1.0, %v1071
        %v1073 = vrcp.pop %v1043
        %v1074 = vmul.f32 1.0, %v1073
        %v1075 = vrcp.pop %v1044
        %v1076 = vmul.f32 1.0, %v1075
        %v1077 = vrcp.pop %v1045
        %v1078 = vmul.f32 1.0, %v1077
        %v1079 = vrcp.pop %v1046
        %v1080 = vmul.f32 1.0, %v1079
        %v1081 = vrcp.pop %v1047
        %v1082 = vmul.f32 1.0, %v1081
        %v1083 = vrcp.pop %v1048
        %v1084 = vmul.f32 1.0, %v1083
        %v1085 = vrcp.pop %v1049
        %v1086 = vmul.f32 1.0, %v1085
        %v1087 = vrcp.pop %v1050
        %v1088 = vmul.f32 1.0, %v1087
        %v1089 = vrcp.pop %v1051
        %v1090 = vmul.f32 1.0, %v1089
        %v1091 = vrcp.pop %v1052
        %v1092 = vmul.f32 1.0, %v1091
        %v1093 = vrcp.pop %v1053
        %v1094 = vmul.f32 1.0, %v1093
        %v1095 = vrcp.pop %v1054
        %v1096 = vmul.f32 1.0, %v1095
        %v1097 = vrcp.pop %v1055
        %v1098 = vmul.f32 1.0, %v1097
        %v1099 = vrcp.pop %v1056
        %v1100 = vmul.f32 1.0, %v1099
        %v1101 = vrcp.pop %v1057
        %v1102 = vmul.f32 1.0, %v1101
        %v1103 = vrcp.pop %v1058
        %v1104 = vmul.f32 1.0, %v1103
        %v1105 = vrcp.pop %v1059
        %v1106 = vmul.f32 1.0, %v1105
        %v1107 = vrcp.pop %v1060
        %v1108 = vmul.f32 1.0, %v1107
        %v1109 = vrcp.pop %v1061
        %v1110 = vmul.f32 1.0, %v1109
        %v1111 = vrcp.pop %v1062
        %v1112 = vmul.f32 1.0, %v1111
        %v1113 = vrcp.pop %v1063
        %v1114 = vmul.f32 1.0, %v1113
        %v1115 = vrcp.pop %v1064
        %v1116 = vmul.f32 1.0, %v1115
        %v1117 = vrcp.pop %v1065
        %v1118 = vmul.f32 1.0, %v1117
        %v1119 = vrcp.pop %v1066
        %v1120 = vmul.f32 1.0, %v1119
        %v1121 = vrcp.pop %v1067
        %v1122 = vmul.f32 1.0, %v1121
        %v1123 = vrcp.pop %v1068
        %v1124 = vmul.f32 1.0, %v1123
        %v1125 = vmul.f32 %v885, %v1070
        %v1126 = vmul.f32 %v887, %v1072
        %v1127 = vmul.f32 %v891, %v1074
        %v1128 = vmul.f32 %v893, %v1076
        %v1129 = vmul.f32 %v895, %v1078
        %v1130 = vmul.f32 %v897, %v1080
        %v1131 = vmul.f32 %v901, %v1082
        %v1132 = vmul.f32 %v903, %v1084
        %v1133 = vmul.f32 %v905, %v1086
        %v1134 = vmul.f32 %v907, %v1088
        %v1135 = vmul.f32 %v911, %v1090
        %v1136 = vmul.f32 %v913, %v1092
        %v1137 = vmul.f32 %v915, %v1094
        %v1138 = vmul.f32 %v917, %v1096
        %v1139 = vmul.f32 %v921, %v1098
        %v1140 = vmul.f32 %v923, %v1100
        %v1141 = vmul.f32 %v925, %v1102
        %v1142 = vmul.f32 %v927, %v1104
        %v1143 = vmul.f32 %v931, %v1106
        %v1144 = vmul.f32 %v933, %v1108
        %v1145 = vmul.f32 %v935, %v1110
        %v1146 = vmul.f32 %v937, %v1112
        %v1147 = vmul.f32 %v941, %v1114
        %v1148 = vmul.f32 %v943, %v1116
        %v1149 = vmul.f32 %v945, %v1118
        %v1150 = vmul.f32 %v947, %v1120
        %v1151 = vmul.f32 %v951, %v1122
        %v1152 = vmul.f32 %v953, %v1124
        %p1153 = scmp.gt.s32.totalorder %s34, 0
        %s1154 = scalar_select %p1153, 1, 0
        %v1155 = vstv %s1154
        %vm1156 = vcmp.eq.s32.totalorder %v1155, 1
        %v1157 = vsel %vm1156, %v1125, 0.0
        %v1158 = vsel %vm1156, %v1126, 0.0
        %s1159 = sadd.s32 %s34, 1
        %s1160 = smul.u32 %s1159, 96
        %v1161 = vlaneseq
        %v1162 = vshrl.u32 %v1161, 7
        %v1163 = vstv %s1160
        %v1164 = vadd.s32 %v1163, %v1162
        %vm1165 = vcmp.lt.s32.totalorder %v1164, 192
        %v1166 = vsel %vm1165, 1, 0
        %vm1167 = vcmp.eq.s32.totalorder %v1166, 1
        %v1168 = vsel %vm1167, %v1151, 0.0
        %v1169 = vsel %vm1167, %v1152, 0.0
        %v1170 = vld [vmem:[#allocation10] ss:$8 sm:$0x3]
        %v1172 = vlaneseq
        %v1173 = vshrl.u32 %v1172, 7
        %v1174 = vsub.s32 0, %v1173
        %v1175 = vrot.slane %v1170, %v1174
        %v1176 = vlaneseq
        %v1177 = vshrl.u32 %v1176, 7
        %v1178 = vsub.s32 1, %v1177
        %v1179 = vrot.slane %v1170, %v1178
        %v1182 = vmul.f32 %v1157, %v1175
        %v1183 = vmul.f32 %v1158, %v1179
        %v1184 = vmul.f32 %v1127, %v1175
        %v1185 = vmul.f32 %v1128, %v1179
        %v1186 = vmul.f32 %v1129, %v1175
        %v1187 = vmul.f32 %v1130, %v1179
        %v1188 = vmul.f32 %v1131, %v1175
        %v1189 = vmul.f32 %v1132, %v1179
        %v1190 = vmul.f32 %v1133, %v1175
        %v1191 = vmul.f32 %v1134, %v1179
        %v1192 = vmul.f32 %v1135, %v1175
        %v1193 = vmul.f32 %v1136, %v1179
        %v1194 = vmul.f32 %v1137, %v1175
        %v1195 = vmul.f32 %v1138, %v1179
        %v1196 = vmul.f32 %v1139, %v1175
        %v1197 = vmul.f32 %v1140, %v1179
        %v1198 = vmul.f32 %v1141, %v1175
        %v1199 = vmul.f32 %v1142, %v1179
        %v1200 = vmul.f32 %v1143, %v1175
        %v1201 = vmul.f32 %v1144, %v1179
        %v1202 = vmul.f32 %v1145, %v1175
        %v1203 = vmul.f32 %v1146, %v1179
        %v1204 = vmul.f32 %v1147, %v1175
        %v1205 = vmul.f32 %v1148, %v1179
        %s1206 = scalar_lea.vmem [#allocation10], 16
        %v1207 = vld [vmem:[%s1206] ss:$8 sm:$0x3]
        %v1209 = vlaneseq
        %v1210 = vshrl.u32 %v1209, 7
        %v1211 = vsub.s32 0, %v1210
        %v1212 = vrot.slane %v1207, %v1211
        %v1213 = vlaneseq
        %v1214 = vshrl.u32 %v1213, 7
        %v1215 = vsub.s32 1, %v1214
        %v1216 = vrot.slane %v1207, %v1215
        %v1219 = vmul.f32 %v1127, %v1212
        %v1220 = vmul.f32 %v1128, %v1216
        %v1221 = vmul.f32 %v1129, %v1212
        %v1222 = vmul.f32 %v1130, %v1216
        %v1223 = vmul.f32 %v1131, %v1212
        %v1224 = vmul.f32 %v1132, %v1216
        %v1225 = vmul.f32 %v1133, %v1212
        %v1226 = vmul.f32 %v1134, %v1216
        %v1227 = vmul.f32 %v1135, %v1212
        %v1228 = vmul.f32 %v1136, %v1216
        %v1229 = vmul.f32 %v1137, %v1212
        %v1230 = vmul.f32 %v1138, %v1216
        %v1231 = vmul.f32 %v1139, %v1212
        %v1232 = vmul.f32 %v1140, %v1216
        %v1233 = vmul.f32 %v1141, %v1212
        %v1234 = vmul.f32 %v1142, %v1216
        %v1235 = vmul.f32 %v1143, %v1212
        %v1236 = vmul.f32 %v1144, %v1216
        %v1237 = vmul.f32 %v1145, %v1212
        %v1238 = vmul.f32 %v1146, %v1216
        %v1239 = vmul.f32 %v1147, %v1212
        %v1240 = vmul.f32 %v1148, %v1216
        %v1241 = vmul.f32 %v1149, %v1212
        %v1242 = vmul.f32 %v1150, %v1216
        %v1243 = vadd.f32 %v1182, %v1219
        %v1244 = vadd.f32 %v1183, %v1220
        %v1245 = vadd.f32 %v1184, %v1221
        %v1246 = vadd.f32 %v1185, %v1222
        %v1247 = vadd.f32 %v1186, %v1223
        %v1248 = vadd.f32 %v1187, %v1224
        %v1249 = vadd.f32 %v1188, %v1225
        %v1250 = vadd.f32 %v1189, %v1226
        %v1251 = vadd.f32 %v1190, %v1227
        %v1252 = vadd.f32 %v1191, %v1228
        %v1253 = vadd.f32 %v1192, %v1229
        %v1254 = vadd.f32 %v1193, %v1230
        %v1255 = vadd.f32 %v1194, %v1231
        %v1256 = vadd.f32 %v1195, %v1232
        %v1257 = vadd.f32 %v1196, %v1233
        %v1258 = vadd.f32 %v1197, %v1234
        %v1259 = vadd.f32 %v1198, %v1235
        %v1260 = vadd.f32 %v1199, %v1236
        %v1261 = vadd.f32 %v1200, %v1237
        %v1262 = vadd.f32 %v1201, %v1238
        %v1263 = vadd.f32 %v1202, %v1239
        %v1264 = vadd.f32 %v1203, %v1240
        %v1265 = vadd.f32 %v1204, %v1241
        %v1266 = vadd.f32 %v1205, %v1242
        %s1267 = scalar_lea.vmem [#allocation10], 32
        %v1268 = vld [vmem:[%s1267] ss:$8 sm:$0x3]
        %v1270 = vlaneseq
        %v1271 = vshrl.u32 %v1270, 7
        %v1272 = vsub.s32 0, %v1271
        %v1273 = vrot.slane %v1268, %v1272
        %v1274 = vlaneseq
        %v1275 = vshrl.u32 %v1274, 7
        %v1276 = vsub.s32 1, %v1275
        %v1277 = vrot.slane %v1268, %v1276
        %v1280 = vmul.f32 %v1129, %v1273
        %v1281 = vmul.f32 %v1130, %v1277
        %v1282 = vmul.f32 %v1131, %v1273
        %v1283 = vmul.f32 %v1132, %v1277
        %v1284 = vmul.f32 %v1133, %v1273
        %v1285 = vmul.f32 %v1134, %v1277
        %v1286 = vmul.f32 %v1135, %v1273
        %v1287 = vmul.f32 %v1136, %v1277
        %v1288 = vmul.f32 %v1137, %v1273
        %v1289 = vmul.f32 %v1138, %v1277
        %v1290 = vmul.f32 %v1139, %v1273
        %v1291 = vmul.f32 %v1140, %v1277
        %v1292 = vmul.f32 %v1141, %v1273
        %v1293 = vmul.f32 %v1142, %v1277
        %v1294 = vmul.f32 %v1143, %v1273
        %v1295 = vmul.f32 %v1144, %v1277
        %v1296 = vmul.f32 %v1145, %v1273
        %v1297 = vmul.f32 %v1146, %v1277
        %v1298 = vmul.f32 %v1147, %v1273
        %v1299 = vmul.f32 %v1148, %v1277
        %v1300 = vmul.f32 %v1149, %v1273
        %v1301 = vmul.f32 %v1150, %v1277
        %v1302 = vmul.f32 %v1168, %v1273
        %v1303 = vmul.f32 %v1169, %v1277
        %v1304 = vadd.f32 %v1243, %v1280
        %v1305 = vadd.f32 %v1244, %v1281
        %v1306 = vadd.f32 %v1245, %v1282
        %v1307 = vadd.f32 %v1246, %v1283
        %v1308 = vadd.f32 %v1247, %v1284
        %v1309 = vadd.f32 %v1248, %v1285
        %v1310 = vadd.f32 %v1249, %v1286
        %v1311 = vadd.f32 %v1250, %v1287
        %v1312 = vadd.f32 %v1251, %v1288
        %v1313 = vadd.f32 %v1252, %v1289
        %v1314 = vadd.f32 %v1253, %v1290
        %v1315 = vadd.f32 %v1254, %v1291
        %v1316 = vadd.f32 %v1255, %v1292
        %v1317 = vadd.f32 %v1256, %v1293
        %v1318 = vadd.f32 %v1257, %v1294
        %v1319 = vadd.f32 %v1258, %v1295
        %v1320 = vadd.f32 %v1259, %v1296
        %v1321 = vadd.f32 %v1260, %v1297
        %v1322 = vadd.f32 %v1261, %v1298
        %v1323 = vadd.f32 %v1262, %v1299
        %v1324 = vadd.f32 %v1263, %v1300
        %v1325 = vadd.f32 %v1264, %v1301
        %v1326 = vadd.f32 %v1265, %v1302
        %v1327 = vadd.f32 %v1266, %v1303
        %s1328 = scalar_lea.vmem [#allocation10], 1
        %v1329 = vld [vmem:[%s1328] ss:$8 sm:$0x3]
        %v1331 = vlaneseq
        %v1332 = vshrl.u32 %v1331, 7
        %v1333 = vsub.s32 0, %v1332
        %v1334 = vrot.slane %v1329, %v1333
        %v1335 = vlaneseq
        %v1336 = vshrl.u32 %v1335, 7
        %v1337 = vsub.s32 1, %v1336
        %v1338 = vrot.slane %v1329, %v1337
        %v1341 = vmul.f32 %v1157, %v1334
        %v1342 = vmul.f32 %v1158, %v1338
        %v1343 = vmul.f32 %v1127, %v1334
        %v1344 = vmul.f32 %v1128, %v1338
        %v1345 = vmul.f32 %v1129, %v1334
        %v1346 = vmul.f32 %v1130, %v1338
        %v1347 = vmul.f32 %v1131, %v1334
        %v1348 = vmul.f32 %v1132, %v1338
        %v1349 = vmul.f32 %v1133, %v1334
        %v1350 = vmul.f32 %v1134, %v1338
        %v1351 = vmul.f32 %v1135, %v1334
        %v1352 = vmul.f32 %v1136, %v1338
        %v1353 = vmul.f32 %v1137, %v1334
        %v1354 = vmul.f32 %v1138, %v1338
        %v1355 = vmul.f32 %v1139, %v1334
        %v1356 = vmul.f32 %v1140, %v1338
        %v1357 = vmul.f32 %v1141, %v1334
        %v1358 = vmul.f32 %v1142, %v1338
        %v1359 = vmul.f32 %v1143, %v1334
        %v1360 = vmul.f32 %v1144, %v1338
        %v1361 = vmul.f32 %v1145, %v1334
        %v1362 = vmul.f32 %v1146, %v1338
        %v1363 = vmul.f32 %v1147, %v1334
        %v1364 = vmul.f32 %v1148, %v1338
        %v1365 = vmul.f32 %v1149, %v1334
        %v1366 = vmul.f32 %v1150, %v1338
        %vm1393 = vcmask 1046528
        %v1394 = vrot.slane %v1341, 1
        %v1395 = vrot.slane %v1343, 1
        %v1396 = vsel %vm1393, %v1394, %v1395
        %v1397 = vrot.slane %v1342, 1
        %v1398 = vrot.slane %v1344, 1
        %v1399 = vsel %vm1393, %v1397, %v1398
        %v1400 = vrot.slane %v1345, 1
        %v1401 = vsel %vm1393, %v1395, %v1400
        %v1402 = vrot.slane %v1346, 1
        %v1403 = vsel %vm1393, %v1398, %v1402
        %v1404 = vrot.slane %v1347, 1
        %v1405 = vsel %vm1393, %v1400, %v1404
        %v1406 = vrot.slane %v1348, 1
        %v1407 = vsel %vm1393, %v1402, %v1406
        %v1408 = vrot.slane %v1349, 1
        %v1409 = vsel %vm1393, %v1404, %v1408
        %v1410 = vrot.slane %v1350, 1
        %v1411 = vsel %vm1393, %v1406, %v1410
        %v1412 = vrot.slane %v1351, 1
        %v1413 = vsel %vm1393, %v1408, %v1412
        %v1414 = vrot.slane %v1352, 1
        %v1415 = vsel %vm1393, %v1410, %v1414
        %v1416 = vrot.slane %v1353, 1
        %v1417 = vsel %vm1393, %v1412, %v1416
        %v1418 = vrot.slane %v1354, 1
        %v1419 = vsel %vm1393, %v1414, %v1418
        %v1420 = vrot.slane %v1355, 1
        %v1421 = vsel %vm1393, %v1416, %v1420
        %v1422 = vrot.slane %v1356, 1
        %v1423 = vsel %vm1393, %v1418, %v1422
        %v1424 = vrot.slane %v1357, 1
        %v1425 = vsel %vm1393, %v1420, %v1424
        %v1426 = vrot.slane %v1358, 1
        %v1427 = vsel %vm1393, %v1422, %v1426
        %v1428 = vrot.slane %v1359, 1
        %v1429 = vsel %vm1393, %v1424, %v1428
        %v1430 = vrot.slane %v1360, 1
        %v1431 = vsel %vm1393, %v1426, %v1430
        %v1432 = vrot.slane %v1361, 1
        %v1433 = vsel %vm1393, %v1428, %v1432
        %v1434 = vrot.slane %v1362, 1
        %v1435 = vsel %vm1393, %v1430, %v1434
        %v1436 = vrot.slane %v1363, 1
        %v1437 = vsel %vm1393, %v1432, %v1436
        %v1438 = vrot.slane %v1364, 1
        %v1439 = vsel %vm1393, %v1434, %v1438
        %v1440 = vrot.slane %v1365, 1
        %v1441 = vsel %vm1393, %v1436, %v1440
        %v1442 = vrot.slane %v1366, 1
        %v1443 = vsel %vm1393, %v1438, %v1442
        %v1468 = vadd.f32 %v1304, %v1396
        %v1469 = vadd.f32 %v1305, %v1399
        %v1470 = vadd.f32 %v1306, %v1401
        %v1471 = vadd.f32 %v1307, %v1403
        %v1472 = vadd.f32 %v1308, %v1405
        %v1473 = vadd.f32 %v1309, %v1407
        %v1474 = vadd.f32 %v1310, %v1409
        %v1475 = vadd.f32 %v1311, %v1411
        %v1476 = vadd.f32 %v1312, %v1413
        %v1477 = vadd.f32 %v1313, %v1415
        %v1478 = vadd.f32 %v1314, %v1417
        %v1479 = vadd.f32 %v1315, %v1419
        %v1480 = vadd.f32 %v1316, %v1421
        %v1481 = vadd.f32 %v1317, %v1423
        %v1482 = vadd.f32 %v1318, %v1425
        %v1483 = vadd.f32 %v1319, %v1427
        %v1484 = vadd.f32 %v1320, %v1429
        %v1485 = vadd.f32 %v1321, %v1431
        %v1486 = vadd.f32 %v1322, %v1433
        %v1487 = vadd.f32 %v1323, %v1435
        %v1488 = vadd.f32 %v1324, %v1437
        %v1489 = vadd.f32 %v1325, %v1439
        %v1490 = vadd.f32 %v1326, %v1441
        %v1491 = vadd.f32 %v1327, %v1443
        %s1492 = scalar_lea.vmem [#allocation10], 17
        %v1493 = vld [vmem:[%s1492] ss:$8 sm:$0x3]
        %v1495 = vlaneseq
        %v1496 = vshrl.u32 %v1495, 7
        %v1497 = vsub.s32 0, %v1496
        %v1498 = vrot.slane %v1493, %v1497
        %v1499 = vlaneseq
        %v1500 = vshrl.u32 %v1499, 7
        %v1501 = vsub.s32 1, %v1500
        %v1502 = vrot.slane %v1493, %v1501
        %v1505 = vmul.f32 %v1127, %v1498
        %v1506 = vmul.f32 %v1128, %v1502
        %v1507 = vmul.f32 %v1129, %v1498
        %v1508 = vmul.f32 %v1130, %v1502
        %v1509 = vmul.f32 %v1131, %v1498
        %v1510 = vmul.f32 %v1132, %v1502
        %v1511 = vmul.f32 %v1133, %v1498
        %v1512 = vmul.f32 %v1134, %v1502
        %v1513 = vmul.f32 %v1135, %v1498
        %v1514 = vmul.f32 %v1136, %v1502
        %v1515 = vmul.f32 %v1137, %v1498
        %v1516 = vmul.f32 %v1138, %v1502
        %v1517 = vmul.f32 %v1139, %v1498
        %v1518 = vmul.f32 %v1140, %v1502
        %v1519 = vmul.f32 %v1141, %v1498
        %v1520 = vmul.f32 %v1142, %v1502
        %v1521 = vmul.f32 %v1143, %v1498
        %v1522 = vmul.f32 %v1144, %v1502
        %v1523 = vmul.f32 %v1145, %v1498
        %v1524 = vmul.f32 %v1146, %v1502
        %v1525 = vmul.f32 %v1147, %v1498
        %v1526 = vmul.f32 %v1148, %v1502
        %v1527 = vmul.f32 %v1149, %v1498
        %v1528 = vmul.f32 %v1150, %v1502
        %v1529 = vmul.f32 %v1168, %v1498
        %v1530 = vmul.f32 %v1169, %v1502
        %v1557 = vrot.slane %v1505, 1
        %v1558 = vrot.slane %v1507, 1
        %v1559 = vsel %vm1393, %v1557, %v1558
        %v1560 = vrot.slane %v1506, 1
        %v1561 = vrot.slane %v1508, 1
        %v1562 = vsel %vm1393, %v1560, %v1561
        %v1563 = vrot.slane %v1509, 1
        %v1564 = vsel %vm1393, %v1558, %v1563
        %v1565 = vrot.slane %v1510, 1
        %v1566 = vsel %vm1393, %v1561, %v1565
        %v1567 = vrot.slane %v1511, 1
        %v1568 = vsel %vm1393, %v1563, %v1567
        %v1569 = vrot.slane %v1512, 1
        %v1570 = vsel %vm1393, %v1565, %v1569
        %v1571 = vrot.slane %v1513, 1
        %v1572 = vsel %vm1393, %v1567, %v1571
        %v1573 = vrot.slane %v1514, 1
        %v1574 = vsel %vm1393, %v1569, %v1573
        %v1575 = vrot.slane %v1515, 1
        %v1576 = vsel %vm1393, %v1571, %v1575
        %v1577 = vrot.slane %v1516, 1
        %v1578 = vsel %vm1393, %v1573, %v1577
        %v1579 = vrot.slane %v1517, 1
        %v1580 = vsel %vm1393, %v1575, %v1579
        %v1581 = vrot.slane %v1518, 1
        %v1582 = vsel %vm1393, %v1577, %v1581
        %v1583 = vrot.slane %v1519, 1
        %v1584 = vsel %vm1393, %v1579, %v1583
        %v1585 = vrot.slane %v1520, 1
        %v1586 = vsel %vm1393, %v1581, %v1585
        %v1587 = vrot.slane %v1521, 1
        %v1588 = vsel %vm1393, %v1583, %v1587
        %v1589 = vrot.slane %v1522, 1
        %v1590 = vsel %vm1393, %v1585, %v1589
        %v1591 = vrot.slane %v1523, 1
        %v1592 = vsel %vm1393, %v1587, %v1591
        %v1593 = vrot.slane %v1524, 1
        %v1594 = vsel %vm1393, %v1589, %v1593
        %v1595 = vrot.slane %v1525, 1
        %v1596 = vsel %vm1393, %v1591, %v1595
        %v1597 = vrot.slane %v1526, 1
        %v1598 = vsel %vm1393, %v1593, %v1597
        %v1599 = vrot.slane %v1527, 1
        %v1600 = vsel %vm1393, %v1595, %v1599
        %v1601 = vrot.slane %v1528, 1
        %v1602 = vsel %vm1393, %v1597, %v1601
        %v1603 = vrot.slane %v1529, 1
        %v1604 = vsel %vm1393, %v1599, %v1603
        %v1605 = vrot.slane %v1530, 1
        %v1606 = vsel %vm1393, %v1601, %v1605
        %v1631 = vadd.f32 %v1468, %v1559
        %v1632 = vadd.f32 %v1469, %v1562
        %v1633 = vadd.f32 %v1470, %v1564
        %v1634 = vadd.f32 %v1471, %v1566
        %v1635 = vadd.f32 %v1472, %v1568
        %v1636 = vadd.f32 %v1473, %v1570
        %v1637 = vadd.f32 %v1474, %v1572
        %v1638 = vadd.f32 %v1475, %v1574
        %v1639 = vadd.f32 %v1476, %v1576
        %v1640 = vadd.f32 %v1477, %v1578
        %v1641 = vadd.f32 %v1478, %v1580
        %v1642 = vadd.f32 %v1479, %v1582
        %v1643 = vadd.f32 %v1480, %v1584
        %v1644 = vadd.f32 %v1481, %v1586
        %v1645 = vadd.f32 %v1482, %v1588
        %v1646 = vadd.f32 %v1483, %v1590
        %v1647 = vadd.f32 %v1484, %v1592
        %v1648 = vadd.f32 %v1485, %v1594
        %v1649 = vadd.f32 %v1486, %v1596
        %v1650 = vadd.f32 %v1487, %v1598
        %v1651 = vadd.f32 %v1488, %v1600
        %v1652 = vadd.f32 %v1489, %v1602
        %v1653 = vadd.f32 %v1490, %v1604
        %v1654 = vadd.f32 %v1491, %v1606
        %s1655 = scalar_lea.vmem [#allocation10], 2
        %v1656 = vld [vmem:[%s1655] ss:$8 sm:$0x3]
        %v1658 = vlaneseq
        %v1659 = vshrl.u32 %v1658, 7
        %v1660 = vsub.s32 0, %v1659
        %v1661 = vrot.slane %v1656, %v1660
        %v1662 = vlaneseq
        %v1663 = vshrl.u32 %v1662, 7
        %v1664 = vsub.s32 1, %v1663
        %v1665 = vrot.slane %v1656, %v1664
        %v1668 = vmul.f32 %v1157, %v1661
        %v1669 = vmul.f32 %v1158, %v1665
        %v1670 = vmul.f32 %v1127, %v1661
        %v1671 = vmul.f32 %v1128, %v1665
        %v1672 = vmul.f32 %v1129, %v1661
        %v1673 = vmul.f32 %v1130, %v1665
        %v1674 = vmul.f32 %v1131, %v1661
        %v1675 = vmul.f32 %v1132, %v1665
        %v1676 = vmul.f32 %v1133, %v1661
        %v1677 = vmul.f32 %v1134, %v1665
        %v1678 = vmul.f32 %v1135, %v1661
        %v1679 = vmul.f32 %v1136, %v1665
        %v1680 = vmul.f32 %v1137, %v1661
        %v1681 = vmul.f32 %v1138, %v1665
        %v1682 = vmul.f32 %v1139, %v1661
        %v1683 = vmul.f32 %v1140, %v1665
        %v1684 = vmul.f32 %v1141, %v1661
        %v1685 = vmul.f32 %v1142, %v1665
        %v1686 = vmul.f32 %v1143, %v1661
        %v1687 = vmul.f32 %v1144, %v1665
        %v1688 = vmul.f32 %v1145, %v1661
        %v1689 = vmul.f32 %v1146, %v1665
        %v1690 = vmul.f32 %v1147, %v1661
        %v1691 = vmul.f32 %v1148, %v1665
        %v1692 = vmul.f32 %v1149, %v1661
        %v1693 = vmul.f32 %v1150, %v1665
        %vm1720 = vcmask 1045504
        %v1721 = vrot.slane %v1668, 2
        %v1722 = vrot.slane %v1670, 2
        %v1723 = vsel %vm1720, %v1721, %v1722
        %v1724 = vrot.slane %v1669, 2
        %v1725 = vrot.slane %v1671, 2
        %v1726 = vsel %vm1720, %v1724, %v1725
        %v1727 = vrot.slane %v1672, 2
        %v1728 = vsel %vm1720, %v1722, %v1727
        %v1729 = vrot.slane %v1673, 2
        %v1730 = vsel %vm1720, %v1725, %v1729
        %v1731 = vrot.slane %v1674, 2
        %v1732 = vsel %vm1720, %v1727, %v1731
        %v1733 = vrot.slane %v1675, 2
        %v1734 = vsel %vm1720, %v1729, %v1733
        %v1735 = vrot.slane %v1676, 2
        %v1736 = vsel %vm1720, %v1731, %v1735
        %v1737 = vrot.slane %v1677, 2
        %v1738 = vsel %vm1720, %v1733, %v1737
        %v1739 = vrot.slane %v1678, 2
        %v1740 = vsel %vm1720, %v1735, %v1739
        %v1741 = vrot.slane %v1679, 2
        %v1742 = vsel %vm1720, %v1737, %v1741
        %v1743 = vrot.slane %v1680, 2
        %v1744 = vsel %vm1720, %v1739, %v1743
        %v1745 = vrot.slane %v1681, 2
        %v1746 = vsel %vm1720, %v1741, %v1745
        %v1747 = vrot.slane %v1682, 2
        %v1748 = vsel %vm1720, %v1743, %v1747
        %v1749 = vrot.slane %v1683, 2
        %v1750 = vsel %vm1720, %v1745, %v1749
        %v1751 = vrot.slane %v1684, 2
        %v1752 = vsel %vm1720, %v1747, %v1751
        %v1753 = vrot.slane %v1685, 2
        %v1754 = vsel %vm1720, %v1749, %v1753
        %v1755 = vrot.slane %v1686, 2
        %v1756 = vsel %vm1720, %v1751, %v1755
        %v1757 = vrot.slane %v1687, 2
        %v1758 = vsel %vm1720, %v1753, %v1757
        %v1759 = vrot.slane %v1688, 2
        %v1760 = vsel %vm1720, %v1755, %v1759
        %v1761 = vrot.slane %v1689, 2
        %v1762 = vsel %vm1720, %v1757, %v1761
        %v1763 = vrot.slane %v1690, 2
        %v1764 = vsel %vm1720, %v1759, %v1763
        %v1765 = vrot.slane %v1691, 2
        %v1766 = vsel %vm1720, %v1761, %v1765
        %v1767 = vrot.slane %v1692, 2
        %v1768 = vsel %vm1720, %v1763, %v1767
        %v1769 = vrot.slane %v1693, 2
        %v1770 = vsel %vm1720, %v1765, %v1769
        %v1795 = vadd.f32 %v1631, %v1723
        %v1796 = vadd.f32 %v1632, %v1726
        %v1797 = vadd.f32 %v1633, %v1728
        %v1798 = vadd.f32 %v1634, %v1730
        %v1799 = vadd.f32 %v1635, %v1732
        %v1800 = vadd.f32 %v1636, %v1734
        %v1801 = vadd.f32 %v1637, %v1736
        %v1802 = vadd.f32 %v1638, %v1738
        %v1803 = vadd.f32 %v1639, %v1740
        %v1804 = vadd.f32 %v1640, %v1742
        %v1805 = vadd.f32 %v1641, %v1744
        %v1806 = vadd.f32 %v1642, %v1746
        %v1807 = vadd.f32 %v1643, %v1748
        %v1808 = vadd.f32 %v1644, %v1750
        %v1809 = vadd.f32 %v1645, %v1752
        %v1810 = vadd.f32 %v1646, %v1754
        %v1811 = vadd.f32 %v1647, %v1756
        %v1812 = vadd.f32 %v1648, %v1758
        %v1813 = vadd.f32 %v1649, %v1760
        %v1814 = vadd.f32 %v1650, %v1762
        %v1815 = vadd.f32 %v1651, %v1764
        %v1816 = vadd.f32 %v1652, %v1766
        %v1817 = vadd.f32 %v1653, %v1768
        %v1818 = vadd.f32 %v1654, %v1770
        %s1819 = scalar_lea.vmem [#allocation10], 18
        %v1820 = vld [vmem:[%s1819] ss:$8 sm:$0x3]
        %v1822 = vlaneseq
        %v1823 = vshrl.u32 %v1822, 7
        %v1824 = vsub.s32 0, %v1823
        %v1825 = vrot.slane %v1820, %v1824
        %v1826 = vlaneseq
        %v1827 = vshrl.u32 %v1826, 7
        %v1828 = vsub.s32 1, %v1827
        %v1829 = vrot.slane %v1820, %v1828
        %v1832 = vmul.f32 %v1127, %v1825
        %v1833 = vmul.f32 %v1128, %v1829
        %v1834 = vmul.f32 %v1129, %v1825
        %v1835 = vmul.f32 %v1130, %v1829
        %v1836 = vmul.f32 %v1131, %v1825
        %v1837 = vmul.f32 %v1132, %v1829
        %v1838 = vmul.f32 %v1133, %v1825
        %v1839 = vmul.f32 %v1134, %v1829
        %v1840 = vmul.f32 %v1135, %v1825
        %v1841 = vmul.f32 %v1136, %v1829
        %v1842 = vmul.f32 %v1137, %v1825
        %v1843 = vmul.f32 %v1138, %v1829
        %v1844 = vmul.f32 %v1139, %v1825
        %v1845 = vmul.f32 %v1140, %v1829
        %v1846 = vmul.f32 %v1141, %v1825
        %v1847 = vmul.f32 %v1142, %v1829
        %v1848 = vmul.f32 %v1143, %v1825
        %v1849 = vmul.f32 %v1144, %v1829
        %v1850 = vmul.f32 %v1145, %v1825
        %v1851 = vmul.f32 %v1146, %v1829
        %v1852 = vmul.f32 %v1147, %v1825
        %v1853 = vmul.f32 %v1148, %v1829
        %v1854 = vmul.f32 %v1149, %v1825
        %v1855 = vmul.f32 %v1150, %v1829
        %v1856 = vmul.f32 %v1168, %v1825
        %v1857 = vmul.f32 %v1169, %v1829
        %v1884 = vrot.slane %v1832, 2
        %v1885 = vrot.slane %v1834, 2
        %v1886 = vsel %vm1720, %v1884, %v1885
        %v1887 = vrot.slane %v1833, 2
        %v1888 = vrot.slane %v1835, 2
        %v1889 = vsel %vm1720, %v1887, %v1888
        %v1890 = vrot.slane %v1836, 2
        %v1891 = vsel %vm1720, %v1885, %v1890
        %v1892 = vrot.slane %v1837, 2
        %v1893 = vsel %vm1720, %v1888, %v1892
        %v1894 = vrot.slane %v1838, 2
        %v1895 = vsel %vm1720, %v1890, %v1894
        %v1896 = vrot.slane %v1839, 2
        %v1897 = vsel %vm1720, %v1892, %v1896
        %v1898 = vrot.slane %v1840, 2
        %v1899 = vsel %vm1720, %v1894, %v1898
        %v1900 = vrot.slane %v1841, 2
        %v1901 = vsel %vm1720, %v1896, %v1900
        %v1902 = vrot.slane %v1842, 2
        %v1903 = vsel %vm1720, %v1898, %v1902
        %v1904 = vrot.slane %v1843, 2
        %v1905 = vsel %vm1720, %v1900, %v1904
        %v1906 = vrot.slane %v1844, 2
        %v1907 = vsel %vm1720, %v1902, %v1906
        %v1908 = vrot.slane %v1845, 2
        %v1909 = vsel %vm1720, %v1904, %v1908
        %v1910 = vrot.slane %v1846, 2
        %v1911 = vsel %vm1720, %v1906, %v1910
        %v1912 = vrot.slane %v1847, 2
        %v1913 = vsel %vm1720, %v1908, %v1912
        %v1914 = vrot.slane %v1848, 2
        %v1915 = vsel %vm1720, %v1910, %v1914
        %v1916 = vrot.slane %v1849, 2
        %v1917 = vsel %vm1720, %v1912, %v1916
        %v1918 = vrot.slane %v1850, 2
        %v1919 = vsel %vm1720, %v1914, %v1918
        %v1920 = vrot.slane %v1851, 2
        %v1921 = vsel %vm1720, %v1916, %v1920
        %v1922 = vrot.slane %v1852, 2
        %v1923 = vsel %vm1720, %v1918, %v1922
        %v1924 = vrot.slane %v1853, 2
        %v1925 = vsel %vm1720, %v1920, %v1924
        %v1926 = vrot.slane %v1854, 2
        %v1927 = vsel %vm1720, %v1922, %v1926
        %v1928 = vrot.slane %v1855, 2
        %v1929 = vsel %vm1720, %v1924, %v1928
        %v1930 = vrot.slane %v1856, 2
        %v1931 = vsel %vm1720, %v1926, %v1930
        %v1932 = vrot.slane %v1857, 2
        %v1933 = vsel %vm1720, %v1928, %v1932
        %v1958 = vadd.f32 %v1795, %v1886
        %v1959 = vadd.f32 %v1796, %v1889
        %v1960 = vadd.f32 %v1797, %v1891
        %v1961 = vadd.f32 %v1798, %v1893
        %v1962 = vadd.f32 %v1799, %v1895
        %v1963 = vadd.f32 %v1800, %v1897
        %v1964 = vadd.f32 %v1801, %v1899
        %v1965 = vadd.f32 %v1802, %v1901
        %v1966 = vadd.f32 %v1803, %v1903
        %v1967 = vadd.f32 %v1804, %v1905
        %v1968 = vadd.f32 %v1805, %v1907
        %v1969 = vadd.f32 %v1806, %v1909
        %v1970 = vadd.f32 %v1807, %v1911
        %v1971 = vadd.f32 %v1808, %v1913
        %v1972 = vadd.f32 %v1809, %v1915
        %v1973 = vadd.f32 %v1810, %v1917
        %v1974 = vadd.f32 %v1811, %v1919
        %v1975 = vadd.f32 %v1812, %v1921
        %v1976 = vadd.f32 %v1813, %v1923
        %v1977 = vadd.f32 %v1814, %v1925
        %v1978 = vadd.f32 %v1815, %v1927
        %v1979 = vadd.f32 %v1816, %v1929
        %v1980 = vadd.f32 %v1817, %v1931
        %v1981 = vadd.f32 %v1818, %v1933
        %s1982 = scalar_lea.vmem [#allocation10], 3
        %v1983 = vld [vmem:[%s1982] ss:$8 sm:$0x3]
        %v1985 = vlaneseq
        %v1986 = vshrl.u32 %v1985, 7
        %v1987 = vsub.s32 0, %v1986
        %v1988 = vrot.slane %v1983, %v1987
        %v1989 = vlaneseq
        %v1990 = vshrl.u32 %v1989, 7
        %v1991 = vsub.s32 1, %v1990
        %v1992 = vrot.slane %v1983, %v1991
        %v1995 = vmul.f32 %v1157, %v1988
        %v1996 = vmul.f32 %v1158, %v1992
        %v1997 = vmul.f32 %v1127, %v1988
        %v1998 = vmul.f32 %v1128, %v1992
        %v1999 = vmul.f32 %v1129, %v1988
        %v2000 = vmul.f32 %v1130, %v1992
        %v2001 = vmul.f32 %v1131, %v1988
        %v2002 = vmul.f32 %v1132, %v1992
        %v2003 = vmul.f32 %v1133, %v1988
        %v2004 = vmul.f32 %v1134, %v1992
        %v2005 = vmul.f32 %v1135, %v1988
        %v2006 = vmul.f32 %v1136, %v1992
        %v2007 = vmul.f32 %v1137, %v1988
        %v2008 = vmul.f32 %v1138, %v1992
        %v2009 = vmul.f32 %v1139, %v1988
        %v2010 = vmul.f32 %v1140, %v1992
        %v2011 = vmul.f32 %v1141, %v1988
        %v2012 = vmul.f32 %v1142, %v1992
        %v2013 = vmul.f32 %v1143, %v1988
        %v2014 = vmul.f32 %v1144, %v1992
        %v2015 = vmul.f32 %v1145, %v1988
        %v2016 = vmul.f32 %v1146, %v1992
        %v2017 = vmul.f32 %v1147, %v1988
        %v2018 = vmul.f32 %v1148, %v1992
        %v2019 = vmul.f32 %v1149, %v1988
        %v2020 = vmul.f32 %v1150, %v1992
        %vm2047 = vcmask 1044480
        %v2048 = vrot.slane %v1995, 3
        %v2049 = vrot.slane %v1997, 3
        %v2050 = vsel %vm2047, %v2048, %v2049
        %v2051 = vrot.slane %v1996, 3
        %v2052 = vrot.slane %v1998, 3
        %v2053 = vsel %vm2047, %v2051, %v2052
        %v2054 = vrot.slane %v1999, 3
        %v2055 = vsel %vm2047, %v2049, %v2054
        %v2056 = vrot.slane %v2000, 3
        %v2057 = vsel %vm2047, %v2052, %v2056
        %v2058 = vrot.slane %v2001, 3
        %v2059 = vsel %vm2047, %v2054, %v2058
        %v2060 = vrot.slane %v2002, 3
        %v2061 = vsel %vm2047, %v2056, %v2060
        %v2062 = vrot.slane %v2003, 3
        %v2063 = vsel %vm2047, %v2058, %v2062
        %v2064 = vrot.slane %v2004, 3
        %v2065 = vsel %vm2047, %v2060, %v2064
        %v2066 = vrot.slane %v2005, 3
        %v2067 = vsel %vm2047, %v2062, %v2066
        %v2068 = vrot.slane %v2006, 3
        %v2069 = vsel %vm2047, %v2064, %v2068
        %v2070 = vrot.slane %v2007, 3
        %v2071 = vsel %vm2047, %v2066, %v2070
        %v2072 = vrot.slane %v2008, 3
        %v2073 = vsel %vm2047, %v2068, %v2072
        %v2074 = vrot.slane %v2009, 3
        %v2075 = vsel %vm2047, %v2070, %v2074
        %v2076 = vrot.slane %v2010, 3
        %v2077 = vsel %vm2047, %v2072, %v2076
        %v2078 = vrot.slane %v2011, 3
        %v2079 = vsel %vm2047, %v2074, %v2078
        %v2080 = vrot.slane %v2012, 3
        %v2081 = vsel %vm2047, %v2076, %v2080
        %v2082 = vrot.slane %v2013, 3
        %v2083 = vsel %vm2047, %v2078, %v2082
        %v2084 = vrot.slane %v2014, 3
        %v2085 = vsel %vm2047, %v2080, %v2084
        %v2086 = vrot.slane %v2015, 3
        %v2087 = vsel %vm2047, %v2082, %v2086
        %v2088 = vrot.slane %v2016, 3
        %v2089 = vsel %vm2047, %v2084, %v2088
        %v2090 = vrot.slane %v2017, 3
        %v2091 = vsel %vm2047, %v2086, %v2090
        %v2092 = vrot.slane %v2018, 3
        %v2093 = vsel %vm2047, %v2088, %v2092
        %v2094 = vrot.slane %v2019, 3
        %v2095 = vsel %vm2047, %v2090, %v2094
        %v2096 = vrot.slane %v2020, 3
        %v2097 = vsel %vm2047, %v2092, %v2096
        %v2122 = vadd.f32 %v1958, %v2050
        %v2123 = vadd.f32 %v1959, %v2053
        %v2124 = vadd.f32 %v1960, %v2055
        %v2125 = vadd.f32 %v1961, %v2057
        %v2126 = vadd.f32 %v1962, %v2059
        %v2127 = vadd.f32 %v1963, %v2061
        %v2128 = vadd.f32 %v1964, %v2063
        %v2129 = vadd.f32 %v1965, %v2065
        %v2130 = vadd.f32 %v1966, %v2067
        %v2131 = vadd.f32 %v1967, %v2069
        %v2132 = vadd.f32 %v1968, %v2071
        %v2133 = vadd.f32 %v1969, %v2073
        %v2134 = vadd.f32 %v1970, %v2075
        %v2135 = vadd.f32 %v1971, %v2077
        %v2136 = vadd.f32 %v1972, %v2079
        %v2137 = vadd.f32 %v1973, %v2081
        %v2138 = vadd.f32 %v1974, %v2083
        %v2139 = vadd.f32 %v1975, %v2085
        %v2140 = vadd.f32 %v1976, %v2087
        %v2141 = vadd.f32 %v1977, %v2089
        %v2142 = vadd.f32 %v1978, %v2091
        %v2143 = vadd.f32 %v1979, %v2093
        %v2144 = vadd.f32 %v1980, %v2095
        %v2145 = vadd.f32 %v1981, %v2097
        %s2146 = scalar_lea.vmem [#allocation10], 19
        %v2147 = vld [vmem:[%s2146] ss:$8 sm:$0x3]
        %v2149 = vlaneseq
        %v2150 = vshrl.u32 %v2149, 7
        %v2151 = vsub.s32 0, %v2150
        %v2152 = vrot.slane %v2147, %v2151
        %v2153 = vlaneseq
        %v2154 = vshrl.u32 %v2153, 7
        %v2155 = vsub.s32 1, %v2154
        %v2156 = vrot.slane %v2147, %v2155
        %v2159 = vmul.f32 %v1127, %v2152
        %v2160 = vmul.f32 %v1128, %v2156
        %v2161 = vmul.f32 %v1129, %v2152
        %v2162 = vmul.f32 %v1130, %v2156
        %v2163 = vmul.f32 %v1131, %v2152
        %v2164 = vmul.f32 %v1132, %v2156
        %v2165 = vmul.f32 %v1133, %v2152
        %v2166 = vmul.f32 %v1134, %v2156
        %v2167 = vmul.f32 %v1135, %v2152
        %v2168 = vmul.f32 %v1136, %v2156
        %v2169 = vmul.f32 %v1137, %v2152
        %v2170 = vmul.f32 %v1138, %v2156
        %v2171 = vmul.f32 %v1139, %v2152
        %v2172 = vmul.f32 %v1140, %v2156
        %v2173 = vmul.f32 %v1141, %v2152
        %v2174 = vmul.f32 %v1142, %v2156
        %v2175 = vmul.f32 %v1143, %v2152
        %v2176 = vmul.f32 %v1144, %v2156
        %v2177 = vmul.f32 %v1145, %v2152
        %v2178 = vmul.f32 %v1146, %v2156
        %v2179 = vmul.f32 %v1147, %v2152
        %v2180 = vmul.f32 %v1148, %v2156
        %v2181 = vmul.f32 %v1149, %v2152
        %v2182 = vmul.f32 %v1150, %v2156
        %v2183 = vmul.f32 %v1168, %v2152
        %v2184 = vmul.f32 %v1169, %v2156
        %v2211 = vrot.slane %v2159, 3
        %v2212 = vrot.slane %v2161, 3
        %v2213 = vsel %vm2047, %v2211, %v2212
        %v2214 = vrot.slane %v2160, 3
        %v2215 = vrot.slane %v2162, 3
        %v2216 = vsel %vm2047, %v2214, %v2215
        %v2217 = vrot.slane %v2163, 3
        %v2218 = vsel %vm2047, %v2212, %v2217
        %v2219 = vrot.slane %v2164, 3
        %v2220 = vsel %vm2047, %v2215, %v2219
        %v2221 = vrot.slane %v2165, 3
        %v2222 = vsel %vm2047, %v2217, %v2221
        %v2223 = vrot.slane %v2166, 3
        %v2224 = vsel %vm2047, %v2219, %v2223
        %v2225 = vrot.slane %v2167, 3
        %v2226 = vsel %vm2047, %v2221, %v2225
        %v2227 = vrot.slane %v2168, 3
        %v2228 = vsel %vm2047, %v2223, %v2227
        %v2229 = vrot.slane %v2169, 3
        %v2230 = vsel %vm2047, %v2225, %v2229
        %v2231 = vrot.slane %v2170, 3
        %v2232 = vsel %vm2047, %v2227, %v2231
        %v2233 = vrot.slane %v2171, 3
        %v2234 = vsel %vm2047, %v2229, %v2233
        %v2235 = vrot.slane %v2172, 3
        %v2236 = vsel %vm2047, %v2231, %v2235
        %v2237 = vrot.slane %v2173, 3
        %v2238 = vsel %vm2047, %v2233, %v2237
        %v2239 = vrot.slane %v2174, 3
        %v2240 = vsel %vm2047, %v2235, %v2239
        %v2241 = vrot.slane %v2175, 3
        %v2242 = vsel %vm2047, %v2237, %v2241
        %v2243 = vrot.slane %v2176, 3
        %v2244 = vsel %vm2047, %v2239, %v2243
        %v2245 = vrot.slane %v2177, 3
        %v2246 = vsel %vm2047, %v2241, %v2245
        %v2247 = vrot.slane %v2178, 3
        %v2248 = vsel %vm2047, %v2243, %v2247
        %v2249 = vrot.slane %v2179, 3
        %v2250 = vsel %vm2047, %v2245, %v2249
        %v2251 = vrot.slane %v2180, 3
        %v2252 = vsel %vm2047, %v2247, %v2251
        %v2253 = vrot.slane %v2181, 3
        %v2254 = vsel %vm2047, %v2249, %v2253
        %v2255 = vrot.slane %v2182, 3
        %v2256 = vsel %vm2047, %v2251, %v2255
        %v2257 = vrot.slane %v2183, 3
        %v2258 = vsel %vm2047, %v2253, %v2257
        %v2259 = vrot.slane %v2184, 3
        %v2260 = vsel %vm2047, %v2255, %v2259
        %v2285 = vadd.f32 %v2122, %v2213
        %v2286 = vadd.f32 %v2123, %v2216
        %v2287 = vadd.f32 %v2124, %v2218
        %v2288 = vadd.f32 %v2125, %v2220
        %v2289 = vadd.f32 %v2126, %v2222
        %v2290 = vadd.f32 %v2127, %v2224
        %v2291 = vadd.f32 %v2128, %v2226
        %v2292 = vadd.f32 %v2129, %v2228
        %v2293 = vadd.f32 %v2130, %v2230
        %v2294 = vadd.f32 %v2131, %v2232
        %v2295 = vadd.f32 %v2132, %v2234
        %v2296 = vadd.f32 %v2133, %v2236
        %v2297 = vadd.f32 %v2134, %v2238
        %v2298 = vadd.f32 %v2135, %v2240
        %v2299 = vadd.f32 %v2136, %v2242
        %v2300 = vadd.f32 %v2137, %v2244
        %v2301 = vadd.f32 %v2138, %v2246
        %v2302 = vadd.f32 %v2139, %v2248
        %v2303 = vadd.f32 %v2140, %v2250
        %v2304 = vadd.f32 %v2141, %v2252
        %v2305 = vadd.f32 %v2142, %v2254
        %v2306 = vadd.f32 %v2143, %v2256
        %v2307 = vadd.f32 %v2144, %v2258
        %v2308 = vadd.f32 %v2145, %v2260
        %s2309 = scalar_lea.vmem [#allocation10], 4
        %v2310 = vld [vmem:[%s2309] ss:$8 sm:$0x3]
        %v2312 = vlaneseq
        %v2313 = vshrl.u32 %v2312, 7
        %v2314 = vsub.s32 0, %v2313
        %v2315 = vrot.slane %v2310, %v2314
        %v2316 = vlaneseq
        %v2317 = vshrl.u32 %v2316, 7
        %v2318 = vsub.s32 1, %v2317
        %v2319 = vrot.slane %v2310, %v2318
        %v2322 = vmul.f32 %v1157, %v2315
        %v2323 = vmul.f32 %v1158, %v2319
        %v2324 = vmul.f32 %v1127, %v2315
        %v2325 = vmul.f32 %v1128, %v2319
        %v2326 = vmul.f32 %v1129, %v2315
        %v2327 = vmul.f32 %v1130, %v2319
        %v2328 = vmul.f32 %v1131, %v2315
        %v2329 = vmul.f32 %v1132, %v2319
        %v2330 = vmul.f32 %v1133, %v2315
        %v2331 = vmul.f32 %v1134, %v2319
        %v2332 = vmul.f32 %v1135, %v2315
        %v2333 = vmul.f32 %v1136, %v2319
        %v2334 = vmul.f32 %v1137, %v2315
        %v2335 = vmul.f32 %v1138, %v2319
        %v2336 = vmul.f32 %v1139, %v2315
        %v2337 = vmul.f32 %v1140, %v2319
        %v2338 = vmul.f32 %v1141, %v2315
        %v2339 = vmul.f32 %v1142, %v2319
        %v2340 = vmul.f32 %v1143, %v2315
        %v2341 = vmul.f32 %v1144, %v2319
        %v2342 = vmul.f32 %v1145, %v2315
        %v2343 = vmul.f32 %v1146, %v2319
        %v2344 = vmul.f32 %v1147, %v2315
        %v2345 = vmul.f32 %v1148, %v2319
        %v2346 = vmul.f32 %v1149, %v2315
        %v2347 = vmul.f32 %v1150, %v2319
        %vm2374 = vcmask 1043456
        %v2375 = vrot.slane %v2322, 4
        %v2376 = vrot.slane %v2324, 4
        %v2377 = vsel %vm2374, %v2375, %v2376
        %v2378 = vrot.slane %v2323, 4
        %v2379 = vrot.slane %v2325, 4
        %v2380 = vsel %vm2374, %v2378, %v2379
        %v2381 = vrot.slane %v2326, 4
        %v2382 = vsel %vm2374, %v2376, %v2381
        %v2383 = vrot.slane %v2327, 4
        %v2384 = vsel %vm2374, %v2379, %v2383
        %v2385 = vrot.slane %v2328, 4
        %v2386 = vsel %vm2374, %v2381, %v2385
        %v2387 = vrot.slane %v2329, 4
        %v2388 = vsel %vm2374, %v2383, %v2387
        %v2389 = vrot.slane %v2330, 4
        %v2390 = vsel %vm2374, %v2385, %v2389
        %v2391 = vrot.slane %v2331, 4
        %v2392 = vsel %vm2374, %v2387, %v2391
        %v2393 = vrot.slane %v2332, 4
        %v2394 = vsel %vm2374, %v2389, %v2393
        %v2395 = vrot.slane %v2333, 4
        %v2396 = vsel %vm2374, %v2391, %v2395
        %v2397 = vrot.slane %v2334, 4
        %v2398 = vsel %vm2374, %v2393, %v2397
        %v2399 = vrot.slane %v2335, 4
        %v2400 = vsel %vm2374, %v2395, %v2399
        %v2401 = vrot.slane %v2336, 4
        %v2402 = vsel %vm2374, %v2397, %v2401
        %v2403 = vrot.slane %v2337, 4
        %v2404 = vsel %vm2374, %v2399, %v2403
        %v2405 = vrot.slane %v2338, 4
        %v2406 = vsel %vm2374, %v2401, %v2405
        %v2407 = vrot.slane %v2339, 4
        %v2408 = vsel %vm2374, %v2403, %v2407
        %v2409 = vrot.slane %v2340, 4
        %v2410 = vsel %vm2374, %v2405, %v2409
        %v2411 = vrot.slane %v2341, 4
        %v2412 = vsel %vm2374, %v2407, %v2411
        %v2413 = vrot.slane %v2342, 4
        %v2414 = vsel %vm2374, %v2409, %v2413
        %v2415 = vrot.slane %v2343, 4
        %v2416 = vsel %vm2374, %v2411, %v2415
        %v2417 = vrot.slane %v2344, 4
        %v2418 = vsel %vm2374, %v2413, %v2417
        %v2419 = vrot.slane %v2345, 4
        %v2420 = vsel %vm2374, %v2415, %v2419
        %v2421 = vrot.slane %v2346, 4
        %v2422 = vsel %vm2374, %v2417, %v2421
        %v2423 = vrot.slane %v2347, 4
        %v2424 = vsel %vm2374, %v2419, %v2423
        %v2449 = vadd.f32 %v2285, %v2377
        %v2450 = vadd.f32 %v2286, %v2380
        %v2451 = vadd.f32 %v2287, %v2382
        %v2452 = vadd.f32 %v2288, %v2384
        %v2453 = vadd.f32 %v2289, %v2386
        %v2454 = vadd.f32 %v2290, %v2388
        %v2455 = vadd.f32 %v2291, %v2390
        %v2456 = vadd.f32 %v2292, %v2392
        %v2457 = vadd.f32 %v2293, %v2394
        %v2458 = vadd.f32 %v2294, %v2396
        %v2459 = vadd.f32 %v2295, %v2398
        %v2460 = vadd.f32 %v2296, %v2400
        %v2461 = vadd.f32 %v2297, %v2402
        %v2462 = vadd.f32 %v2298, %v2404
        %v2463 = vadd.f32 %v2299, %v2406
        %v2464 = vadd.f32 %v2300, %v2408
        %v2465 = vadd.f32 %v2301, %v2410
        %v2466 = vadd.f32 %v2302, %v2412
        %v2467 = vadd.f32 %v2303, %v2414
        %v2468 = vadd.f32 %v2304, %v2416
        %v2469 = vadd.f32 %v2305, %v2418
        %v2470 = vadd.f32 %v2306, %v2420
        %v2471 = vadd.f32 %v2307, %v2422
        %v2472 = vadd.f32 %v2308, %v2424
        %s2473 = scalar_lea.vmem [#allocation10], 20
        %v2474 = vld [vmem:[%s2473] ss:$8 sm:$0x3]
        %v2476 = vlaneseq
        %v2477 = vshrl.u32 %v2476, 7
        %v2478 = vsub.s32 0, %v2477
        %v2479 = vrot.slane %v2474, %v2478
        %v2480 = vlaneseq
        %v2481 = vshrl.u32 %v2480, 7
        %v2482 = vsub.s32 1, %v2481
        %v2483 = vrot.slane %v2474, %v2482
        %v2486 = vmul.f32 %v1127, %v2479
        %v2487 = vmul.f32 %v1128, %v2483
        %v2488 = vmul.f32 %v1129, %v2479
        %v2489 = vmul.f32 %v1130, %v2483
        %v2490 = vmul.f32 %v1131, %v2479
        %v2491 = vmul.f32 %v1132, %v2483
        %v2492 = vmul.f32 %v1133, %v2479
        %v2493 = vmul.f32 %v1134, %v2483
        %v2494 = vmul.f32 %v1135, %v2479
        %v2495 = vmul.f32 %v1136, %v2483
        %v2496 = vmul.f32 %v1137, %v2479
        %v2497 = vmul.f32 %v1138, %v2483
        %v2498 = vmul.f32 %v1139, %v2479
        %v2499 = vmul.f32 %v1140, %v2483
        %v2500 = vmul.f32 %v1141, %v2479
        %v2501 = vmul.f32 %v1142, %v2483
        %v2502 = vmul.f32 %v1143, %v2479
        %v2503 = vmul.f32 %v1144, %v2483
        %v2504 = vmul.f32 %v1145, %v2479
        %v2505 = vmul.f32 %v1146, %v2483
        %v2506 = vmul.f32 %v1147, %v2479
        %v2507 = vmul.f32 %v1148, %v2483
        %v2508 = vmul.f32 %v1149, %v2479
        %v2509 = vmul.f32 %v1150, %v2483
        %v2510 = vmul.f32 %v1168, %v2479
        %v2511 = vmul.f32 %v1169, %v2483
        %v2538 = vrot.slane %v2486, 4
        %v2539 = vrot.slane %v2488, 4
        %v2540 = vsel %vm2374, %v2538, %v2539
        %v2541 = vrot.slane %v2487, 4
        %v2542 = vrot.slane %v2489, 4
        %v2543 = vsel %vm2374, %v2541, %v2542
        %v2544 = vrot.slane %v2490, 4
        %v2545 = vsel %vm2374, %v2539, %v2544
        %v2546 = vrot.slane %v2491, 4
        %v2547 = vsel %vm2374, %v2542, %v2546
        %v2548 = vrot.slane %v2492, 4
        %v2549 = vsel %vm2374, %v2544, %v2548
        %v2550 = vrot.slane %v2493, 4
        %v2551 = vsel %vm2374, %v2546, %v2550
        %v2552 = vrot.slane %v2494, 4
        %v2553 = vsel %vm2374, %v2548, %v2552
        %v2554 = vrot.slane %v2495, 4
        %v2555 = vsel %vm2374, %v2550, %v2554
        %v2556 = vrot.slane %v2496, 4
        %v2557 = vsel %vm2374, %v2552, %v2556
        %v2558 = vrot.slane %v2497, 4
        %v2559 = vsel %vm2374, %v2554, %v2558
        %v2560 = vrot.slane %v2498, 4
        %v2561 = vsel %vm2374, %v2556, %v2560
        %v2562 = vrot.slane %v2499, 4
        %v2563 = vsel %vm2374, %v2558, %v2562
        %v2564 = vrot.slane %v2500, 4
        %v2565 = vsel %vm2374, %v2560, %v2564
        %v2566 = vrot.slane %v2501, 4
        %v2567 = vsel %vm2374, %v2562, %v2566
        %v2568 = vrot.slane %v2502, 4
        %v2569 = vsel %vm2374, %v2564, %v2568
        %v2570 = vrot.slane %v2503, 4
        %v2571 = vsel %vm2374, %v2566, %v2570
        %v2572 = vrot.slane %v2504, 4
        %v2573 = vsel %vm2374, %v2568, %v2572
        %v2574 = vrot.slane %v2505, 4
        %v2575 = vsel %vm2374, %v2570, %v2574
        %v2576 = vrot.slane %v2506, 4
        %v2577 = vsel %vm2374, %v2572, %v2576
        %v2578 = vrot.slane %v2507, 4
        %v2579 = vsel %vm2374, %v2574, %v2578
        %v2580 = vrot.slane %v2508, 4
        %v2581 = vsel %vm2374, %v2576, %v2580
        %v2582 = vrot.slane %v2509, 4
        %v2583 = vsel %vm2374, %v2578, %v2582
        %v2584 = vrot.slane %v2510, 4
        %v2585 = vsel %vm2374, %v2580, %v2584
        %v2586 = vrot.slane %v2511, 4
        %v2587 = vsel %vm2374, %v2582, %v2586
        %v2612 = vadd.f32 %v2449, %v2540
        %v2613 = vadd.f32 %v2450, %v2543
        %v2614 = vadd.f32 %v2451, %v2545
        %v2615 = vadd.f32 %v2452, %v2547
        %v2616 = vadd.f32 %v2453, %v2549
        %v2617 = vadd.f32 %v2454, %v2551
        %v2618 = vadd.f32 %v2455, %v2553
        %v2619 = vadd.f32 %v2456, %v2555
        %v2620 = vadd.f32 %v2457, %v2557
        %v2621 = vadd.f32 %v2458, %v2559
        %v2622 = vadd.f32 %v2459, %v2561
        %v2623 = vadd.f32 %v2460, %v2563
        %v2624 = vadd.f32 %v2461, %v2565
        %v2625 = vadd.f32 %v2462, %v2567
        %v2626 = vadd.f32 %v2463, %v2569
        %v2627 = vadd.f32 %v2464, %v2571
        %v2628 = vadd.f32 %v2465, %v2573
        %v2629 = vadd.f32 %v2466, %v2575
        %v2630 = vadd.f32 %v2467, %v2577
        %v2631 = vadd.f32 %v2468, %v2579
        %v2632 = vadd.f32 %v2469, %v2581
        %v2633 = vadd.f32 %v2470, %v2583
        %v2634 = vadd.f32 %v2471, %v2585
        %v2635 = vadd.f32 %v2472, %v2587
        %s2636 = scalar_lea.vmem [#allocation10], 5
        %v2637 = vld [vmem:[%s2636] ss:$8 sm:$0x3]
        %v2639 = vlaneseq
        %v2640 = vshrl.u32 %v2639, 7
        %v2641 = vsub.s32 0, %v2640
        %v2642 = vrot.slane %v2637, %v2641
        %v2643 = vlaneseq
        %v2644 = vshrl.u32 %v2643, 7
        %v2645 = vsub.s32 1, %v2644
        %v2646 = vrot.slane %v2637, %v2645
        %v2649 = vmul.f32 %v1157, %v2642
        %v2650 = vmul.f32 %v1158, %v2646
        %v2651 = vmul.f32 %v1127, %v2642
        %v2652 = vmul.f32 %v1128, %v2646
        %v2653 = vmul.f32 %v1129, %v2642
        %v2654 = vmul.f32 %v1130, %v2646
        %v2655 = vmul.f32 %v1131, %v2642
        %v2656 = vmul.f32 %v1132, %v2646
        %v2657 = vmul.f32 %v1133, %v2642
        %v2658 = vmul.f32 %v1134, %v2646
        %v2659 = vmul.f32 %v1135, %v2642
        %v2660 = vmul.f32 %v1136, %v2646
        %v2661 = vmul.f32 %v1137, %v2642
        %v2662 = vmul.f32 %v1138, %v2646
        %v2663 = vmul.f32 %v1139, %v2642
        %v2664 = vmul.f32 %v1140, %v2646
        %v2665 = vmul.f32 %v1141, %v2642
        %v2666 = vmul.f32 %v1142, %v2646
        %v2667 = vmul.f32 %v1143, %v2642
        %v2668 = vmul.f32 %v1144, %v2646
        %v2669 = vmul.f32 %v1145, %v2642
        %v2670 = vmul.f32 %v1146, %v2646
        %v2671 = vmul.f32 %v1147, %v2642
        %v2672 = vmul.f32 %v1148, %v2646
        %v2673 = vmul.f32 %v1149, %v2642
        %v2674 = vmul.f32 %v1150, %v2646
        %vm2701 = vcmask 1042432
        %v2702 = vrot.slane %v2649, 5
        %v2703 = vrot.slane %v2651, 5
        %v2704 = vsel %vm2701, %v2702, %v2703
        %v2705 = vrot.slane %v2650, 5
        %v2706 = vrot.slane %v2652, 5
        %v2707 = vsel %vm2701, %v2705, %v2706
        %v2708 = vrot.slane %v2653, 5
        %v2709 = vsel %vm2701, %v2703, %v2708
        %v2710 = vrot.slane %v2654, 5
        %v2711 = vsel %vm2701, %v2706, %v2710
        %v2712 = vrot.slane %v2655, 5
        %v2713 = vsel %vm2701, %v2708, %v2712
        %v2714 = vrot.slane %v2656, 5
        %v2715 = vsel %vm2701, %v2710, %v2714
        %v2716 = vrot.slane %v2657, 5
        %v2717 = vsel %vm2701, %v2712, %v2716
        %v2718 = vrot.slane %v2658, 5
        %v2719 = vsel %vm2701, %v2714, %v2718
        %v2720 = vrot.slane %v2659, 5
        %v2721 = vsel %vm2701, %v2716, %v2720
        %v2722 = vrot.slane %v2660, 5
        %v2723 = vsel %vm2701, %v2718, %v2722
        %v2724 = vrot.slane %v2661, 5
        %v2725 = vsel %vm2701, %v2720, %v2724
        %v2726 = vrot.slane %v2662, 5
        %v2727 = vsel %vm2701, %v2722, %v2726
        %v2728 = vrot.slane %v2663, 5
        %v2729 = vsel %vm2701, %v2724, %v2728
        %v2730 = vrot.slane %v2664, 5
        %v2731 = vsel %vm2701, %v2726, %v2730
        %v2732 = vrot.slane %v2665, 5
        %v2733 = vsel %vm2701, %v2728, %v2732
        %v2734 = vrot.slane %v2666, 5
        %v2735 = vsel %vm2701, %v2730, %v2734
        %v2736 = vrot.slane %v2667, 5
        %v2737 = vsel %vm2701, %v2732, %v2736
        %v2738 = vrot.slane %v2668, 5
        %v2739 = vsel %vm2701, %v2734, %v2738
        %v2740 = vrot.slane %v2669, 5
        %v2741 = vsel %vm2701, %v2736, %v2740
        %v2742 = vrot.slane %v2670, 5
        %v2743 = vsel %vm2701, %v2738, %v2742
        %v2744 = vrot.slane %v2671, 5
        %v2745 = vsel %vm2701, %v2740, %v2744
        %v2746 = vrot.slane %v2672, 5
        %v2747 = vsel %vm2701, %v2742, %v2746
        %v2748 = vrot.slane %v2673, 5
        %v2749 = vsel %vm2701, %v2744, %v2748
        %v2750 = vrot.slane %v2674, 5
        %v2751 = vsel %vm2701, %v2746, %v2750
        %v2776 = vadd.f32 %v2612, %v2704
        %v2777 = vadd.f32 %v2613, %v2707
        %v2778 = vadd.f32 %v2614, %v2709
        %v2779 = vadd.f32 %v2615, %v2711
        %v2780 = vadd.f32 %v2616, %v2713
        %v2781 = vadd.f32 %v2617, %v2715
        %v2782 = vadd.f32 %v2618, %v2717
        %v2783 = vadd.f32 %v2619, %v2719
        %v2784 = vadd.f32 %v2620, %v2721
        %v2785 = vadd.f32 %v2621, %v2723
        %v2786 = vadd.f32 %v2622, %v2725
        %v2787 = vadd.f32 %v2623, %v2727
        %v2788 = vadd.f32 %v2624, %v2729
        %v2789 = vadd.f32 %v2625, %v2731
        %v2790 = vadd.f32 %v2626, %v2733
        %v2791 = vadd.f32 %v2627, %v2735
        %v2792 = vadd.f32 %v2628, %v2737
        %v2793 = vadd.f32 %v2629, %v2739
        %v2794 = vadd.f32 %v2630, %v2741
        %v2795 = vadd.f32 %v2631, %v2743
        %v2796 = vadd.f32 %v2632, %v2745
        %v2797 = vadd.f32 %v2633, %v2747
        %v2798 = vadd.f32 %v2634, %v2749
        %v2799 = vadd.f32 %v2635, %v2751
        %s2800 = scalar_lea.vmem [#allocation10], 21
        %v2801 = vld [vmem:[%s2800] ss:$8 sm:$0x3]
        %v2803 = vlaneseq
        %v2804 = vshrl.u32 %v2803, 7
        %v2805 = vsub.s32 0, %v2804
        %v2806 = vrot.slane %v2801, %v2805
        %v2807 = vlaneseq
        %v2808 = vshrl.u32 %v2807, 7
        %v2809 = vsub.s32 1, %v2808
        %v2810 = vrot.slane %v2801, %v2809
        %v2813 = vmul.f32 %v1127, %v2806
        %v2814 = vmul.f32 %v1128, %v2810
        %v2815 = vmul.f32 %v1129, %v2806
        %v2816 = vmul.f32 %v1130, %v2810
        %v2817 = vmul.f32 %v1131, %v2806
        %v2818 = vmul.f32 %v1132, %v2810
        %v2819 = vmul.f32 %v1133, %v2806
        %v2820 = vmul.f32 %v1134, %v2810
        %v2821 = vmul.f32 %v1135, %v2806
        %v2822 = vmul.f32 %v1136, %v2810
        %v2823 = vmul.f32 %v1137, %v2806
        %v2824 = vmul.f32 %v1138, %v2810
        %v2825 = vmul.f32 %v1139, %v2806
        %v2826 = vmul.f32 %v1140, %v2810
        %v2827 = vmul.f32 %v1141, %v2806
        %v2828 = vmul.f32 %v1142, %v2810
        %v2829 = vmul.f32 %v1143, %v2806
        %v2830 = vmul.f32 %v1144, %v2810
        %v2831 = vmul.f32 %v1145, %v2806
        %v2832 = vmul.f32 %v1146, %v2810
        %v2833 = vmul.f32 %v1147, %v2806
        %v2834 = vmul.f32 %v1148, %v2810
        %v2835 = vmul.f32 %v1149, %v2806
        %v2836 = vmul.f32 %v1150, %v2810
        %v2837 = vmul.f32 %v1168, %v2806
        %v2838 = vmul.f32 %v1169, %v2810
        %v2865 = vrot.slane %v2813, 5
        %v2866 = vrot.slane %v2815, 5
        %v2867 = vsel %vm2701, %v2865, %v2866
        %v2868 = vrot.slane %v2814, 5
        %v2869 = vrot.slane %v2816, 5
        %v2870 = vsel %vm2701, %v2868, %v2869
        %v2871 = vrot.slane %v2817, 5
        %v2872 = vsel %vm2701, %v2866, %v2871
        %v2873 = vrot.slane %v2818, 5
        %v2874 = vsel %vm2701, %v2869, %v2873
        %v2875 = vrot.slane %v2819, 5
        %v2876 = vsel %vm2701, %v2871, %v2875
        %v2877 = vrot.slane %v2820, 5
        %v2878 = vsel %vm2701, %v2873, %v2877
        %v2879 = vrot.slane %v2821, 5
        %v2880 = vsel %vm2701, %v2875, %v2879
        %v2881 = vrot.slane %v2822, 5
        %v2882 = vsel %vm2701, %v2877, %v2881
        %v2883 = vrot.slane %v2823, 5
        %v2884 = vsel %vm2701, %v2879, %v2883
        %v2885 = vrot.slane %v2824, 5
        %v2886 = vsel %vm2701, %v2881, %v2885
        %v2887 = vrot.slane %v2825, 5
        %v2888 = vsel %vm2701, %v2883, %v2887
        %v2889 = vrot.slane %v2826, 5
        %v2890 = vsel %vm2701, %v2885, %v2889
        %v2891 = vrot.slane %v2827, 5
        %v2892 = vsel %vm2701, %v2887, %v2891
        %v2893 = vrot.slane %v2828, 5
        %v2894 = vsel %vm2701, %v2889, %v2893
        %v2895 = vrot.slane %v2829, 5
        %v2896 = vsel %vm2701, %v2891, %v2895
        %v2897 = vrot.slane %v2830, 5
        %v2898 = vsel %vm2701, %v2893, %v2897
        %v2899 = vrot.slane %v2831, 5
        %v2900 = vsel %vm2701, %v2895, %v2899
        %v2901 = vrot.slane %v2832, 5
        %v2902 = vsel %vm2701, %v2897, %v2901
        %v2903 = vrot.slane %v2833, 5
        %v2904 = vsel %vm2701, %v2899, %v2903
        %v2905 = vrot.slane %v2834, 5
        %v2906 = vsel %vm2701, %v2901, %v2905
        %v2907 = vrot.slane %v2835, 5
        %v2908 = vsel %vm2701, %v2903, %v2907
        %v2909 = vrot.slane %v2836, 5
        %v2910 = vsel %vm2701, %v2905, %v2909
        %v2911 = vrot.slane %v2837, 5
        %v2912 = vsel %vm2701, %v2907, %v2911
        %v2913 = vrot.slane %v2838, 5
        %v2914 = vsel %vm2701, %v2909, %v2913
        %v2939 = vadd.f32 %v2776, %v2867
        %v2940 = vadd.f32 %v2777, %v2870
        %v2941 = vadd.f32 %v2778, %v2872
        %v2942 = vadd.f32 %v2779, %v2874
        %v2943 = vadd.f32 %v2780, %v2876
        %v2944 = vadd.f32 %v2781, %v2878
        %v2945 = vadd.f32 %v2782, %v2880
        %v2946 = vadd.f32 %v2783, %v2882
        %v2947 = vadd.f32 %v2784, %v2884
        %v2948 = vadd.f32 %v2785, %v2886
        %v2949 = vadd.f32 %v2786, %v2888
        %v2950 = vadd.f32 %v2787, %v2890
        %v2951 = vadd.f32 %v2788, %v2892
        %v2952 = vadd.f32 %v2789, %v2894
        %v2953 = vadd.f32 %v2790, %v2896
        %v2954 = vadd.f32 %v2791, %v2898
        %v2955 = vadd.f32 %v2792, %v2900
        %v2956 = vadd.f32 %v2793, %v2902
        %v2957 = vadd.f32 %v2794, %v2904
        %v2958 = vadd.f32 %v2795, %v2906
        %v2959 = vadd.f32 %v2796, %v2908
        %v2960 = vadd.f32 %v2797, %v2910
        %v2961 = vadd.f32 %v2798, %v2912
        %v2962 = vadd.f32 %v2799, %v2914
        %s2963 = scalar_lea.vmem [#allocation10], 6
        %v2964 = vld [vmem:[%s2963] ss:$8 sm:$0x3]
        %v2966 = vlaneseq
        %v2967 = vshrl.u32 %v2966, 7
        %v2968 = vsub.s32 0, %v2967
        %v2969 = vrot.slane %v2964, %v2968
        %v2970 = vlaneseq
        %v2971 = vshrl.u32 %v2970, 7
        %v2972 = vsub.s32 1, %v2971
        %v2973 = vrot.slane %v2964, %v2972
        %v2976 = vmul.f32 %v1157, %v2969
        %v2977 = vmul.f32 %v1158, %v2973
        %v2978 = vmul.f32 %v1127, %v2969
        %v2979 = vmul.f32 %v1128, %v2973
        %v2980 = vmul.f32 %v1129, %v2969
        %v2981 = vmul.f32 %v1130, %v2973
        %v2982 = vmul.f32 %v1131, %v2969
        %v2983 = vmul.f32 %v1132, %v2973
        %v2984 = vmul.f32 %v1133, %v2969
        %v2985 = vmul.f32 %v1134, %v2973
        %v2986 = vmul.f32 %v1135, %v2969
        %v2987 = vmul.f32 %v1136, %v2973
        %v2988 = vmul.f32 %v1137, %v2969
        %v2989 = vmul.f32 %v1138, %v2973
        %v2990 = vmul.f32 %v1139, %v2969
        %v2991 = vmul.f32 %v1140, %v2973
        %v2992 = vmul.f32 %v1141, %v2969
        %v2993 = vmul.f32 %v1142, %v2973
        %v2994 = vmul.f32 %v1143, %v2969
        %v2995 = vmul.f32 %v1144, %v2973
        %v2996 = vmul.f32 %v1145, %v2969
        %v2997 = vmul.f32 %v1146, %v2973
        %v2998 = vmul.f32 %v1147, %v2969
        %v2999 = vmul.f32 %v1148, %v2973
        %v3000 = vmul.f32 %v1149, %v2969
        %v3001 = vmul.f32 %v1150, %v2973
        %vm3028 = vcmask 1041408
        %v3029 = vrot.slane %v2976, 6
        %v3030 = vrot.slane %v2978, 6
        %v3031 = vsel %vm3028, %v3029, %v3030
        %v3032 = vrot.slane %v2977, 6
        %v3033 = vrot.slane %v2979, 6
        %v3034 = vsel %vm3028, %v3032, %v3033
        %v3035 = vrot.slane %v2980, 6
        %v3036 = vsel %vm3028, %v3030, %v3035
        %v3037 = vrot.slane %v2981, 6
        %v3038 = vsel %vm3028, %v3033, %v3037
        %v3039 = vrot.slane %v2982, 6
        %v3040 = vsel %vm3028, %v3035, %v3039
        %v3041 = vrot.slane %v2983, 6
        %v3042 = vsel %vm3028, %v3037, %v3041
        %v3043 = vrot.slane %v2984, 6
        %v3044 = vsel %vm3028, %v3039, %v3043
        %v3045 = vrot.slane %v2985, 6
        %v3046 = vsel %vm3028, %v3041, %v3045
        %v3047 = vrot.slane %v2986, 6
        %v3048 = vsel %vm3028, %v3043, %v3047
        %v3049 = vrot.slane %v2987, 6
        %v3050 = vsel %vm3028, %v3045, %v3049
        %v3051 = vrot.slane %v2988, 6
        %v3052 = vsel %vm3028, %v3047, %v3051
        %v3053 = vrot.slane %v2989, 6
        %v3054 = vsel %vm3028, %v3049, %v3053
        %v3055 = vrot.slane %v2990, 6
        %v3056 = vsel %vm3028, %v3051, %v3055
        %v3057 = vrot.slane %v2991, 6
        %v3058 = vsel %vm3028, %v3053, %v3057
        %v3059 = vrot.slane %v2992, 6
        %v3060 = vsel %vm3028, %v3055, %v3059
        %v3061 = vrot.slane %v2993, 6
        %v3062 = vsel %vm3028, %v3057, %v3061
        %v3063 = vrot.slane %v2994, 6
        %v3064 = vsel %vm3028, %v3059, %v3063
        %v3065 = vrot.slane %v2995, 6
        %v3066 = vsel %vm3028, %v3061, %v3065
        %v3067 = vrot.slane %v2996, 6
        %v3068 = vsel %vm3028, %v3063, %v3067
        %v3069 = vrot.slane %v2997, 6
        %v3070 = vsel %vm3028, %v3065, %v3069
        %v3071 = vrot.slane %v2998, 6
        %v3072 = vsel %vm3028, %v3067, %v3071
        %v3073 = vrot.slane %v2999, 6
        %v3074 = vsel %vm3028, %v3069, %v3073
        %v3075 = vrot.slane %v3000, 6
        %v3076 = vsel %vm3028, %v3071, %v3075
        %v3077 = vrot.slane %v3001, 6
        %v3078 = vsel %vm3028, %v3073, %v3077
        %v3103 = vadd.f32 %v2939, %v3031
        %v3104 = vadd.f32 %v2940, %v3034
        %v3105 = vadd.f32 %v2941, %v3036
        %v3106 = vadd.f32 %v2942, %v3038
        %v3107 = vadd.f32 %v2943, %v3040
        %v3108 = vadd.f32 %v2944, %v3042
        %v3109 = vadd.f32 %v2945, %v3044
        %v3110 = vadd.f32 %v2946, %v3046
        %v3111 = vadd.f32 %v2947, %v3048
        %v3112 = vadd.f32 %v2948, %v3050
        %v3113 = vadd.f32 %v2949, %v3052
        %v3114 = vadd.f32 %v2950, %v3054
        %v3115 = vadd.f32 %v2951, %v3056
        %v3116 = vadd.f32 %v2952, %v3058
        %v3117 = vadd.f32 %v2953, %v3060
        %v3118 = vadd.f32 %v2954, %v3062
        %v3119 = vadd.f32 %v2955, %v3064
        %v3120 = vadd.f32 %v2956, %v3066
        %v3121 = vadd.f32 %v2957, %v3068
        %v3122 = vadd.f32 %v2958, %v3070
        %v3123 = vadd.f32 %v2959, %v3072
        %v3124 = vadd.f32 %v2960, %v3074
        %v3125 = vadd.f32 %v2961, %v3076
        %v3126 = vadd.f32 %v2962, %v3078
        %s3127 = scalar_lea.vmem [#allocation10], 22
        %v3128 = vld [vmem:[%s3127] ss:$8 sm:$0x3]
        %v3130 = vlaneseq
        %v3131 = vshrl.u32 %v3130, 7
        %v3132 = vsub.s32 0, %v3131
        %v3133 = vrot.slane %v3128, %v3132
        %v3134 = vlaneseq
        %v3135 = vshrl.u32 %v3134, 7
        %v3136 = vsub.s32 1, %v3135
        %v3137 = vrot.slane %v3128, %v3136
        %v3140 = vmul.f32 %v1127, %v3133
        %v3141 = vmul.f32 %v1128, %v3137
        %v3142 = vmul.f32 %v1129, %v3133
        %v3143 = vmul.f32 %v1130, %v3137
        %v3144 = vmul.f32 %v1131, %v3133
        %v3145 = vmul.f32 %v1132, %v3137
        %v3146 = vmul.f32 %v1133, %v3133
        %v3147 = vmul.f32 %v1134, %v3137
        %v3148 = vmul.f32 %v1135, %v3133
        %v3149 = vmul.f32 %v1136, %v3137
        %v3150 = vmul.f32 %v1137, %v3133
        %v3151 = vmul.f32 %v1138, %v3137
        %v3152 = vmul.f32 %v1139, %v3133
        %v3153 = vmul.f32 %v1140, %v3137
        %v3154 = vmul.f32 %v1141, %v3133
        %v3155 = vmul.f32 %v1142, %v3137
        %v3156 = vmul.f32 %v1143, %v3133
        %v3157 = vmul.f32 %v1144, %v3137
        %v3158 = vmul.f32 %v1145, %v3133
        %v3159 = vmul.f32 %v1146, %v3137
        %v3160 = vmul.f32 %v1147, %v3133
        %v3161 = vmul.f32 %v1148, %v3137
        %v3162 = vmul.f32 %v1149, %v3133
        %v3163 = vmul.f32 %v1150, %v3137
        %v3164 = vmul.f32 %v1168, %v3133
        %v3165 = vmul.f32 %v1169, %v3137
        %v3192 = vrot.slane %v3140, 6
        %v3193 = vrot.slane %v3142, 6
        %v3194 = vsel %vm3028, %v3192, %v3193
        %v3195 = vrot.slane %v3141, 6
        %v3196 = vrot.slane %v3143, 6
        %v3197 = vsel %vm3028, %v3195, %v3196
        %v3198 = vrot.slane %v3144, 6
        %v3199 = vsel %vm3028, %v3193, %v3198
        %v3200 = vrot.slane %v3145, 6
        %v3201 = vsel %vm3028, %v3196, %v3200
        %v3202 = vrot.slane %v3146, 6
        %v3203 = vsel %vm3028, %v3198, %v3202
        %v3204 = vrot.slane %v3147, 6
        %v3205 = vsel %vm3028, %v3200, %v3204
        %v3206 = vrot.slane %v3148, 6
        %v3207 = vsel %vm3028, %v3202, %v3206
        %v3208 = vrot.slane %v3149, 6
        %v3209 = vsel %vm3028, %v3204, %v3208
        %v3210 = vrot.slane %v3150, 6
        %v3211 = vsel %vm3028, %v3206, %v3210
        %v3212 = vrot.slane %v3151, 6
        %v3213 = vsel %vm3028, %v3208, %v3212
        %v3214 = vrot.slane %v3152, 6
        %v3215 = vsel %vm3028, %v3210, %v3214
        %v3216 = vrot.slane %v3153, 6
        %v3217 = vsel %vm3028, %v3212, %v3216
        %v3218 = vrot.slane %v3154, 6
        %v3219 = vsel %vm3028, %v3214, %v3218
        %v3220 = vrot.slane %v3155, 6
        %v3221 = vsel %vm3028, %v3216, %v3220
        %v3222 = vrot.slane %v3156, 6
        %v3223 = vsel %vm3028, %v3218, %v3222
        %v3224 = vrot.slane %v3157, 6
        %v3225 = vsel %vm3028, %v3220, %v3224
        %v3226 = vrot.slane %v3158, 6
        %v3227 = vsel %vm3028, %v3222, %v3226
        %v3228 = vrot.slane %v3159, 6
        %v3229 = vsel %vm3028, %v3224, %v3228
        %v3230 = vrot.slane %v3160, 6
        %v3231 = vsel %vm3028, %v3226, %v3230
        %v3232 = vrot.slane %v3161, 6
        %v3233 = vsel %vm3028, %v3228, %v3232
        %v3234 = vrot.slane %v3162, 6
        %v3235 = vsel %vm3028, %v3230, %v3234
        %v3236 = vrot.slane %v3163, 6
        %v3237 = vsel %vm3028, %v3232, %v3236
        %v3238 = vrot.slane %v3164, 6
        %v3239 = vsel %vm3028, %v3234, %v3238
        %v3240 = vrot.slane %v3165, 6
        %v3241 = vsel %vm3028, %v3236, %v3240
        %v3266 = vadd.f32 %v3103, %v3194
        %v3267 = vadd.f32 %v3104, %v3197
        %v3268 = vadd.f32 %v3105, %v3199
        %v3269 = vadd.f32 %v3106, %v3201
        %v3270 = vadd.f32 %v3107, %v3203
        %v3271 = vadd.f32 %v3108, %v3205
        %v3272 = vadd.f32 %v3109, %v3207
        %v3273 = vadd.f32 %v3110, %v3209
        %v3274 = vadd.f32 %v3111, %v3211
        %v3275 = vadd.f32 %v3112, %v3213
        %v3276 = vadd.f32 %v3113, %v3215
        %v3277 = vadd.f32 %v3114, %v3217
        %v3278 = vadd.f32 %v3115, %v3219
        %v3279 = vadd.f32 %v3116, %v3221
        %v3280 = vadd.f32 %v3117, %v3223
        %v3281 = vadd.f32 %v3118, %v3225
        %v3282 = vadd.f32 %v3119, %v3227
        %v3283 = vadd.f32 %v3120, %v3229
        %v3284 = vadd.f32 %v3121, %v3231
        %v3285 = vadd.f32 %v3122, %v3233
        %v3286 = vadd.f32 %v3123, %v3235
        %v3287 = vadd.f32 %v3124, %v3237
        %v3288 = vadd.f32 %v3125, %v3239
        %v3289 = vadd.f32 %v3126, %v3241
        %s3290 = scalar_lea.vmem [#allocation10], 7
        %v3291 = vld [vmem:[%s3290] ss:$8 sm:$0x3]
        %v3293 = vlaneseq
        %v3294 = vshrl.u32 %v3293, 7
        %v3295 = vsub.s32 0, %v3294
        %v3296 = vrot.slane %v3291, %v3295
        %v3297 = vlaneseq
        %v3298 = vshrl.u32 %v3297, 7
        %v3299 = vsub.s32 1, %v3298
        %v3300 = vrot.slane %v3291, %v3299
        %v3303 = vmul.f32 %v1157, %v3296
        %v3304 = vmul.f32 %v1158, %v3300
        %v3305 = vmul.f32 %v1127, %v3296
        %v3306 = vmul.f32 %v1128, %v3300
        %v3307 = vmul.f32 %v1129, %v3296
        %v3308 = vmul.f32 %v1130, %v3300
        %v3309 = vmul.f32 %v1131, %v3296
        %v3310 = vmul.f32 %v1132, %v3300
        %v3311 = vmul.f32 %v1133, %v3296
        %v3312 = vmul.f32 %v1134, %v3300
        %v3313 = vmul.f32 %v1135, %v3296
        %v3314 = vmul.f32 %v1136, %v3300
        %v3315 = vmul.f32 %v1137, %v3296
        %v3316 = vmul.f32 %v1138, %v3300
        %v3317 = vmul.f32 %v1139, %v3296
        %v3318 = vmul.f32 %v1140, %v3300
        %v3319 = vmul.f32 %v1141, %v3296
        %v3320 = vmul.f32 %v1142, %v3300
        %v3321 = vmul.f32 %v1143, %v3296
        %v3322 = vmul.f32 %v1144, %v3300
        %v3323 = vmul.f32 %v1145, %v3296
        %v3324 = vmul.f32 %v1146, %v3300
        %v3325 = vmul.f32 %v1147, %v3296
        %v3326 = vmul.f32 %v1148, %v3300
        %v3327 = vmul.f32 %v1149, %v3296
        %v3328 = vmul.f32 %v1150, %v3300
        %vm3355 = vcmask 1040384
        %v3356 = vrot.slane %v3303, 7
        %v3357 = vrot.slane %v3305, 7
        %v3358 = vsel %vm3355, %v3356, %v3357
        %v3359 = vrot.slane %v3304, 7
        %v3360 = vrot.slane %v3306, 7
        %v3361 = vsel %vm3355, %v3359, %v3360
        %v3362 = vrot.slane %v3307, 7
        %v3363 = vsel %vm3355, %v3357, %v3362
        %v3364 = vrot.slane %v3308, 7
        %v3365 = vsel %vm3355, %v3360, %v3364
        %v3366 = vrot.slane %v3309, 7
        %v3367 = vsel %vm3355, %v3362, %v3366
        %v3368 = vrot.slane %v3310, 7
        %v3369 = vsel %vm3355, %v3364, %v3368
        %v3370 = vrot.slane %v3311, 7
        %v3371 = vsel %vm3355, %v3366, %v3370
        %v3372 = vrot.slane %v3312, 7
        %v3373 = vsel %vm3355, %v3368, %v3372
        %v3374 = vrot.slane %v3313, 7
        %v3375 = vsel %vm3355, %v3370, %v3374
        %v3376 = vrot.slane %v3314, 7
        %v3377 = vsel %vm3355, %v3372, %v3376
        %v3378 = vrot.slane %v3315, 7
        %v3379 = vsel %vm3355, %v3374, %v3378
        %v3380 = vrot.slane %v3316, 7
        %v3381 = vsel %vm3355, %v3376, %v3380
        %v3382 = vrot.slane %v3317, 7
        %v3383 = vsel %vm3355, %v3378, %v3382
        %v3384 = vrot.slane %v3318, 7
        %v3385 = vsel %vm3355, %v3380, %v3384
        %v3386 = vrot.slane %v3319, 7
        %v3387 = vsel %vm3355, %v3382, %v3386
        %v3388 = vrot.slane %v3320, 7
        %v3389 = vsel %vm3355, %v3384, %v3388
        %v3390 = vrot.slane %v3321, 7
        %v3391 = vsel %vm3355, %v3386, %v3390
        %v3392 = vrot.slane %v3322, 7
        %v3393 = vsel %vm3355, %v3388, %v3392
        %v3394 = vrot.slane %v3323, 7
        %v3395 = vsel %vm3355, %v3390, %v3394
        %v3396 = vrot.slane %v3324, 7
        %v3397 = vsel %vm3355, %v3392, %v3396
        %v3398 = vrot.slane %v3325, 7
        %v3399 = vsel %vm3355, %v3394, %v3398
        %v3400 = vrot.slane %v3326, 7
        %v3401 = vsel %vm3355, %v3396, %v3400
        %v3402 = vrot.slane %v3327, 7
        %v3403 = vsel %vm3355, %v3398, %v3402
        %v3404 = vrot.slane %v3328, 7
        %v3405 = vsel %vm3355, %v3400, %v3404
        %v3430 = vadd.f32 %v3266, %v3358
        %v3431 = vadd.f32 %v3267, %v3361
        %v3432 = vadd.f32 %v3268, %v3363
        %v3433 = vadd.f32 %v3269, %v3365
        %v3434 = vadd.f32 %v3270, %v3367
        %v3435 = vadd.f32 %v3271, %v3369
        %v3436 = vadd.f32 %v3272, %v3371
        %v3437 = vadd.f32 %v3273, %v3373
        %v3438 = vadd.f32 %v3274, %v3375
        %v3439 = vadd.f32 %v3275, %v3377
        %v3440 = vadd.f32 %v3276, %v3379
        %v3441 = vadd.f32 %v3277, %v3381
        %v3442 = vadd.f32 %v3278, %v3383
        %v3443 = vadd.f32 %v3279, %v3385
        %v3444 = vadd.f32 %v3280, %v3387
        %v3445 = vadd.f32 %v3281, %v3389
        %v3446 = vadd.f32 %v3282, %v3391
        %v3447 = vadd.f32 %v3283, %v3393
        %v3448 = vadd.f32 %v3284, %v3395
        %v3449 = vadd.f32 %v3285, %v3397
        %v3450 = vadd.f32 %v3286, %v3399
        %v3451 = vadd.f32 %v3287, %v3401
        %v3452 = vadd.f32 %v3288, %v3403
        %v3453 = vadd.f32 %v3289, %v3405
        %s3454 = scalar_lea.vmem [#allocation10], 23
        %v3455 = vld [vmem:[%s3454] ss:$8 sm:$0x3]
        %v3457 = vlaneseq
        %v3458 = vshrl.u32 %v3457, 7
        %v3459 = vsub.s32 0, %v3458
        %v3460 = vrot.slane %v3455, %v3459
        %v3461 = vlaneseq
        %v3462 = vshrl.u32 %v3461, 7
        %v3463 = vsub.s32 1, %v3462
        %v3464 = vrot.slane %v3455, %v3463
        %v3467 = vmul.f32 %v1127, %v3460
        %v3468 = vmul.f32 %v1128, %v3464
        %v3469 = vmul.f32 %v1129, %v3460
        %v3470 = vmul.f32 %v1130, %v3464
        %v3471 = vmul.f32 %v1131, %v3460
        %v3472 = vmul.f32 %v1132, %v3464
        %v3473 = vmul.f32 %v1133, %v3460
        %v3474 = vmul.f32 %v1134, %v3464
        %v3475 = vmul.f32 %v1135, %v3460
        %v3476 = vmul.f32 %v1136, %v3464
        %v3477 = vmul.f32 %v1137, %v3460
        %v3478 = vmul.f32 %v1138, %v3464
        %v3479 = vmul.f32 %v1139, %v3460
        %v3480 = vmul.f32 %v1140, %v3464
        %v3481 = vmul.f32 %v1141, %v3460
        %v3482 = vmul.f32 %v1142, %v3464
        %v3483 = vmul.f32 %v1143, %v3460
        %v3484 = vmul.f32 %v1144, %v3464
        %v3485 = vmul.f32 %v1145, %v3460
        %v3486 = vmul.f32 %v1146, %v3464
        %v3487 = vmul.f32 %v1147, %v3460
        %v3488 = vmul.f32 %v1148, %v3464
        %v3489 = vmul.f32 %v1149, %v3460
        %v3490 = vmul.f32 %v1150, %v3464
        %v3491 = vmul.f32 %v1168, %v3460
        %v3492 = vmul.f32 %v1169, %v3464
        %v3519 = vrot.slane %v3467, 7
        %v3520 = vrot.slane %v3469, 7
        %v3521 = vsel %vm3355, %v3519, %v3520
        %v3522 = vrot.slane %v3468, 7
        %v3523 = vrot.slane %v3470, 7
        %v3524 = vsel %vm3355, %v3522, %v3523
        %v3525 = vrot.slane %v3471, 7
        %v3526 = vsel %vm3355, %v3520, %v3525
        %v3527 = vrot.slane %v3472, 7
        %v3528 = vsel %vm3355, %v3523, %v3527
        %v3529 = vrot.slane %v3473, 7
        %v3530 = vsel %vm3355, %v3525, %v3529
        %v3531 = vrot.slane %v3474, 7
        %v3532 = vsel %vm3355, %v3527, %v3531
        %v3533 = vrot.slane %v3475, 7
        %v3534 = vsel %vm3355, %v3529, %v3533
        %v3535 = vrot.slane %v3476, 7
        %v3536 = vsel %vm3355, %v3531, %v3535
        %v3537 = vrot.slane %v3477, 7
        %v3538 = vsel %vm3355, %v3533, %v3537
        %v3539 = vrot.slane %v3478, 7
        %v3540 = vsel %vm3355, %v3535, %v3539
        %v3541 = vrot.slane %v3479, 7
        %v3542 = vsel %vm3355, %v3537, %v3541
        %v3543 = vrot.slane %v3480, 7
        %v3544 = vsel %vm3355, %v3539, %v3543
        %v3545 = vrot.slane %v3481, 7
        %v3546 = vsel %vm3355, %v3541, %v3545
        %v3547 = vrot.slane %v3482, 7
        %v3548 = vsel %vm3355, %v3543, %v3547
        %v3549 = vrot.slane %v3483, 7
        %v3550 = vsel %vm3355, %v3545, %v3549
        %v3551 = vrot.slane %v3484, 7
        %v3552 = vsel %vm3355, %v3547, %v3551
        %v3553 = vrot.slane %v3485, 7
        %v3554 = vsel %vm3355, %v3549, %v3553
        %v3555 = vrot.slane %v3486, 7
        %v3556 = vsel %vm3355, %v3551, %v3555
        %v3557 = vrot.slane %v3487, 7
        %v3558 = vsel %vm3355, %v3553, %v3557
        %v3559 = vrot.slane %v3488, 7
        %v3560 = vsel %vm3355, %v3555, %v3559
        %v3561 = vrot.slane %v3489, 7
        %v3562 = vsel %vm3355, %v3557, %v3561
        %v3563 = vrot.slane %v3490, 7
        %v3564 = vsel %vm3355, %v3559, %v3563
        %v3565 = vrot.slane %v3491, 7
        %v3566 = vsel %vm3355, %v3561, %v3565
        %v3567 = vrot.slane %v3492, 7
        %v3568 = vsel %vm3355, %v3563, %v3567
        %v3593 = vadd.f32 %v3430, %v3521
        %v3594 = vadd.f32 %v3431, %v3524
        %v3595 = vadd.f32 %v3432, %v3526
        %v3596 = vadd.f32 %v3433, %v3528
        %v3597 = vadd.f32 %v3434, %v3530
        %v3598 = vadd.f32 %v3435, %v3532
        %v3599 = vadd.f32 %v3436, %v3534
        %v3600 = vadd.f32 %v3437, %v3536
        %v3601 = vadd.f32 %v3438, %v3538
        %v3602 = vadd.f32 %v3439, %v3540
        %v3603 = vadd.f32 %v3440, %v3542
        %v3604 = vadd.f32 %v3441, %v3544
        %v3605 = vadd.f32 %v3442, %v3546
        %v3606 = vadd.f32 %v3443, %v3548
        %v3607 = vadd.f32 %v3444, %v3550
        %v3608 = vadd.f32 %v3445, %v3552
        %v3609 = vadd.f32 %v3446, %v3554
        %v3610 = vadd.f32 %v3447, %v3556
        %v3611 = vadd.f32 %v3448, %v3558
        %v3612 = vadd.f32 %v3449, %v3560
        %v3613 = vadd.f32 %v3450, %v3562
        %v3614 = vadd.f32 %v3451, %v3564
        %v3615 = vadd.f32 %v3452, %v3566
        %v3616 = vadd.f32 %v3453, %v3568
        %3617 = vst [vmem:[%s479] sm:$0xff] %v3593
        %3618 = vst [vmem:[%s479 + $0x8] sm:$0xff] %v3594
        %3619 = vst [vmem:[%s479 + $0x10] sm:$0xff] %v3595
        %3620 = vst [vmem:[%s479 + $0x18] sm:$0xff] %v3596
        %3621 = vst [vmem:[%s479 + $0x20] sm:$0xff] %v3597
        %3622 = vst [vmem:[%s479 + $0x28] sm:$0xff] %v3598
        %3623 = vst [vmem:[%s479 + $0x30] sm:$0xff] %v3599
        %3624 = vst [vmem:[%s479 + $0x38] sm:$0xff] %v3600
        %3625 = vst [vmem:[%s479 + $0x40] sm:$0xff] %v3601
        %3626 = vst [vmem:[%s479 + $0x48] sm:$0xff] %v3602
        %3627 = vst [vmem:[%s479 + $0x50] sm:$0xff] %v3603
        %3628 = vst [vmem:[%s479 + $0x58] sm:$0xff] %v3604
        %3629 = vst [vmem:[%s479 + $0x60] sm:$0xff] %v3605
        %3630 = vst [vmem:[%s479 + $0x68] sm:$0xff] %v3606
        %3631 = vst [vmem:[%s479 + $0x70] sm:$0xff] %v3607
        %3632 = vst [vmem:[%s479 + $0x78] sm:$0xff] %v3608
        %3633 = vst [vmem:[%s479 + $0x80] sm:$0xff] %v3609
        %3634 = vst [vmem:[%s479 + $0x88] sm:$0xff] %v3610
        %3635 = vst [vmem:[%s479 + $0x90] sm:$0xff] %v3611
        %3636 = vst [vmem:[%s479 + $0x98] sm:$0xff] %v3612
        %3637 = vst [vmem:[%s479 + $0xa0] sm:$0xff] %v3613
        %3638 = vst [vmem:[%s479 + $0xa8] sm:$0xff] %v3614
        %3639 = vst [vmem:[%s479 + $0xb0] sm:$0xff] %v3615
        %3640 = vst [vmem:[%s479 + $0xb8] sm:$0xff] %v3616
        %s3641 = sand.u32 %s256, 1
        %s3642 = scalar_lea.sflag [#allocation4], %s3641
        %s3643 = sand.u32 %s256, 1
        %s3644 = smul.addr %s3643, 192
        %s3645 = scalar_lea.vmem [#allocation11], %s3644
        // Predicated region
        $region73: #{tpu_custom_call.1} parent=51 // pred_check
          %p3646 = pneg %p266
        $region74: #{tpu_custom_call.1} parent=51 // pred_check_branch
          %3648 = sbr.rel (%p3646) target = $region76
        $region75: #{tpu_custom_call.1} parent=51 // pred_region
          %s3649 = smul.u32 12, %s34
          %s3651 = ssub.s32 3072, 3072
          %3652 = vsyncadd %s3642, %s3651
          %s3653 = smul.addr %s3649, 2
          %s3654 = smul.addr %s33, 48
          %s3655 = sadd.s32 %s3653, %s3654
          %s3656 = smul.addr %s3655, 128
          %s3657 = scalar_lea.hbm %s8, %s3656
          %s3658 = sshll.u32 %s3645, 4
          %s3659 = int_to_ptr.vmem [resolvable:$true] %s3658
          %3664 = dma.vmem_to_hbm [thread:$0]  %s3659, 3072, %s3657, %s3642, 256, 256, 16
        $region76: #{tpu_custom_call.1} parent=51 // pred_fallthru
          _
      $region52: #{tpu_custom_call.1} parent=5 // pred_fallthru
        _
      %p3665 = scmp.le.s32.totalorder 2, %s24
      // Predicated region
      $region77: #{tpu_custom_call.1} parent=5 // pred_check
        %p3666 = pneg %p3665
      $region78: #{tpu_custom_call.1} parent=5 // pred_check_branch
        %3668 = sbr.rel (%p3666) target = $region80
      $region79: #{tpu_custom_call.1} parent=5 // pred_region
        %s3669 = ssub.s32 %s24, 2
        // Predicated region
        $region81: #{tpu_custom_call.1} parent=79 // pred_check
          %p3670 = pneg %p272
        $region82: #{tpu_custom_call.1} parent=79 // pred_check_branch
          %3672 = sbr.rel (%p3670) target = $region84
        $region83: #{tpu_custom_call.1} parent=79 // pred_region
          %s3673 = sand.u32 %s257, 1
          %s3674 = scalar_lea.sflag [#allocation4], %s3673
          %s3675 = sand.u32 %s257, 1
          %s3676 = smul.addr %s3675, 192
          %s3677 = scalar_lea.vmem [#allocation11], %s3676
          %3678 = dma.done %s3674, 3072
        $region84: #{tpu_custom_call.1} parent=79 // pred_fallthru
          _
      $region80: #{tpu_custom_call.1} parent=5 // pred_fallthru
        _
    $region6: #{tpu_custom_call.1} parent=1 // loop_footer
      %s28 = sadd.s32 1, %s24
    $region7: #{tpu_custom_call.1} parent=1 // loop_footer_branch
      %23 = sbr.rel target = $region3
    $region8: #{tpu_custom_call.1} parent=1 // loop_exit
      _
    %3679 = vsyncpa [#allocation3], 1
    %s3680 = scalar_lea.sflag [#allocation3], 1
    %3681 = vsyncpa %s3680, 1
    %3682 = vsyncpa [#allocation6], 1
    %s3683 = scalar_lea.sflag [#allocation6], 1
    %3684 = vsyncpa %s3683, 1
    %3685 = vsyncpa [#allocation9], 1
    %3686 = vsyncpa [#allocation4], 1
    %s3687 = scalar_lea.sflag [#allocation4], 1
    %3688 = vsyncpa %s3687, 1

</llo_original>
